<compile_context>
chip_gen: v7x
topology: tpu7x:2x2x1
jax: 0.10.0
libtpu: 0.0.40
codegen_flags: <defaults>
</compile_context>

<pallas_src>
import functools

import jax
import jax.numpy as jnp
from jax.experimental import pallas as pl
from jax.experimental.pallas import tpu as pltpu

LOG2 = 0.6931471805599453  # shift of ShiftedSoftplus


def _round_up(v, m):
    return ((v + m - 1) // m) * m


def _softplus(x):
    # numerically stable softplus (matches F.softplus semantics)
    return jnp.maximum(x, 0.0) + jnp.log1p(jnp.exp(-jnp.abs(x)))


def interaction_kernel(x_ref, ea_ref, c_ref, src_ref, dst_ref,
                       mw1_ref, mb1_ref, mw2_ref, mb2_ref,
                       l1w_ref, l2w_ref, l2b_ref, lw_ref, lb_ref,
                       out_ref, hx_ref, agg_ref):
    f32 = jnp.float32
    nb = pl.program_id(0)            # node-block index ("parallel")
    step = pl.program_id(1)          # edge-tile index ("arbitrary" reduction)
    te = src_ref.shape[0]            # static edge-tile size
    n_pad = hx_ref.shape[0]          # padded node count (multiple of 128)
    n_blk = agg_ref.shape[0]         # node-block size (multiple of 128)

    # ---- first edge step for this node block: lin1(x) once, zero accumulator ----
    @pl.when(step == 0)
    def _():
        hx_ref[...] = jnp.dot(x_ref[...], l1w_ref[...], preferred_element_type=f32)
        agg_ref[...] = jnp.zeros_like(agg_ref)

    # ---- edge filter MLP on this edge tile: Linear -> ShiftedSoftplus -> Linear ----
    h = jnp.dot(ea_ref[...], mw1_ref[...], preferred_element_type=f32) + mb1_ref[...]
    h = _softplus(h) - LOG2
    W = jnp.dot(h, mw2_ref[...], preferred_element_type=f32) + mb2_ref[...]
    W = W * c_ref[...]                                         # precomputed cutoff envelope

    # ---- gather x_j = hx[src] over the FULL node range (src can be any node) ----
    # Padded edges carry the sentinel index n_pad -> all-zero one-hot row.
    gather_iota = jax.lax.broadcasted_iota(jnp.int32, (te, n_pad), 1)   # [TE, N_pad]
    src_oh = (gather_iota == src_ref[...]).astype(f32)                  # [TE, N_pad]
    xj = jnp.dot(src_oh, hx_ref[...], preferred_element_type=f32)       # [TE, F]
    msg = xj * W                                                        # message = x_j * W

    # ---- scatter-add onto THIS core's node block; one-hot built pre-transposed ----
    scatter_iota = jax.lax.broadcasted_iota(jnp.int32, (n_blk, te), 0) + nb * n_blk
    dst_ohT = (scatter_iota == dst_ref[...]).astype(f32)                # [NB, TE]
    agg_ref[...] += jnp.dot(dst_ohT, msg, preferred_element_type=f32)   # [NB, F]
    # TODO(synk): on v7x, if ld/st slots saturate, accumulate in the MXU result
    #             buffer via pltpu.matmul_acc_lhs / matmul_pop instead.

    # ---- last edge step: lin2 -> shifted softplus -> lin, lane-dense output block ----
    @pl.when(step == pl.num_programs(1) - 1)
    def _():
        y = jnp.dot(agg_ref[...], l2w_ref[...], preferred_element_type=f32) + l2b_ref[...]
        y = _softplus(y) - LOG2
        out_ref[...] = jnp.dot(y, lw_ref[...], preferred_element_type=f32) + lb_ref[...]


def interaction_block(params, x, edge_index, edge_length, edge_attr, *,
                      cutoff, smooth, edge_tile=512, node_block=128):
    N, H = x.shape
    E, G = edge_attr.shape
    F_ = params["lin1_w"].shape[1]

    # Edge tile: multiple of 256 (v6e/v7x MXU), clamped so tiny E runs in one step.
    edge_tile = max(256, _round_up(int(edge_tile), 256))
    edge_tile = min(edge_tile, _round_up(E, 256))
    n_tiles = pl.cdiv(E, edge_tile)
    E_pad = n_tiles * edge_tile
    pad_e = E_pad - E

    # Node padding: lane-dense iota / one-hots, and a node-parallel grid axis.
    N_pad = _round_up(N, node_block)
    n_node_blocks = N_pad // node_block
    pad_n = N_pad - N

    # ---- cutoff envelope precomputed outside the kernel (depends only on length) ----
    el = edge_length.reshape(E, 1).astype(jnp.float32)
    if smooth:
        C = 0.5 * (jnp.cos(el * (jnp.pi / cutoff)) + 1.0)
        C = C * ((el <= cutoff) & (el >= 0.0)).astype(jnp.float32)
    else:
        C = (el <= cutoff).astype(jnp.float32)

    src = edge_index[0].astype(jnp.int32).reshape(E, 1)   # sublane-major (for gather)
    dst = edge_index[1].astype(jnp.int32).reshape(1, E)   # lane-major (for transposed scatter)
    ea = edge_attr.astype(jnp.float32)
    if pad_e:
        # Sentinel index N_pad (>= every real/padded iota column) -> zero one-hots.
        src = jnp.concatenate([src, jnp.full((pad_e, 1), N_pad, jnp.int32)], axis=0)
        dst = jnp.concatenate([dst, jnp.full((1, pad_e), N_pad, jnp.int32)], axis=1)
        C = jnp.concatenate([C, jnp.zeros((pad_e, 1), jnp.float32)], axis=0)
        ea = jnp.concatenate([ea, jnp.zeros((pad_e, G), jnp.float32)], axis=0)

    xp = x.astype(jnp.float32)
    if pad_n:
        xp = jnp.concatenate([xp, jnp.zeros((pad_n, H), jnp.float32)], axis=0)

    def resident(shape):
        nd = len(shape)
        return pl.BlockSpec(shape, lambda j, i, _nd=nd: (0,) * _nd)

    in_specs = [
        resident((N_pad, H)),                                  # x (node features, resident)
        pl.BlockSpec((edge_tile, G), lambda j, i: (i, 0)),     # edge_attr tile
        pl.BlockSpec((edge_tile, 1), lambda j, i: (i, 0)),     # cutoff envelope tile
        pl.BlockSpec((edge_tile, 1), lambda j, i: (i, 0)),     # src indices (sublane-major)
        pl.BlockSpec((1, edge_tile), lambda j, i: (0, i)),     # dst indices (lane-major)
        resident(params["mlp_w1"].shape),
        resident(params["mlp_b1"].shape),
        resident(params["mlp_w2"].shape),
        resident(params["mlp_b2"].shape),
        resident(params["lin1_w"].shape),
        resident(params["lin2_w"].shape),
        resident(params["lin2_b"].shape),
        resident(params["lin_w"].shape),
        resident(params["lin_b"].shape),
    ]

    out = pl.pallas_call(
        interaction_kernel,
        out_shape=jax.ShapeDtypeStruct((N_pad, H), jnp.float32),
        grid_spec=pltpu.PrefetchScalarGridSpec(
            num_scalar_prefetch=0,
            grid=(n_node_blocks, n_tiles),               # edges (reduction) last
            in_specs=in_specs,
            out_specs=pl.BlockSpec((node_block, H), lambda j, i: (j, 0)),
            scratch_shapes=[pltpu.VMEM((N_pad, F_), jnp.float32),       # hx = lin1(x), resident
                            pltpu.VMEM((node_block, F_), jnp.float32)], # per-block scatter accumulator
        ),
        compiler_params=pltpu.CompilerParams(
            dimension_semantics=("parallel", "arbitrary"),
            vmem_limit_bytes=32 * 1024 * 1024,
        ),
    )(xp, ea, C, src, dst,
      params["mlp_w1"], params["mlp_b1"], params["mlp_w2"], params["mlp_b2"],
      params["lin1_w"], params["lin2_w"], params["lin2_b"],
      params["lin_w"], params["lin_b"])

    return out[:N]


def init_params(key, hidden_channels, num_gaussians, num_filters):
    """Deterministic synthetic parameter init (weights stored pre-transposed: [in, out])."""
    ks = jax.random.split(key, 8)

    def xavier(k, fan_in, fan_out):
        limit = (6.0 / (fan_in + fan_out)) ** 0.5
        return jax.random.uniform(k, (fan_in, fan_out), jnp.float32, -limit, limit)

    H, G, F = hidden_channels, num_gaussians, num_filters
    return {
        "mlp_w1": xavier(ks[0], G, F),
        "mlp_b1": jnp.zeros((1, F), jnp.float32) + 0.01,
        "mlp_w2": xavier(ks[1], F, F),
        "mlp_b2": jnp.zeros((1, F), jnp.float32) - 0.01,
        "lin1_w": xavier(ks[2], H, F),                 # CFConv.lin1 (no bias)
        "lin2_w": xavier(ks[3], F, H),                 # CFConv.lin2
        "lin2_b": jnp.zeros((1, H), jnp.float32),      # filled with 0 in reset_parameters
        "lin_w":  xavier(ks[4], H, H),                 # InteractionBlock.lin
        "lin_b":  jnp.zeros((1, H), jnp.float32) + 0.02,
    }


def reference_forward(params, x, edge_index, edge_length, edge_attr, *, cutoff, smooth):
    """Pure-JAX reference mirroring the PyTorch module."""
    h = jnp.dot(edge_attr, params["mlp_w1"]) + params["mlp_b1"]
    h = jax.nn.softplus(h) - LOG2
    W = jnp.dot(h, params["mlp_w2"]) + params["mlp_b2"]
    el = edge_length.reshape(-1, 1)
    if smooth:
        C = 0.5 * (jnp.cos(el * jnp.pi / cutoff) + 1.0)
        C = C * ((el <= cutoff) & (el >= 0.0)).astype(jnp.float32)
    else:
        C = (el <= cutoff).astype(jnp.float32)
    W = W * C
    hx = jnp.dot(x, params["lin1_w"])
    msg = hx[edge_index[0]] * W
    agg = jnp.zeros((x.shape[0], W.shape[1]), jnp.float32).at[edge_index[1]].add(msg)
    y = jnp.dot(agg, params["lin2_w"]) + params["lin2_b"]
    y = jax.nn.softplus(y) - LOG2
    return jnp.dot(y, params["lin_w"]) + params["lin_b"]


if __name__ == "__main__":
    hidden_channels = 128   # lane-dense channel dims
    num_gaussians = 64
    num_filters = 128
    cutoff = 10.0

    key = jax.random.PRNGKey(0)
    k_p, k_rest = jax.random.split(key)
    params = init_params(k_p, hidden_channels, num_gaussians, num_filters)

    # (N, E) configs:
    #   (64, 200)  -> single edge tile + single node block (padding paths)
    #   (200, 600) -> 2 edge tiles (reduction accumulation) + 2 node blocks (parallel axis)
    for (N, E) in [(64, 200), (200, 600)]:
        k_x, k_ei, k_el, k_ea, k_rest = jax.random.split(k_rest, 5)
        x = jax.random.normal(k_x, (N, hidden_channels), jnp.float32)
        edge_index = jax.random.randint(k_ei, (2, E), 0, N, jnp.int32)
        edge_length = jax.random.uniform(k_el, (E, 1), jnp.float32, 0.0, cutoff * 1.2)
        edge_attr = jax.random.normal(k_ea, (E, num_gaussians), jnp.float32)

        for smooth in (True, False):
            out = interaction_block(params, x, edge_index, edge_length, edge_attr,
                                    cutoff=cutoff, smooth=smooth)
            out = jax.block_until_ready(out)
            ref = reference_forward(params, x, edge_index, edge_length, edge_attr,
                                    cutoff=cutoff, smooth=smooth)
            assert out.shape == (N, hidden_channels)
            assert jnp.allclose(out, ref, atol=1e-3, rtol=1e-4), \
                f"mismatch vs pure-JAX reference (N={N}, E={E}, smooth={smooth})"

    print("KERNEL_OK")
</pallas_src>

<mosaic_0001>
module attributes {stable_mosaic.version = 11 : i64} {
  func.func @interaction_kernel(%arg0: i32, %arg1: i32, %arg2: memref<128x128xf32, #tpu.memory_space<vmem>>, %arg3: memref<256x64xf32, #tpu.memory_space<vmem>>, %arg4: memref<256x1xf32, #tpu.memory_space<vmem>>, %arg5: memref<256x1xi32, #tpu.memory_space<vmem>>, %arg6: memref<1x256xi32, #tpu.memory_space<vmem>>, %arg7: memref<64x128xf32, #tpu.memory_space<vmem>>, %arg8: memref<1x128xf32, #tpu.memory_space<vmem>>, %arg9: memref<128x128xf32, #tpu.memory_space<vmem>>, %arg10: memref<1x128xf32, #tpu.memory_space<vmem>>, %arg11: memref<128x128xf32, #tpu.memory_space<vmem>>, %arg12: memref<128x128xf32, #tpu.memory_space<vmem>>, %arg13: memref<1x128xf32, #tpu.memory_space<vmem>>, %arg14: memref<128x128xf32, #tpu.memory_space<vmem>>, %arg15: memref<1x128xf32, #tpu.memory_space<vmem>>, %arg16: memref<128x128xf32, #tpu.memory_space<vmem>>, %arg17: memref<128x128xf32, #tpu.memory_space<vmem>>, %arg18: memref<128x128xf32, #tpu.memory_space<vmem>>) attributes {dimension_semantics = [#tpu.dimension_semantics<parallel>, #tpu.dimension_semantics<arbitrary>], iteration_bounds = array<i64: 1, 1>, scalar_prefetch = 0 : i64, scratch_operands = 2 : i64, tpu.core_type = #tpu.core_type<tc>, window_params = [{pipeline_mode = #tpu.pipeline_mode<synchronous>, transform_indices = @transform_0, window_bounds = array<i64: 128, 128>}, {transform_indices = @transform_1, window_bounds = array<i64: 256, 64>}, {transform_indices = @transform_2, window_bounds = array<i64: 256, 1>}, {transform_indices = @transform_3, window_bounds = array<i64: 256, 1>}, {transform_indices = @transform_4, window_bounds = array<i64: 1, 256>}, {pipeline_mode = #tpu.pipeline_mode<synchronous>, transform_indices = @transform_5, window_bounds = array<i64: 64, 128>}, {pipeline_mode = #tpu.pipeline_mode<synchronous>, transform_indices = @transform_6, window_bounds = array<i64: 1, 128>}, {pipeline_mode = #tpu.pipeline_mode<synchronous>, transform_indices = @transform_7, window_bounds = array<i64: 128, 128>}, {pipeline_mode = #tpu.pipeline_mode<synchronous>, transform_indices = @transform_8, window_bounds = array<i64: 1, 128>}, {pipeline_mode = #tpu.pipeline_mode<synchronous>, transform_indices = @transform_9, window_bounds = array<i64: 128, 128>}, {pipeline_mode = #tpu.pipeline_mode<synchronous>, transform_indices = @transform_10, window_bounds = array<i64: 128, 128>}, {pipeline_mode = #tpu.pipeline_mode<synchronous>, transform_indices = @transform_11, window_bounds = array<i64: 1, 128>}, {pipeline_mode = #tpu.pipeline_mode<synchronous>, transform_indices = @transform_12, window_bounds = array<i64: 128, 128>}, {pipeline_mode = #tpu.pipeline_mode<synchronous>, transform_indices = @transform_13, window_bounds = array<i64: 1, 128>}, {transform_indices = @transform_14, window_bounds = array<i64: 128, 128>}]} {
    %c0_i32 = arith.constant 0 : i32
    %0 = arith.cmpi eq, %arg1, %c0_i32 : i32
    %1 = arith.extui %0 : i1 to i32
    %c0_i32_0 = arith.constant 0 : i32
    %2 = arith.cmpi ne, %1, %c0_i32_0 : i32
    scf.if %2 {
      %c0_30 = arith.constant 0 : index
      %c0_31 = arith.constant 0 : index
      %52 = vector.load %arg2[%c0_30, %c0_31] : memref<128x128xf32, #tpu.memory_space<vmem>>, vector<128x128xf32>
      %c0_32 = arith.constant 0 : index
      %c0_33 = arith.constant 0 : index
      %53 = vector.load %arg11[%c0_32, %c0_33] : memref<128x128xf32, #tpu.memory_space<vmem>>, vector<128x128xf32>
      %cst_34 = arith.constant dense<0.000000e+00> : vector<128x128xf32>
      %54 = tpu.matmul %52, %53, %cst_34 {dimension_numbers = #tpu.dot_dimension_numbers<[1], [0], [0], [1], [0, 0, 1, 1], [], []>} : vector<128x128xf32>, vector<128x128xf32>, vector<128x128xf32> -> vector<128x128xf32>
      %c0_35 = arith.constant 0 : index
      %c0_36 = arith.constant 0 : index
      %55 = vector.load %arg17[%c0_35, %c0_36] : memref<128x128xf32, #tpu.memory_space<vmem>>, vector<128x128xf32>
      tpu.vector_store %arg17[%c0_35, %c0_36], %54 {strides = array<i32>} : memref<128x128xf32, #tpu.memory_space<vmem>>, vector<128x128xf32>,
      %cst_37 = arith.constant 0.000000e+00 : f32
      %56 = vector.broadcast %cst_37 : f32 to vector<128x128xf32>
      %c0_38 = arith.constant 0 : index
      %c0_39 = arith.constant 0 : index
      %57 = vector.load %arg18[%c0_38, %c0_39] : memref<128x128xf32, #tpu.memory_space<vmem>>, vector<128x128xf32>
      tpu.vector_store %arg18[%c0_38, %c0_39], %56 {strides = array<i32>} : memref<128x128xf32, #tpu.memory_space<vmem>>, vector<128x128xf32>,
    } else {
    }
    %c0 = arith.constant 0 : index
    %c0_1 = arith.constant 0 : index
    %3 = vector.load %arg3[%c0, %c0_1] : memref<256x64xf32, #tpu.memory_space<vmem>>, vector<256x64xf32>
    %c0_2 = arith.constant 0 : index
    %c0_3 = arith.constant 0 : index
    %4 = vector.load %arg7[%c0_2, %c0_3] : memref<64x128xf32, #tpu.memory_space<vmem>>, vector<64x128xf32>
    %cst = arith.constant dense<0.000000e+00> : vector<256x128xf32>
    %5 = tpu.matmul %3, %4, %cst {dimension_numbers = #tpu.dot_dimension_numbers<[1], [0], [0], [1], [0, 0, 1, 1], [], []>} : vector<256x64xf32>, vector<64x128xf32>, vector<256x128xf32> -> vector<256x128xf32>
    %c0_4 = arith.constant 0 : index
    %c0_5 = arith.constant 0 : index
    %6 = vector.load %arg8[%c0_4, %c0_5] : memref<1x128xf32, #tpu.memory_space<vmem>>, vector<1x128xf32>
    %7 = vector.broadcast %6 : vector<1x128xf32> to vector<256x128xf32>
    %8 = arith.addf %5, %7 : vector<256x128xf32>
    %cst_6 = arith.constant 0.000000e+00 : f32
    %9 = vector.broadcast %cst_6 : f32 to vector<256x128xf32>
    %10 = arith.maximumf %8, %9 : vector<256x128xf32>
    %11 = math.absf %8 : vector<256x128xf32>
    %cst_7 = arith.constant 0.000000e+00 : f32
    %12 = vector.broadcast %cst_7 : f32 to vector<256x128xf32>
    %13 = arith.subf %12, %11 : vector<256x128xf32>
    %14 = math.exp %13 : vector<256x128xf32>
    %15 = math.log1p %14 : vector<256x128xf32>
    %16 = arith.addf %10, %15 : vector<256x128xf32>
    %cst_8 = arith.constant 0.693147182 : f32
    %17 = vector.broadcast %cst_8 : f32 to vector<256x128xf32>
    %18 = arith.subf %16, %17 : vector<256x128xf32>
    %c0_9 = arith.constant 0 : index
    %c0_10 = arith.constant 0 : index
    %19 = vector.load %arg9[%c0_9, %c0_10] : memref<128x128xf32, #tpu.memory_space<vmem>>, vector<128x128xf32>
    %cst_11 = arith.constant dense<0.000000e+00> : vector<256x128xf32>
    %20 = tpu.matmul %18, %19, %cst_11 {dimension_numbers = #tpu.dot_dimension_numbers<[1], [0], [0], [1], [0, 0, 1, 1], [], []>} : vector<256x128xf32>, vector<128x128xf32>, vector<256x128xf32> -> vector<256x128xf32>
    %c0_12 = arith.constant 0 : index
    %c0_13 = arith.constant 0 : index
    %21 = vector.load %arg10[%c0_12, %c0_13] : memref<1x128xf32, #tpu.memory_space<vmem>>, vector<1x128xf32>
    %22 = vector.broadcast %21 : vector<1x128xf32> to vector<256x128xf32>
    %23 = arith.addf %20, %22 : vector<256x128xf32>
    %c0_14 = arith.constant 0 : index
    %c0_15 = arith.constant 0 : index
    %24 = vector.load %arg4[%c0_14, %c0_15] : memref<256x1xf32, #tpu.memory_space<vmem>>, vector<256x1xf32>
    %25 = vector.broadcast %24 : vector<256x1xf32> to vector<256x128xf32>
    %26 = arith.mulf %23, %25 : vector<256x128xf32>
    %27 = tpu.iota {dimensions = array<i32: 1>} : vector<256x128xi32>
    %c0_16 = arith.constant 0 : index
    %c0_17 = arith.constant 0 : index
    %28 = vector.load %arg5[%c0_16, %c0_17] : memref<256x1xi32, #tpu.memory_space<vmem>>, vector<256x1xi32>
    %29 = vector.broadcast %28 : vector<256x1xi32> to vector<256x128xi32>
    %30 = arith.cmpi eq, %27, %29 : vector<256x128xi32>
    %31 = arith.extui %30 : vector<256x128xi1> to vector<256x128xi32>
    %32 = arith.sitofp %31 : vector<256x128xi32> to vector<256x128xf32>
    %c0_18 = arith.constant 0 : index
    %c0_19 = arith.constant 0 : index
    %33 = vector.load %arg17[%c0_18, %c0_19] : memref<128x128xf32, #tpu.memory_space<vmem>>, vector<128x128xf32>
    %cst_20 = arith.constant dense<0.000000e+00> : vector<256x128xf32>
    %34 = tpu.matmul %32, %33, %cst_20 {dimension_numbers = #tpu.dot_dimension_numbers<[1], [0], [0], [1], [0, 0, 1, 1], [], []>} : vector<256x128xf32>, vector<128x128xf32>, vector<256x128xf32> -> vector<256x128xf32>
    %35 = arith.mulf %34, %26 : vector<256x128xf32>
    %36 = tpu.iota {dimensions = array<i32: 0>} : vector<128x256xi32>
    %c128_i32 = arith.constant 128 : i32
    %37 = arith.muli %arg0, %c128_i32 : i32
    %38 = vector.broadcast %37 : i32 to vector<128x256xi32>
    %39 = arith.addi %36, %38 : vector<128x256xi32>
    %c0_21 = arith.constant 0 : index
    %c0_22 = arith.constant 0 : index
    %40 = vector.load %arg6[%c0_21, %c0_22] : memref<1x256xi32, #tpu.memory_space<vmem>>, vector<1x256xi32>
    %41 = vector.broadcast %40 : vector<1x256xi32> to vector<128x256xi32>
    %42 = arith.cmpi eq, %39, %41 : vector<128x256xi32>
    %43 = arith.extui %42 : vector<128x256xi1> to vector<128x256xi32>
    %44 = arith.sitofp %43 : vector<128x256xi32> to vector<128x256xf32>
    %c0_23 = arith.constant 0 : index
    %c0_24 = arith.constant 0 : index
    %45 = vector.load %arg18[%c0_23, %c0_24] : memref<128x128xf32, #tpu.memory_space<vmem>>, vector<128x128xf32>
    %cst_25 = arith.constant dense<0.000000e+00> : vector<128x128xf32>
    %46 = tpu.matmul %44, %35, %cst_25 {dimension_numbers = #tpu.dot_dimension_numbers<[1], [0], [0], [1], [0, 0, 1, 1], [], []>} : vector<128x256xf32>, vector<256x128xf32>, vector<128x128xf32> -> vector<128x128xf32>
    %47 = arith.addf %45, %46 : vector<128x128xf32>
    %c0_26 = arith.constant 0 : index
    %c0_27 = arith.constant 0 : index
    %48 = vector.load %arg18[%c0_26, %c0_27] : memref<128x128xf32, #tpu.memory_space<vmem>>, vector<128x128xf32>
    tpu.vector_store %arg18[%c0_26, %c0_27], %47 {strides = array<i32>} : memref<128x128xf32, #tpu.memory_space<vmem>>, vector<128x128xf32>,
    %c0_i32_28 = arith.constant 0 : i32
    %49 = arith.cmpi eq, %arg1, %c0_i32_28 : i32
    %50 = arith.extui %49 : i1 to i32
    %c0_i32_29 = arith.constant 0 : i32
    %51 = arith.cmpi ne, %50, %c0_i32_29 : i32
    scf.if %51 {
      %c0_30 = arith.constant 0 : index
      %c0_31 = arith.constant 0 : index
      %52 = vector.load %arg18[%c0_30, %c0_31] : memref<128x128xf32, #tpu.memory_space<vmem>>, vector<128x128xf32>
      %c0_32 = arith.constant 0 : index
      %c0_33 = arith.constant 0 : index
      %53 = vector.load %arg12[%c0_32, %c0_33] : memref<128x128xf32, #tpu.memory_space<vmem>>, vector<128x128xf32>
      %cst_34 = arith.constant dense<0.000000e+00> : vector<128x128xf32>
      %54 = tpu.matmul %52, %53, %cst_34 {dimension_numbers = #tpu.dot_dimension_numbers<[1], [0], [0], [1], [0, 0, 1, 1], [], []>} : vector<128x128xf32>, vector<128x128xf32>, vector<128x128xf32> -> vector<128x128xf32>
      %c0_35 = arith.constant 0 : index
      %c0_36 = arith.constant 0 : index
      %55 = vector.load %arg13[%c0_35, %c0_36] : memref<1x128xf32, #tpu.memory_space<vmem>>, vector<1x128xf32>
      %56 = vector.broadcast %55 : vector<1x128xf32> to vector<128x128xf32>
      %57 = arith.addf %54, %56 : vector<128x128xf32>
      %cst_37 = arith.constant 0.000000e+00 : f32
      %58 = vector.broadcast %cst_37 : f32 to vector<128x128xf32>
      %59 = arith.maximumf %57, %58 : vector<128x128xf32>
      %60 = math.absf %57 : vector<128x128xf32>
      %cst_38 = arith.constant 0.000000e+00 : f32
      %61 = vector.broadcast %cst_38 : f32 to vector<128x128xf32>
      %62 = arith.subf %61, %60 : vector<128x128xf32>
      %63 = math.exp %62 : vector<128x128xf32>
      %64 = math.log1p %63 : vector<128x128xf32>
      %65 = arith.addf %59, %64 : vector<128x128xf32>
      %cst_39 = arith.constant 0.693147182 : f32
      %66 = vector.broadcast %cst_39 : f32 to vector<128x128xf32>
      %67 = arith.subf %65, %66 : vector<128x128xf32>
      %c0_40 = arith.constant 0 : index
      %c0_41 = arith.constant 0 : index
      %68 = vector.load %arg14[%c0_40, %c0_41] : memref<128x128xf32, #tpu.memory_space<vmem>>, vector<128x128xf32>
      %cst_42 = arith.constant dense<0.000000e+00> : vector<128x128xf32>
      %69 = tpu.matmul %67, %68, %cst_42 {dimension_numbers = #tpu.dot_dimension_numbers<[1], [0], [0], [1], [0, 0, 1, 1], [], []>} : vector<128x128xf32>, vector<128x128xf32>, vector<128x128xf32> -> vector<128x128xf32>
      %c0_43 = arith.constant 0 : index
      %c0_44 = arith.constant 0 : index
      %70 = vector.load %arg15[%c0_43, %c0_44] : memref<1x128xf32, #tpu.memory_space<vmem>>, vector<1x128xf32>
      %71 = vector.broadcast %70 : vector<1x128xf32> to vector<128x128xf32>
      %72 = arith.addf %69, %71 : vector<128x128xf32>
      %c0_45 = arith.constant 0 : index
      %c0_46 = arith.constant 0 : index
      %73 = vector.load %arg16[%c0_45, %c0_46] : memref<128x128xf32, #tpu.memory_space<vmem>>, vector<128x128xf32>
      tpu.vector_store %arg16[%c0_45, %c0_46], %72 {strides = array<i32>} : memref<128x128xf32, #tpu.memory_space<vmem>>, vector<128x128xf32>,
    } else {
    }
    return
  }
  func.func @transform_0(%arg0: i32, %arg1: i32) -> (i32, i32) {
    %c0_i32 = arith.constant 0 : i32
    %c0_i32_0 = arith.constant 0 : i32
    %c0_i32_1 = arith.constant 0 : i32
    return %c0_i32, %c0_i32_0 : i32, i32
  }
  func.func @transform_1(%arg0: i32, %arg1: i32) -> (i32, i32) {
    %c0_i32 = arith.constant 0 : i32
    %c0_i32_0 = arith.constant 0 : i32
    return %arg1, %c0_i32 : i32, i32
  }
  func.func @transform_2(%arg0: i32, %arg1: i32) -> (i32, i32) {
    %c0_i32 = arith.constant 0 : i32
    %c0_i32_0 = arith.constant 0 : i32
    return %arg1, %c0_i32 : i32, i32
  }
  func.func @transform_3(%arg0: i32, %arg1: i32) -> (i32, i32) {
    %c0_i32 = arith.constant 0 : i32
    %c0_i32_0 = arith.constant 0 : i32
    return %arg1, %c0_i32 : i32, i32
  }
  func.func @transform_4(%arg0: i32, %arg1: i32) -> (i32, i32) {
    %c0_i32 = arith.constant 0 : i32
    %c0_i32_0 = arith.constant 0 : i32
    return %c0_i32, %arg1 : i32, i32
  }
  func.func @transform_5(%arg0: i32, %arg1: i32) -> (i32, i32) {
    %c0_i32 = arith.constant 0 : i32
    %c0_i32_0 = arith.constant 0 : i32
    %c0_i32_1 = arith.constant 0 : i32
    return %c0_i32, %c0_i32_0 : i32, i32
  }
  func.func @transform_6(%arg0: i32, %arg1: i32) -> (i32, i32) {
    %c0_i32 = arith.constant 0 : i32
    %c0_i32_0 = arith.constant 0 : i32
    %c0_i32_1 = arith.constant 0 : i32
    return %c0_i32, %c0_i32_0 : i32, i32
  }
  func.func @transform_7(%arg0: i32, %arg1: i32) -> (i32, i32) {
    %c0_i32 = arith.constant 0 : i32
    %c0_i32_0 = arith.constant 0 : i32
    %c0_i32_1 = arith.constant 0 : i32
    return %c0_i32, %c0_i32_0 : i32, i32
  }
  func.func @transform_8(%arg0: i32, %arg1: i32) -> (i32, i32) {
    %c0_i32 = arith.constant 0 : i32
    %c0_i32_0 = arith.constant 0 : i32
    %c0_i32_1 = arith.constant 0 : i32
    return %c0_i32, %c0_i32_0 : i32, i32
  }
  func.func @transform_9(%arg0: i32, %arg1: i32) -> (i32, i32) {
    %c0_i32 = arith.constant 0 : i32
    %c0_i32_0 = arith.constant 0 : i32
    %c0_i32_1 = arith.constant 0 : i32
    return %c0_i32, %c0_i32_0 : i32, i32
  }
  func.func @transform_10(%arg0: i32, %arg1: i32) -> (i32, i32) {
    %c0_i32 = arith.constant 0 : i32
    %c0_i32_0 = arith.constant 0 : i32
    %c0_i32_1 = arith.constant 0 : i32
    return %c0_i32, %c0_i32_0 : i32, i32
  }
  func.func @transform_11(%arg0: i32, %arg1: i32) -> (i32, i32) {
    %c0_i32 = arith.constant 0 : i32
    %c0_i32_0 = arith.constant 0 : i32
    %c0_i32_1 = arith.constant 0 : i32
    return %c0_i32, %c0_i32_0 : i32, i32
  }
  func.func @transform_12(%arg0: i32, %arg1: i32) -> (i32, i32) {
    %c0_i32 = arith.constant 0 : i32
    %c0_i32_0 = arith.constant 0 : i32
    %c0_i32_1 = arith.constant 0 : i32
    return %c0_i32, %c0_i32_0 : i32, i32
  }
  func.func @transform_13(%arg0: i32, %arg1: i32) -> (i32, i32) {
    %c0_i32 = arith.constant 0 : i32
    %c0_i32_0 = arith.constant 0 : i32
    %c0_i32_1 = arith.constant 0 : i32
    return %c0_i32, %c0_i32_0 : i32, i32
  }
  func.func @transform_14(%arg0: i32, %arg1: i32) -> (i32, i32) {
    %c0_i32 = arith.constant 0 : i32
    %c0_i32_0 = arith.constant 0 : i32
    return %arg0, %c0_i32 : i32, i32
  }
}

</mosaic_0001>

<llo_original>
// kernel: tpu_custom_call.1
$region0: #{tpu_custom_call.1}
  #allocation0 [shape = 'u32[]', space=smem, size = 0x4, offset = 0x4, fixed_abs, tag = 'smem constant byte address 0x4 - core index']
  #allocation1 [shape = 'u32[144,128]{1,0:T(1,128)}', space=vmem, size = 0x12000, scoped, tag = 'internal scratch']
  #allocation2 [shape = 'f32[128,128]{1,0:T(8,128)}', space=vmem, size = 0x10000, scoped, tag = 'scratch operand']
  #allocation3 [shape = 'f32[128,128]{1,0:T(8,128)}', space=vmem, size = 0x10000, scoped, tag = 'scratch operand']
  %s0 = inlined_call_operand.vmem [shape: f32[128,128], index: 0, kind: input, shape index: {}]
  %s1 = inlined_call_operand.vmem [shape: f32[256,64], index: 1, kind: input, shape index: {}]
  %s2 = inlined_call_operand.vmem [shape: f32[256,1], index: 2, kind: input, shape index: {}]
  %s3 = inlined_call_operand.vmem [shape: s32[256,1], index: 3, kind: input, shape index: {}]
  %s4 = inlined_call_operand.vmem [shape: s32[1,256], index: 4, kind: input, shape index: {}]
  %s5 = inlined_call_operand.vmem [shape: f32[64,128], index: 5, kind: input, shape index: {}]
  %s6 = inlined_call_operand.vmem [shape: f32[1,128], index: 6, kind: input, shape index: {}]
  %s7 = inlined_call_operand.vmem [shape: f32[128,128], index: 7, kind: input, shape index: {}]
  %s8 = inlined_call_operand.vmem [shape: f32[1,128], index: 8, kind: input, shape index: {}]
  %s9 = inlined_call_operand.vmem [shape: f32[128,128], index: 9, kind: input, shape index: {}]
  %s10 = inlined_call_operand.vmem [shape: f32[128,128], index: 10, kind: input, shape index: {}]
  %s11 = inlined_call_operand.vmem [shape: f32[1,128], index: 11, kind: input, shape index: {}]
  %s12 = inlined_call_operand.vmem [shape: f32[128,128], index: 12, kind: input, shape index: {}]
  %s13 = inlined_call_operand.vmem [shape: f32[1,128], index: 13, kind: input, shape index: {}]
  %s14 = inlined_call_operand.hbm [shape: f32[128,128], index: 14, kind: output, shape index: {}]
  %s15 = sld [smem:[#allocation0]]
  $region74: #{tpu_custom_call.1} parent=0
    _
  %s17 = ssub.s32 1, %s15
  %s18 = scalar_select 0, %s17, %s15
  $region1: #{tpu_custom_call.1} parent=0
    #allocation4 [shape = 'u8[65536]{0}', space=vmem, size = 0x10000, scoped, tag = 'output window, operand 0, single buffered']
    #allocation5 [shape = 's32[1]{0}', space=sflag, size = 0x4, scoped, tag = 'scoped memory for tpu_custom_call.1']
    %19 = vsyncpa [#allocation5], 0
    // Predicated region
    $region2: #{tpu_custom_call.1} parent=1 // pred_check
      _
    $region3: #{tpu_custom_call.1} parent=1 // pred_check_branch
      %21 = sbr.rel (0) target = $region5
    $region4: #{tpu_custom_call.1} parent=1 // pred_region
      _
    $region5: #{tpu_custom_call.1} parent=1 // pred_fallthru
      _
    // Predicated region
    $region6: #{tpu_custom_call.1} parent=1 // pred_check
      _
    $region7: #{tpu_custom_call.1} parent=1 // pred_check_branch
      %23 = sbr.rel (0) target = $region9
    $region8: #{tpu_custom_call.1} parent=1 // pred_region
      _
    $region9: #{tpu_custom_call.1} parent=1 // pred_fallthru
      _
    // Predicated region
    $region10: #{tpu_custom_call.1} parent=1 // pred_check
      _
    $region11: #{tpu_custom_call.1} parent=1 // pred_check_branch
      %25 = sbr.rel (0) target = $region13
    $region12: #{tpu_custom_call.1} parent=1 // pred_region
      _
    $region13: #{tpu_custom_call.1} parent=1 // pred_fallthru
      _
    // Predicated region
    $region14: #{tpu_custom_call.1} parent=1 // pred_check
      _
    $region15: #{tpu_custom_call.1} parent=1 // pred_check_branch
      %27 = sbr.rel (0) target = $region17
    $region16: #{tpu_custom_call.1} parent=1 // pred_region
      _
    $region17: #{tpu_custom_call.1} parent=1 // pred_fallthru
      _
    // Predicated region
    $region18: #{tpu_custom_call.1} parent=1 // pred_check
      _
    $region19: #{tpu_custom_call.1} parent=1 // pred_check_branch
      %29 = sbr.rel (0) target = $region21
    $region20: #{tpu_custom_call.1} parent=1 // pred_region
      _
    $region21: #{tpu_custom_call.1} parent=1 // pred_fallthru
      _
    // Predicated region
    $region22: #{tpu_custom_call.1} parent=1 // pred_check
      _
    $region23: #{tpu_custom_call.1} parent=1 // pred_check_branch
      %31 = sbr.rel (0) target = $region25
    $region24: #{tpu_custom_call.1} parent=1 // pred_region
      _
    $region25: #{tpu_custom_call.1} parent=1 // pred_fallthru
      _
    // Predicated region
    $region26: #{tpu_custom_call.1} parent=1 // pred_check
      _
    $region27: #{tpu_custom_call.1} parent=1 // pred_check_branch
      %33 = sbr.rel (0) target = $region29
    $region28: #{tpu_custom_call.1} parent=1 // pred_region
      _
    $region29: #{tpu_custom_call.1} parent=1 // pred_fallthru
      _
    // Predicated region
    $region30: #{tpu_custom_call.1} parent=1 // pred_check
      _
    $region31: #{tpu_custom_call.1} parent=1 // pred_check_branch
      %35 = sbr.rel (0) target = $region33
    $region32: #{tpu_custom_call.1} parent=1 // pred_region
      _
    $region33: #{tpu_custom_call.1} parent=1 // pred_fallthru
      _
    // Predicated region
    $region34: #{tpu_custom_call.1} parent=1 // pred_check
      _
    $region35: #{tpu_custom_call.1} parent=1 // pred_check_branch
      %37 = sbr.rel (0) target = $region37
    $region36: #{tpu_custom_call.1} parent=1 // pred_region
      _
    $region37: #{tpu_custom_call.1} parent=1 // pred_fallthru
      _
    // Predicated region
    $region38: #{tpu_custom_call.1} parent=1 // pred_check
      _
    $region39: #{tpu_custom_call.1} parent=1 // pred_check_branch
      %39 = sbr.rel (0) target = $region41
    $region40: #{tpu_custom_call.1} parent=1 // pred_region
      _
    $region41: #{tpu_custom_call.1} parent=1 // pred_fallthru
      _
    // Predicated region
    $region42: #{tpu_custom_call.1} parent=1 // pred_check
      _
    $region43: #{tpu_custom_call.1} parent=1 // pred_check_branch
      %41 = sbr.rel (0) target = $region45
    $region44: #{tpu_custom_call.1} parent=1 // pred_region
      _
    $region45: #{tpu_custom_call.1} parent=1 // pred_fallthru
      _
    // Predicated region
    $region46: #{tpu_custom_call.1} parent=1 // pred_check
      _
    $region47: #{tpu_custom_call.1} parent=1 // pred_check_branch
      %43 = sbr.rel (0) target = $region49
    $region48: #{tpu_custom_call.1} parent=1 // pred_region
      _
    $region49: #{tpu_custom_call.1} parent=1 // pred_fallthru
      _
    // Predicated region
    $region50: #{tpu_custom_call.1} parent=1 // pred_check
      _
    $region51: #{tpu_custom_call.1} parent=1 // pred_check_branch
      %45 = sbr.rel (0) target = $region53
    $region52: #{tpu_custom_call.1} parent=1 // pred_region
      _
    $region53: #{tpu_custom_call.1} parent=1 // pred_fallthru
      _
    // Predicated region
    $region54: #{tpu_custom_call.1} parent=1 // pred_check
      _
    $region55: #{tpu_custom_call.1} parent=1 // pred_check_branch
      %47 = sbr.rel (0) target = $region57
    $region56: #{tpu_custom_call.1} parent=1 // pred_region
      _
    $region57: #{tpu_custom_call.1} parent=1 // pred_fallthru
      _
    %p48 = scmp.eq.s32.totalorder 0, 0
    // Predicated region
    $region58: #{tpu_custom_call.1} parent=1 // pred_check
      %p49 = pneg %p48
    $region59: #{tpu_custom_call.1} parent=1 // pred_check_branch
      %51 = sbr.rel (%p49) target = $region61
    $region60: #{tpu_custom_call.1} parent=1 // pred_region
      %v52 = vld [vmem:[%s0] sm:$0xff]
      %v53 = vld [vmem:[%s0 + $0x8] sm:$0xff]
      %v54 = vld [vmem:[%s0 + $0x10] sm:$0xff]
      %v55 = vld [vmem:[%s0 + $0x18] sm:$0xff]
      %v56 = vld [vmem:[%s0 + $0x20] sm:$0xff]
      %v57 = vld [vmem:[%s0 + $0x28] sm:$0xff]
      %v58 = vld [vmem:[%s0 + $0x30] sm:$0xff]
      %v59 = vld [vmem:[%s0 + $0x38] sm:$0xff]
      %v60 = vld [vmem:[%s0 + $0x40] sm:$0xff]
      %v61 = vld [vmem:[%s0 + $0x48] sm:$0xff]
      %v62 = vld [vmem:[%s0 + $0x50] sm:$0xff]
      %v63 = vld [vmem:[%s0 + $0x58] sm:$0xff]
      %v64 = vld [vmem:[%s0 + $0x60] sm:$0xff]
      %v65 = vld [vmem:[%s0 + $0x68] sm:$0xff]
      %v66 = vld [vmem:[%s0 + $0x70] sm:$0xff]
      %v67 = vld [vmem:[%s0 + $0x78] sm:$0xff]
      %v68 = vld [vmem:[%s9] sm:$0xff]
      %v69 = vld [vmem:[%s9 + $0x8] sm:$0xff]
      %v70 = vld [vmem:[%s9 + $0x10] sm:$0xff]
      %v71 = vld [vmem:[%s9 + $0x18] sm:$0xff]
      %v72 = vld [vmem:[%s9 + $0x20] sm:$0xff]
      %v73 = vld [vmem:[%s9 + $0x28] sm:$0xff]
      %v74 = vld [vmem:[%s9 + $0x30] sm:$0xff]
      %v75 = vld [vmem:[%s9 + $0x38] sm:$0xff]
      %v76 = vld [vmem:[%s9 + $0x40] sm:$0xff]
      %v77 = vld [vmem:[%s9 + $0x48] sm:$0xff]
      %v78 = vld [vmem:[%s9 + $0x50] sm:$0xff]
      %v79 = vld [vmem:[%s9 + $0x58] sm:$0xff]
      %v80 = vld [vmem:[%s9 + $0x60] sm:$0xff]
      %v81 = vld [vmem:[%s9 + $0x68] sm:$0xff]
      %v82 = vld [vmem:[%s9 + $0x70] sm:$0xff]
      %v83 = vld [vmem:[%s9 + $0x78] sm:$0xff]
      %84 = vmatprep.subr.mxu0 0.0
      %85 = vmatpush1.msra.mxu0 %v68
      %86 = vmatprep.subr.mxu0 0.0
      %87 = vmatpush1.msra.mxu0 %v69
      %88 = vmatprep.subr.mxu0 0.0
      %89 = vmatpush1.msra.mxu0 %v70
      %90 = vmatprep.subr.mxu0 0.0
      %91 = vmatpush1.msra.mxu0 %v71
      %92 = vmatprep.subr.mxu0 0.0
      %93 = vmatpush1.msra.mxu0 %v72
      %94 = vmatprep.subr.mxu0 0.0
      %95 = vmatpush1.msra.mxu0 %v73
      %96 = vmatprep.subr.mxu0 0.0
      %97 = vmatpush1.msra.mxu0 %v74
      %98 = vmatprep.subr.mxu0 0.0
      %99 = vmatpush1.msra.mxu0 %v75
      %100 = vmatprep.subr.mxu0 0.0
      %101 = vmatpush1.msra.mxu0 %v76
      %102 = vmatprep.subr.mxu0 0.0
      %103 = vmatpush1.msra.mxu0 %v77
      %104 = vmatprep.subr.mxu0 0.0
      %105 = vmatpush1.msra.mxu0 %v78
      %106 = vmatprep.subr.mxu0 0.0
      %107 = vmatpush1.msra.mxu0 %v79
      %108 = vmatprep.subr.mxu0 0.0
      %109 = vmatpush1.msra.mxu0 %v80
      %110 = vmatprep.subr.mxu0 0.0
      %111 = vmatpush1.msra.mxu0 %v81
      %112 = vmatprep.subr.mxu0 0.0
      %113 = vmatpush1.msra.mxu0 %v82
      %114 = vmatprep.subr.mxu0 0.0
      %115 = vmatpush1.msra.mxu0 %v83
      %116 = vmatprep.subr.mxu0 0.0
      %117 = vmatpush1.msra.mxu0 0.0
      %118 = vmatprep.subr.mxu0 0.0
      %119 = vmatpush1.msra.mxu0 0.0
      %120 = vmatprep.subr.mxu0 0.0
      %121 = vmatpush1.msra.mxu0 0.0
      %122 = vmatprep.subr.mxu0 0.0
      %123 = vmatpush1.msra.mxu0 0.0
      %124 = vmatprep.subr.mxu0 0.0
      %125 = vmatpush1.msra.mxu0 0.0
      %126 = vmatprep.subr.mxu0 0.0
      %127 = vmatpush1.msra.mxu0 0.0
      %128 = vmatprep.subr.mxu0 0.0
      %129 = vmatpush1.msra.mxu0 0.0
      %130 = vmatprep.subr.mxu0 0.0
      %131 = vmatpush1.msra.mxu0 0.0
      %132 = vmatprep.subr.mxu0 0.0
      %133 = vmatpush1.msra.mxu0 0.0
      %134 = vmatprep.subr.mxu0 0.0
      %135 = vmatpush1.msra.mxu0 0.0
      %136 = vmatprep.subr.mxu0 0.0
      %137 = vmatpush1.msra.mxu0 0.0
      %138 = vmatprep.subr.mxu0 0.0
      %139 = vmatpush1.msra.mxu0 0.0
      %140 = vmatprep.subr.mxu0 0.0
      %141 = vmatpush1.msra.mxu0 0.0
      %142 = vmatprep.subr.mxu0 0.0
      %143 = vmatpush1.msra.mxu0 0.0
      %144 = vmatprep.subr.mxu0 0.0
      %145 = vmatpush1.msra.mxu0 0.0
      %146 = vmatprep.subr.mxu0 0.0
      %147 = vmatpush1.msra.mxu0 0.0
      %148 = vmatprep.mubr.f32.mxu0 0.0
      %149 = vmatmul.mubr.f32.gmra.mrb[0].mxu0 %v52
      %v150 = vpop.f32.mrb[0].mxu0
      %v151 = vadd.f32 0.0, %v150
      %v152 = vpop.f32.mrb[0].mxu0
      %153 = vmatprep.mubr.f32.mxu0 0.0
      %154 = vmatmul.mubr.f32.gmra.mrb[0].mxu0 %v53
      %v155 = vpop.f32.mrb[0].mxu0
      %v156 = vadd.f32 0.0, %v155
      %v157 = vpop.f32.mrb[0].mxu0
      %158 = vmatprep.mubr.f32.mxu0 0.0
      %159 = vmatmul.mubr.f32.gmra.mrb[0].mxu0 %v54
      %v160 = vpop.f32.mrb[0].mxu0
      %v161 = vadd.f32 0.0, %v160
      %v162 = vpop.f32.mrb[0].mxu0
      %163 = vmatprep.mubr.f32.mxu0 0.0
      %164 = vmatmul.mubr.f32.gmra.mrb[0].mxu0 %v55
      %v165 = vpop.f32.mrb[0].mxu0
      %v166 = vadd.f32 0.0, %v165
      %v167 = vpop.f32.mrb[0].mxu0
      %168 = vmatprep.mubr.f32.mxu0 0.0
      %169 = vmatmul.mubr.f32.gmra.mrb[0].mxu0 %v56
      %v170 = vpop.f32.mrb[0].mxu0
      %v171 = vadd.f32 0.0, %v170
      %v172 = vpop.f32.mrb[0].mxu0
      %173 = vmatprep.mubr.f32.mxu0 0.0
      %174 = vmatmul.mubr.f32.gmra.mrb[0].mxu0 %v57
      %v175 = vpop.f32.mrb[0].mxu0
      %v176 = vadd.f32 0.0, %v175
      %v177 = vpop.f32.mrb[0].mxu0
      %178 = vmatprep.mubr.f32.mxu0 0.0
      %179 = vmatmul.mubr.f32.gmra.mrb[0].mxu0 %v58
      %v180 = vpop.f32.mrb[0].mxu0
      %v181 = vadd.f32 0.0, %v180
      %v182 = vpop.f32.mrb[0].mxu0
      %183 = vmatprep.mubr.f32.mxu0 0.0
      %184 = vmatmul.mubr.f32.gmra.mrb[0].mxu0 %v59
      %v185 = vpop.f32.mrb[0].mxu0
      %v186 = vadd.f32 0.0, %v185
      %v187 = vpop.f32.mrb[0].mxu0
      %188 = vmatprep.mubr.f32.mxu0 0.0
      %189 = vmatmul.mubr.f32.gmra.mrb[0].mxu0 %v60
      %v190 = vpop.f32.mrb[0].mxu0
      %v191 = vadd.f32 0.0, %v190
      %v192 = vpop.f32.mrb[0].mxu0
      %193 = vmatprep.mubr.f32.mxu0 0.0
      %194 = vmatmul.mubr.f32.gmra.mrb[0].mxu0 %v61
      %v195 = vpop.f32.mrb[0].mxu0
      %v196 = vadd.f32 0.0, %v195
      %v197 = vpop.f32.mrb[0].mxu0
      %198 = vmatprep.mubr.f32.mxu0 0.0
      %199 = vmatmul.mubr.f32.gmra.mrb[0].mxu0 %v62
      %v200 = vpop.f32.mrb[0].mxu0
      %v201 = vadd.f32 0.0, %v200
      %v202 = vpop.f32.mrb[0].mxu0
      %203 = vmatprep.mubr.f32.mxu0 0.0
      %204 = vmatmul.mubr.f32.gmra.mrb[0].mxu0 %v63
      %v205 = vpop.f32.mrb[0].mxu0
      %v206 = vadd.f32 0.0, %v205
      %v207 = vpop.f32.mrb[0].mxu0
      %208 = vmatprep.mubr.f32.mxu0 0.0
      %209 = vmatmul.mubr.f32.gmra.mrb[0].mxu0 %v64
      %v210 = vpop.f32.mrb[0].mxu0
      %v211 = vadd.f32 0.0, %v210
      %v212 = vpop.f32.mrb[0].mxu0
      %213 = vmatprep.mubr.f32.mxu0 0.0
      %214 = vmatmul.mubr.f32.gmra.mrb[0].mxu0 %v65
      %v215 = vpop.f32.mrb[0].mxu0
      %v216 = vadd.f32 0.0, %v215
      %v217 = vpop.f32.mrb[0].mxu0
      %218 = vmatprep.mubr.f32.mxu0 0.0
      %219 = vmatmul.mubr.f32.gmra.mrb[0].mxu0 %v66
      %v220 = vpop.f32.mrb[0].mxu0
      %v221 = vadd.f32 0.0, %v220
      %v222 = vpop.f32.mrb[0].mxu0
      %223 = vmatprep.mubr.f32.mxu0 0.0
      %224 = vmatmul.mubr.f32.gmra.mrb[0].mxu0 %v67
      %v225 = vpop.f32.mrb[0].mxu0
      %v226 = vadd.f32 0.0, %v225
      %v227 = vpop.f32.mrb[0].mxu0
      %228 = vdwg.mxu0
      %229 = vst [vmem:[#allocation2] sm:$0xff] %v151
      %230 = vst [vmem:[#allocation2 + $0x8] sm:$0xff] %v156
      %231 = vst [vmem:[#allocation2 + $0x10] sm:$0xff] %v161
      %232 = vst [vmem:[#allocation2 + $0x18] sm:$0xff] %v166
      %233 = vst [vmem:[#allocation2 + $0x20] sm:$0xff] %v171
      %234 = vst [vmem:[#allocation2 + $0x28] sm:$0xff] %v176
      %235 = vst [vmem:[#allocation2 + $0x30] sm:$0xff] %v181
      %236 = vst [vmem:[#allocation2 + $0x38] sm:$0xff] %v186
      %237 = vst [vmem:[#allocation2 + $0x40] sm:$0xff] %v191
      %238 = vst [vmem:[#allocation2 + $0x48] sm:$0xff] %v196
      %239 = vst [vmem:[#allocation2 + $0x50] sm:$0xff] %v201
      %240 = vst [vmem:[#allocation2 + $0x58] sm:$0xff] %v206
      %241 = vst [vmem:[#allocation2 + $0x60] sm:$0xff] %v211
      %242 = vst [vmem:[#allocation2 + $0x68] sm:$0xff] %v216
      %243 = vst [vmem:[#allocation2 + $0x70] sm:$0xff] %v221
      %244 = vst [vmem:[#allocation2 + $0x78] sm:$0xff] %v226
      %245 = vst [vmem:[#allocation3] sm:$0xff] 0.0
      %246 = vst [vmem:[#allocation3 + $0x8] sm:$0xff] 0.0
      %247 = vst [vmem:[#allocation3 + $0x10] sm:$0xff] 0.0
      %248 = vst [vmem:[#allocation3 + $0x18] sm:$0xff] 0.0
      %249 = vst [vmem:[#allocation3 + $0x20] sm:$0xff] 0.0
      %250 = vst [vmem:[#allocation3 + $0x28] sm:$0xff] 0.0
      %251 = vst [vmem:[#allocation3 + $0x30] sm:$0xff] 0.0
      %252 = vst [vmem:[#allocation3 + $0x38] sm:$0xff] 0.0
      %253 = vst [vmem:[#allocation3 + $0x40] sm:$0xff] 0.0
      %254 = vst [vmem:[#allocation3 + $0x48] sm:$0xff] 0.0
      %255 = vst [vmem:[#allocation3 + $0x50] sm:$0xff] 0.0
      %256 = vst [vmem:[#allocation3 + $0x58] sm:$0xff] 0.0
      %257 = vst [vmem:[#allocation3 + $0x60] sm:$0xff] 0.0
      %258 = vst [vmem:[#allocation3 + $0x68] sm:$0xff] 0.0
      %259 = vst [vmem:[#allocation3 + $0x70] sm:$0xff] 0.0
      %260 = vst [vmem:[#allocation3 + $0x78] sm:$0xff] 0.0
    $region61: #{tpu_custom_call.1} parent=1 // pred_fallthru
      _
    %v261 = vld [vmem:[%s1] sm:$0xff]
    %v262 = vld [vmem:[%s1 + $0x8] sm:$0xff]
    %v263 = vld [vmem:[%s1 + $0x10] sm:$0xff]
    %v264 = vld [vmem:[%s1 + $0x18] sm:$0xff]
    %v265 = vld [vmem:[%s1 + $0x20] sm:$0xff]
    %v266 = vld [vmem:[%s1 + $0x28] sm:$0xff]
    %v267 = vld [vmem:[%s1 + $0x30] sm:$0xff]
    %v268 = vld [vmem:[%s1 + $0x38] sm:$0xff]
    %v269 = vld [vmem:[%s1 + $0x40] sm:$0xff]
    %v270 = vld [vmem:[%s1 + $0x48] sm:$0xff]
    %v271 = vld [vmem:[%s1 + $0x50] sm:$0xff]
    %v272 = vld [vmem:[%s1 + $0x58] sm:$0xff]
    %v273 = vld [vmem:[%s1 + $0x60] sm:$0xff]
    %v274 = vld [vmem:[%s1 + $0x68] sm:$0xff]
    %v275 = vld [vmem:[%s1 + $0x70] sm:$0xff]
    %v276 = vld [vmem:[%s1 + $0x78] sm:$0xff]
    %v277 = vld [vmem:[%s1 + $0x80] sm:$0xff]
    %v278 = vld [vmem:[%s1 + $0x88] sm:$0xff]
    %v279 = vld [vmem:[%s1 + $0x90] sm:$0xff]
    %v280 = vld [vmem:[%s1 + $0x98] sm:$0xff]
    %v281 = vld [vmem:[%s1 + $0xa0] sm:$0xff]
    %v282 = vld [vmem:[%s1 + $0xa8] sm:$0xff]
    %v283 = vld [vmem:[%s1 + $0xb0] sm:$0xff]
    %v284 = vld [vmem:[%s1 + $0xb8] sm:$0xff]
    %v285 = vld [vmem:[%s1 + $0xc0] sm:$0xff]
    %v286 = vld [vmem:[%s1 + $0xc8] sm:$0xff]
    %v287 = vld [vmem:[%s1 + $0xd0] sm:$0xff]
    %v288 = vld [vmem:[%s1 + $0xd8] sm:$0xff]
    %v289 = vld [vmem:[%s1 + $0xe0] sm:$0xff]
    %v290 = vld [vmem:[%s1 + $0xe8] sm:$0xff]
    %v291 = vld [vmem:[%s1 + $0xf0] sm:$0xff]
    %v292 = vld [vmem:[%s1 + $0xf8] sm:$0xff]
    %v293 = vld [vmem:[%s5] sm:$0xff]
    %v294 = vld [vmem:[%s5 + $0x8] sm:$0xff]
    %v295 = vld [vmem:[%s5 + $0x10] sm:$0xff]
    %v296 = vld [vmem:[%s5 + $0x18] sm:$0xff]
    %v297 = vld [vmem:[%s5 + $0x20] sm:$0xff]
    %v298 = vld [vmem:[%s5 + $0x28] sm:$0xff]
    %v299 = vld [vmem:[%s5 + $0x30] sm:$0xff]
    %v300 = vld [vmem:[%s5 + $0x38] sm:$0xff]
    %v301 = vld [vmem:[%s6] sm:$0x1]
    %v303 = vlaneseq
    %v304 = vshrl.u32 %v303, 7
    %v305 = vsub.s32 0, %v304
    %v306 = vrot.slane %v301, %v305
    %vm308 = vcmask 523264
    %v310 = vsel %vm308, %v261, 0
    %v313 = vsel %vm308, %v262, 0
    %v316 = vsel %vm308, %v263, 0
    %v319 = vsel %vm308, %v264, 0
    %v322 = vsel %vm308, %v265, 0
    %v325 = vsel %vm308, %v266, 0
    %v328 = vsel %vm308, %v267, 0
    %v331 = vsel %vm308, %v268, 0
    %v334 = vsel %vm308, %v269, 0
    %v337 = vsel %vm308, %v270, 0
    %v340 = vsel %vm308, %v271, 0
    %v343 = vsel %vm308, %v272, 0
    %v346 = vsel %vm308, %v273, 0
    %v349 = vsel %vm308, %v274, 0
    %v352 = vsel %vm308, %v275, 0
    %v355 = vsel %vm308, %v276, 0
    %v358 = vsel %vm308, %v277, 0
    %v361 = vsel %vm308, %v278, 0
    %v364 = vsel %vm308, %v279, 0
    %v367 = vsel %vm308, %v280, 0
    %v370 = vsel %vm308, %v281, 0
    %v373 = vsel %vm308, %v282, 0
    %v376 = vsel %vm308, %v283, 0
    %v379 = vsel %vm308, %v284, 0
    %v382 = vsel %vm308, %v285, 0
    %v385 = vsel %vm308, %v286, 0
    %v388 = vsel %vm308, %v287, 0
    %v391 = vsel %vm308, %v288, 0
    %v394 = vsel %vm308, %v289, 0
    %v397 = vsel %vm308, %v290, 0
    %v400 = vsel %vm308, %v291, 0
    %v403 = vsel %vm308, %v292, 0
    %405 = vmatprep.subr.mxu0 0.0
    %406 = vmatpush1.msra.mxu0 %v293
    %407 = vmatprep.subr.mxu0 0.0
    %408 = vmatpush1.msra.mxu0 %v294
    %409 = vmatprep.subr.mxu0 0.0
    %410 = vmatpush1.msra.mxu0 %v295
    %411 = vmatprep.subr.mxu0 0.0
    %412 = vmatpush1.msra.mxu0 %v296
    %413 = vmatprep.subr.mxu0 0.0
    %414 = vmatpush1.msra.mxu0 %v297
    %415 = vmatprep.subr.mxu0 0.0
    %416 = vmatpush1.msra.mxu0 %v298
    %417 = vmatprep.subr.mxu0 0.0
    %418 = vmatpush1.msra.mxu0 %v299
    %419 = vmatprep.subr.mxu0 0.0
    %420 = vmatpush1.msra.mxu0 %v300
    %421 = vmatprep.subr.mxu0 0.0
    %422 = vmatpush1.msra.mxu0 0.0
    %423 = vmatprep.subr.mxu0 0.0
    %424 = vmatpush1.msra.mxu0 0.0
    %425 = vmatprep.subr.mxu0 0.0
    %426 = vmatpush1.msra.mxu0 0.0
    %427 = vmatprep.subr.mxu0 0.0
    %428 = vmatpush1.msra.mxu0 0.0
    %429 = vmatprep.subr.mxu0 0.0
    %430 = vmatpush1.msra.mxu0 0.0
    %431 = vmatprep.subr.mxu0 0.0
    %432 = vmatpush1.msra.mxu0 0.0
    %433 = vmatprep.subr.mxu0 0.0
    %434 = vmatpush1.msra.mxu0 0.0
    %435 = vmatprep.subr.mxu0 0.0
    %436 = vmatpush1.msra.mxu0 0.0
    %437 = vmatprep.subr.mxu0 0.0
    %438 = vmatpush1.msra.mxu0 0.0
    %439 = vmatprep.subr.mxu0 0.0
    %440 = vmatpush1.msra.mxu0 0.0
    %441 = vmatprep.subr.mxu0 0.0
    %442 = vmatpush1.msra.mxu0 0.0
    %443 = vmatprep.subr.mxu0 0.0
    %444 = vmatpush1.msra.mxu0 0.0
    %445 = vmatprep.subr.mxu0 0.0
    %446 = vmatpush1.msra.mxu0 0.0
    %447 = vmatprep.subr.mxu0 0.0
    %448 = vmatpush1.msra.mxu0 0.0
    %449 = vmatprep.subr.mxu0 0.0
    %450 = vmatpush1.msra.mxu0 0.0
    %451 = vmatprep.subr.mxu0 0.0
    %452 = vmatpush1.msra.mxu0 0.0
    %453 = vmatprep.subr.mxu0 0.0
    %454 = vmatpush1.msra.mxu0 0.0
    %455 = vmatprep.subr.mxu0 0.0
    %456 = vmatpush1.msra.mxu0 0.0
    %457 = vmatprep.subr.mxu0 0.0
    %458 = vmatpush1.msra.mxu0 0.0
    %459 = vmatprep.subr.mxu0 0.0
    %460 = vmatpush1.msra.mxu0 0.0
    %461 = vmatprep.subr.mxu0 0.0
    %462 = vmatpush1.msra.mxu0 0.0
    %463 = vmatprep.subr.mxu0 0.0
    %464 = vmatpush1.msra.mxu0 0.0
    %465 = vmatprep.subr.mxu0 0.0
    %466 = vmatpush1.msra.mxu0 0.0
    %467 = vmatprep.subr.mxu0 0.0
    %468 = vmatpush1.msra.mxu0 0.0
    %469 = vmatprep.mubr.f32.mxu0 0.0
    %470 = vmatmul.mubr.f32.gmra.mrb[0].mxu0 %v310
    %v471 = vpop.f32.mrb[0].mxu0
    %v472 = vadd.f32 %v306, %v471
    %v473 = vpop.f32.mrb[0].mxu0
    %474 = vmatprep.mubr.f32.mxu0 0.0
    %475 = vmatmul.mubr.f32.gmra.mrb[0].mxu0 %v313
    %v476 = vpop.f32.mrb[0].mxu0
    %v477 = vadd.f32 %v306, %v476
    %v478 = vpop.f32.mrb[0].mxu0
    %479 = vmatprep.mubr.f32.mxu0 0.0
    %480 = vmatmul.mubr.f32.gmra.mrb[0].mxu0 %v316
    %v481 = vpop.f32.mrb[0].mxu0
    %v482 = vadd.f32 %v306, %v481
    %v483 = vpop.f32.mrb[0].mxu0
    %484 = vmatprep.mubr.f32.mxu0 0.0
    %485 = vmatmul.mubr.f32.gmra.mrb[0].mxu0 %v319
    %v486 = vpop.f32.mrb[0].mxu0
    %v487 = vadd.f32 %v306, %v486
    %v488 = vpop.f32.mrb[0].mxu0
    %489 = vmatprep.mubr.f32.mxu0 0.0
    %490 = vmatmul.mubr.f32.gmra.mrb[0].mxu0 %v322
    %v491 = vpop.f32.mrb[0].mxu0
    %v492 = vadd.f32 %v306, %v491
    %v493 = vpop.f32.mrb[0].mxu0
    %494 = vmatprep.mubr.f32.mxu0 0.0
    %495 = vmatmul.mubr.f32.gmra.mrb[0].mxu0 %v325
    %v496 = vpop.f32.mrb[0].mxu0
    %v497 = vadd.f32 %v306, %v496
    %v498 = vpop.f32.mrb[0].mxu0
    %499 = vmatprep.mubr.f32.mxu0 0.0
    %500 = vmatmul.mubr.f32.gmra.mrb[0].mxu0 %v328
    %v501 = vpop.f32.mrb[0].mxu0
    %v502 = vadd.f32 %v306, %v501
    %v503 = vpop.f32.mrb[0].mxu0
    %504 = vmatprep.mubr.f32.mxu0 0.0
    %505 = vmatmul.mubr.f32.gmra.mrb[0].mxu0 %v331
    %v506 = vpop.f32.mrb[0].mxu0
    %v507 = vadd.f32 %v306, %v506
    %v508 = vpop.f32.mrb[0].mxu0
    %509 = vmatprep.mubr.f32.mxu0 0.0
    %510 = vmatmul.mubr.f32.gmra.mrb[0].mxu0 %v334
    %v511 = vpop.f32.mrb[0].mxu0
    %v512 = vadd.f32 %v306, %v511
    %v513 = vpop.f32.mrb[0].mxu0
    %514 = vmatprep.mubr.f32.mxu0 0.0
    %515 = vmatmul.mubr.f32.gmra.mrb[0].mxu0 %v337
    %v516 = vpop.f32.mrb[0].mxu0
    %v517 = vadd.f32 %v306, %v516
    %v518 = vpop.f32.mrb[0].mxu0
    %519 = vmatprep.mubr.f32.mxu0 0.0
    %520 = vmatmul.mubr.f32.gmra.mrb[0].mxu0 %v340
    %v521 = vpop.f32.mrb[0].mxu0
    %v522 = vadd.f32 %v306, %v521
    %v523 = vpop.f32.mrb[0].mxu0
    %524 = vmatprep.mubr.f32.mxu0 0.0
    %525 = vmatmul.mubr.f32.gmra.mrb[0].mxu0 %v343
    %v526 = vpop.f32.mrb[0].mxu0
    %v527 = vadd.f32 %v306, %v526
    %v528 = vpop.f32.mrb[0].mxu0
    %529 = vmatprep.mubr.f32.mxu0 0.0
    %530 = vmatmul.mubr.f32.gmra.mrb[0].mxu0 %v346
    %v531 = vpop.f32.mrb[0].mxu0
    %v532 = vadd.f32 %v306, %v531
    %v533 = vpop.f32.mrb[0].mxu0
    %534 = vmatprep.mubr.f32.mxu0 0.0
    %535 = vmatmul.mubr.f32.gmra.mrb[0].mxu0 %v349
    %v536 = vpop.f32.mrb[0].mxu0
    %v537 = vadd.f32 %v306, %v536
    %v538 = vpop.f32.mrb[0].mxu0
    %539 = vmatprep.mubr.f32.mxu0 0.0
    %540 = vmatmul.mubr.f32.gmra.mrb[0].mxu0 %v352
    %v541 = vpop.f32.mrb[0].mxu0
    %v542 = vadd.f32 %v306, %v541
    %v543 = vpop.f32.mrb[0].mxu0
    %544 = vmatprep.mubr.f32.mxu0 0.0
    %545 = vmatmul.mubr.f32.gmra.mrb[0].mxu0 %v355
    %v546 = vpop.f32.mrb[0].mxu0
    %v547 = vadd.f32 %v306, %v546
    %v548 = vpop.f32.mrb[0].mxu0
    %549 = vmatprep.mubr.f32.mxu0 0.0
    %550 = vmatmul.mubr.f32.gmra.mrb[0].mxu0 %v358
    %v551 = vpop.f32.mrb[0].mxu0
    %v552 = vadd.f32 %v306, %v551
    %v553 = vpop.f32.mrb[0].mxu0
    %554 = vmatprep.mubr.f32.mxu0 0.0
    %555 = vmatmul.mubr.f32.gmra.mrb[0].mxu0 %v361
    %v556 = vpop.f32.mrb[0].mxu0
    %v557 = vadd.f32 %v306, %v556
    %v558 = vpop.f32.mrb[0].mxu0
    %559 = vmatprep.mubr.f32.mxu0 0.0
    %560 = vmatmul.mubr.f32.gmra.mrb[0].mxu0 %v364
    %v561 = vpop.f32.mrb[0].mxu0
    %v562 = vadd.f32 %v306, %v561
    %v563 = vpop.f32.mrb[0].mxu0
    %564 = vmatprep.mubr.f32.mxu0 0.0
    %565 = vmatmul.mubr.f32.gmra.mrb[0].mxu0 %v367
    %v566 = vpop.f32.mrb[0].mxu0
    %v567 = vadd.f32 %v306, %v566
    %v568 = vpop.f32.mrb[0].mxu0
    %569 = vmatprep.mubr.f32.mxu0 0.0
    %570 = vmatmul.mubr.f32.gmra.mrb[0].mxu0 %v370
    %v571 = vpop.f32.mrb[0].mxu0
    %v572 = vadd.f32 %v306, %v571
    %v573 = vpop.f32.mrb[0].mxu0
    %574 = vmatprep.mubr.f32.mxu0 0.0
    %575 = vmatmul.mubr.f32.gmra.mrb[0].mxu0 %v373
    %v576 = vpop.f32.mrb[0].mxu0
    %v577 = vadd.f32 %v306, %v576
    %v578 = vpop.f32.mrb[0].mxu0
    %579 = vmatprep.mubr.f32.mxu0 0.0
    %580 = vmatmul.mubr.f32.gmra.mrb[0].mxu0 %v376
    %v581 = vpop.f32.mrb[0].mxu0
    %v582 = vadd.f32 %v306, %v581
    %v583 = vpop.f32.mrb[0].mxu0
    %584 = vmatprep.mubr.f32.mxu0 0.0
    %585 = vmatmul.mubr.f32.gmra.mrb[0].mxu0 %v379
    %v586 = vpop.f32.mrb[0].mxu0
    %v587 = vadd.f32 %v306, %v586
    %v588 = vpop.f32.mrb[0].mxu0
    %589 = vmatprep.mubr.f32.mxu0 0.0
    %590 = vmatmul.mubr.f32.gmra.mrb[0].mxu0 %v382
    %v591 = vpop.f32.mrb[0].mxu0
    %v592 = vadd.f32 %v306, %v591
    %v593 = vpop.f32.mrb[0].mxu0
    %594 = vmatprep.mubr.f32.mxu0 0.0
    %595 = vmatmul.mubr.f32.gmra.mrb[0].mxu0 %v385
    %v596 = vpop.f32.mrb[0].mxu0
    %v597 = vadd.f32 %v306, %v596
    %v598 = vpop.f32.mrb[0].mxu0
    %599 = vmatprep.mubr.f32.mxu0 0.0
    %600 = vmatmul.mubr.f32.gmra.mrb[0].mxu0 %v388
    %v601 = vpop.f32.mrb[0].mxu0
    %v602 = vadd.f32 %v306, %v601
    %v603 = vpop.f32.mrb[0].mxu0
    %604 = vmatprep.mubr.f32.mxu0 0.0
    %605 = vmatmul.mubr.f32.gmra.mrb[0].mxu0 %v391
    %v606 = vpop.f32.mrb[0].mxu0
    %v607 = vadd.f32 %v306, %v606
    %v608 = vpop.f32.mrb[0].mxu0
    %609 = vmatprep.mubr.f32.mxu0 0.0
    %610 = vmatmul.mubr.f32.gmra.mrb[0].mxu0 %v394
    %v611 = vpop.f32.mrb[0].mxu0
    %v612 = vadd.f32 %v306, %v611
    %v613 = vpop.f32.mrb[0].mxu0
    %614 = vmatprep.mubr.f32.mxu0 0.0
    %615 = vmatmul.mubr.f32.gmra.mrb[0].mxu0 %v397
    %v616 = vpop.f32.mrb[0].mxu0
    %v617 = vadd.f32 %v306, %v616
    %v618 = vpop.f32.mrb[0].mxu0
    %619 = vmatprep.mubr.f32.mxu0 0.0
    %620 = vmatmul.mubr.f32.gmra.mrb[0].mxu0 %v400
    %v621 = vpop.f32.mrb[0].mxu0
    %v622 = vadd.f32 %v306, %v621
    %v623 = vpop.f32.mrb[0].mxu0
    %624 = vmatprep.mubr.f32.mxu0 0.0
    %625 = vmatmul.mubr.f32.gmra.mrb[0].mxu0 %v403
    %v626 = vpop.f32.mrb[0].mxu0
    %v627 = vadd.f32 %v306, %v626
    %v628 = vpop.f32.mrb[0].mxu0
    %629 = vdwg.mxu0
    %v630 = vmax.f32 %v472, 0.0
    %v631 = vmax.f32 %v477, 0.0
    %v632 = vmax.f32 %v482, 0.0
    %v633 = vmax.f32 %v487, 0.0
    %v634 = vmax.f32 %v492, 0.0
    %v635 = vmax.f32 %v497, 0.0
    %v636 = vmax.f32 %v502, 0.0
    %v637 = vmax.f32 %v507, 0.0
    %v638 = vmax.f32 %v512, 0.0
    %v639 = vmax.f32 %v517, 0.0
    %v640 = vmax.f32 %v522, 0.0
    %v641 = vmax.f32 %v527, 0.0
    %v642 = vmax.f32 %v532, 0.0
    %v643 = vmax.f32 %v537, 0.0
    %v644 = vmax.f32 %v542, 0.0
    %v645 = vmax.f32 %v547, 0.0
    %v646 = vmax.f32 %v552, 0.0
    %v647 = vmax.f32 %v557, 0.0
    %v648 = vmax.f32 %v562, 0.0
    %v649 = vmax.f32 %v567, 0.0
    %v650 = vmax.f32 %v572, 0.0
    %v651 = vmax.f32 %v577, 0.0
    %v652 = vmax.f32 %v582, 0.0
    %v653 = vmax.f32 %v587, 0.0
    %v654 = vmax.f32 %v592, 0.0
    %v655 = vmax.f32 %v597, 0.0
    %v656 = vmax.f32 %v602, 0.0
    %v657 = vmax.f32 %v607, 0.0
    %v658 = vmax.f32 %v612, 0.0
    %v659 = vmax.f32 %v617, 0.0
    %v660 = vmax.f32 %v622, 0.0
    %v661 = vmax.f32 %v627, 0.0
    %v662 = vand.u32 2147483647, %v472
    %v663 = vand.u32 2147483647, %v477
    %v664 = vand.u32 2147483647, %v482
    %v665 = vand.u32 2147483647, %v487
    %v666 = vand.u32 2147483647, %v492
    %v667 = vand.u32 2147483647, %v497
    %v668 = vand.u32 2147483647, %v502
    %v669 = vand.u32 2147483647, %v507
    %v670 = vand.u32 2147483647, %v512
    %v671 = vand.u32 2147483647, %v517
    %v672 = vand.u32 2147483647, %v522
    %v673 = vand.u32 2147483647, %v527
    %v674 = vand.u32 2147483647, %v532
    %v675 = vand.u32 2147483647, %v537
    %v676 = vand.u32 2147483647, %v542
    %v677 = vand.u32 2147483647, %v547
    %v678 = vand.u32 2147483647, %v552
    %v679 = vand.u32 2147483647, %v557
    %v680 = vand.u32 2147483647, %v562
    %v681 = vand.u32 2147483647, %v567
    %v682 = vand.u32 2147483647, %v572
    %v683 = vand.u32 2147483647, %v577
    %v684 = vand.u32 2147483647, %v582
    %v685 = vand.u32 2147483647, %v587
    %v686 = vand.u32 2147483647, %v592
    %v687 = vand.u32 2147483647, %v597
    %v688 = vand.u32 2147483647, %v602
    %v689 = vand.u32 2147483647, %v607
    %v690 = vand.u32 2147483647, %v612
    %v691 = vand.u32 2147483647, %v617
    %v692 = vand.u32 2147483647, %v622
    %v693 = vand.u32 2147483647, %v627
    %v694 = vsub.f32 0.0, %v662
    %v695 = vsub.f32 0.0, %v663
    %v696 = vsub.f32 0.0, %v664
    %v697 = vsub.f32 0.0, %v665
    %v698 = vsub.f32 0.0, %v666
    %v699 = vsub.f32 0.0, %v667
    %v700 = vsub.f32 0.0, %v668
    %v701 = vsub.f32 0.0, %v669
    %v702 = vsub.f32 0.0, %v670
    %v703 = vsub.f32 0.0, %v671
    %v704 = vsub.f32 0.0, %v672
    %v705 = vsub.f32 0.0, %v673
    %v706 = vsub.f32 0.0, %v674
    %v707 = vsub.f32 0.0, %v675
    %v708 = vsub.f32 0.0, %v676
    %v709 = vsub.f32 0.0, %v677
    %v710 = vsub.f32 0.0, %v678
    %v711 = vsub.f32 0.0, %v679
    %v712 = vsub.f32 0.0, %v680
    %v713 = vsub.f32 0.0, %v681
    %v714 = vsub.f32 0.0, %v682
    %v715 = vsub.f32 0.0, %v683
    %v716 = vsub.f32 0.0, %v684
    %v717 = vsub.f32 0.0, %v685
    %v718 = vsub.f32 0.0, %v686
    %v719 = vsub.f32 0.0, %v687
    %v720 = vsub.f32 0.0, %v688
    %v721 = vsub.f32 0.0, %v689
    %v722 = vsub.f32 0.0, %v690
    %v723 = vsub.f32 0.0, %v691
    %v724 = vsub.f32 0.0, %v692
    %v725 = vsub.f32 0.0, %v693
    %v726 = vmul.f32 %v694, 1.442695
    %v727 = vpow.pop %v726
    %v728 = vmul.f32 %v695, 1.442695
    %v729 = vpow.pop %v728
    %v730 = vmul.f32 %v696, 1.442695
    %v731 = vpow.pop %v730
    %v732 = vmul.f32 %v697, 1.442695
    %v733 = vpow.pop %v732
    %v734 = vmul.f32 %v698, 1.442695
    %v735 = vpow.pop %v734
    %v736 = vmul.f32 %v699, 1.442695
    %v737 = vpow.pop %v736
    %v738 = vmul.f32 %v700, 1.442695
    %v739 = vpow.pop %v738
    %v740 = vmul.f32 %v701, 1.442695
    %v741 = vpow.pop %v740
    %v742 = vmul.f32 %v702, 1.442695
    %v743 = vpow.pop %v742
    %v744 = vmul.f32 %v703, 1.442695
    %v745 = vpow.pop %v744
    %v746 = vmul.f32 %v704, 1.442695
    %v747 = vpow.pop %v746
    %v748 = vmul.f32 %v705, 1.442695
    %v749 = vpow.pop %v748
    %v750 = vmul.f32 %v706, 1.442695
    %v751 = vpow.pop %v750
    %v752 = vmul.f32 %v707, 1.442695
    %v753 = vpow.pop %v752
    %v754 = vmul.f32 %v708, 1.442695
    %v755 = vpow.pop %v754
    %v756 = vmul.f32 %v709, 1.442695
    %v757 = vpow.pop %v756
    %v758 = vmul.f32 %v710, 1.442695
    %v759 = vpow.pop %v758
    %v760 = vmul.f32 %v711, 1.442695
    %v761 = vpow.pop %v760
    %v762 = vmul.f32 %v712, 1.442695
    %v763 = vpow.pop %v762
    %v764 = vmul.f32 %v713, 1.442695
    %v765 = vpow.pop %v764
    %v766 = vmul.f32 %v714, 1.442695
    %v767 = vpow.pop %v766
    %v768 = vmul.f32 %v715, 1.442695
    %v769 = vpow.pop %v768
    %v770 = vmul.f32 %v716, 1.442695
    %v771 = vpow.pop %v770
    %v772 = vmul.f32 %v717, 1.442695
    %v773 = vpow.pop %v772
    %v774 = vmul.f32 %v718, 1.442695
    %v775 = vpow.pop %v774
    %v776 = vmul.f32 %v719, 1.442695
    %v777 = vpow.pop %v776
    %v778 = vmul.f32 %v720, 1.442695
    %v779 = vpow.pop %v778
    %v780 = vmul.f32 %v721, 1.442695
    %v781 = vpow.pop %v780
    %v782 = vmul.f32 %v722, 1.442695
    %v783 = vpow.pop %v782
    %v784 = vmul.f32 %v723, 1.442695
    %v785 = vpow.pop %v784
    %v786 = vmul.f32 %v724, 1.442695
    %v787 = vpow.pop %v786
    %v788 = vmul.f32 %v725, 1.442695
    %v789 = vpow.pop %v788
    %v790 = vadd.f32 %v727, 1.0
    %v791 = vlog2.pop %v790
    %v792 = vmul.f32 %v791, 0.6931472
    %v793 = vmul.f32 -0.5, %v727
    %v794 = vadd.f32 %v793, 1.0
    %v795 = vmul.f32 %v794, %v727
    %v796 = vand.u32 2147483647, %v727
    %vm797 = vcmp.lt.f32.partialorder %v796, 0.0004427343
    %v798 = vsel %vm797, %v795, %v792
    %v799 = vadd.f32 %v729, 1.0
    %v800 = vlog2.pop %v799
    %v801 = vmul.f32 %v800, 0.6931472
    %v802 = vmul.f32 -0.5, %v729
    %v803 = vadd.f32 %v802, 1.0
    %v804 = vmul.f32 %v803, %v729
    %v805 = vand.u32 2147483647, %v729
    %vm806 = vcmp.lt.f32.partialorder %v805, 0.0004427343
    %v807 = vsel %vm806, %v804, %v801
    %v808 = vadd.f32 %v731, 1.0
    %v809 = vlog2.pop %v808
    %v810 = vmul.f32 %v809, 0.6931472
    %v811 = vmul.f32 -0.5, %v731
    %v812 = vadd.f32 %v811, 1.0
    %v813 = vmul.f32 %v812, %v731
    %v814 = vand.u32 2147483647, %v731
    %vm815 = vcmp.lt.f32.partialorder %v814, 0.0004427343
    %v816 = vsel %vm815, %v813, %v810
    %v817 = vadd.f32 %v733, 1.0
    %v818 = vlog2.pop %v817
    %v819 = vmul.f32 %v818, 0.6931472
    %v820 = vmul.f32 -0.5, %v733
    %v821 = vadd.f32 %v820, 1.0
    %v822 = vmul.f32 %v821, %v733
    %v823 = vand.u32 2147483647, %v733
    %vm824 = vcmp.lt.f32.partialorder %v823, 0.0004427343
    %v825 = vsel %vm824, %v822, %v819
    %v826 = vadd.f32 %v735, 1.0
    %v827 = vlog2.pop %v826
    %v828 = vmul.f32 %v827, 0.6931472
    %v829 = vmul.f32 -0.5, %v735
    %v830 = vadd.f32 %v829, 1.0
    %v831 = vmul.f32 %v830, %v735
    %v832 = vand.u32 2147483647, %v735
    %vm833 = vcmp.lt.f32.partialorder %v832, 0.0004427343
    %v834 = vsel %vm833, %v831, %v828
    %v835 = vadd.f32 %v737, 1.0
    %v836 = vlog2.pop %v835
    %v837 = vmul.f32 %v836, 0.6931472
    %v838 = vmul.f32 -0.5, %v737
    %v839 = vadd.f32 %v838, 1.0
    %v840 = vmul.f32 %v839, %v737
    %v841 = vand.u32 2147483647, %v737
    %vm842 = vcmp.lt.f32.partialorder %v841, 0.0004427343
    %v843 = vsel %vm842, %v840, %v837
    %v844 = vadd.f32 %v739, 1.0
    %v845 = vlog2.pop %v844
    %v846 = vmul.f32 %v845, 0.6931472
    %v847 = vmul.f32 -0.5, %v739
    %v848 = vadd.f32 %v847, 1.0
    %v849 = vmul.f32 %v848, %v739
    %v850 = vand.u32 2147483647, %v739
    %vm851 = vcmp.lt.f32.partialorder %v850, 0.0004427343
    %v852 = vsel %vm851, %v849, %v846
    %v853 = vadd.f32 %v741, 1.0
    %v854 = vlog2.pop %v853
    %v855 = vmul.f32 %v854, 0.6931472
    %v856 = vmul.f32 -0.5, %v741
    %v857 = vadd.f32 %v856, 1.0
    %v858 = vmul.f32 %v857, %v741
    %v859 = vand.u32 2147483647, %v741
    %vm860 = vcmp.lt.f32.partialorder %v859, 0.0004427343
    %v861 = vsel %vm860, %v858, %v855
    %v862 = vadd.f32 %v743, 1.0
    %v863 = vlog2.pop %v862
    %v864 = vmul.f32 %v863, 0.6931472
    %v865 = vmul.f32 -0.5, %v743
    %v866 = vadd.f32 %v865, 1.0
    %v867 = vmul.f32 %v866, %v743
    %v868 = vand.u32 2147483647, %v743
    %vm869 = vcmp.lt.f32.partialorder %v868, 0.0004427343
    %v870 = vsel %vm869, %v867, %v864
    %v871 = vadd.f32 %v745, 1.0
    %v872 = vlog2.pop %v871
    %v873 = vmul.f32 %v872, 0.6931472
    %v874 = vmul.f32 -0.5, %v745
    %v875 = vadd.f32 %v874, 1.0
    %v876 = vmul.f32 %v875, %v745
    %v877 = vand.u32 2147483647, %v745
    %vm878 = vcmp.lt.f32.partialorder %v877, 0.0004427343
    %v879 = vsel %vm878, %v876, %v873
    %v880 = vadd.f32 %v747, 1.0
    %v881 = vlog2.pop %v880
    %v882 = vmul.f32 %v881, 0.6931472
    %v883 = vmul.f32 -0.5, %v747
    %v884 = vadd.f32 %v883, 1.0
    %v885 = vmul.f32 %v884, %v747
    %v886 = vand.u32 2147483647, %v747
    %vm887 = vcmp.lt.f32.partialorder %v886, 0.0004427343
    %v888 = vsel %vm887, %v885, %v882
    %v889 = vadd.f32 %v749, 1.0
    %v890 = vlog2.pop %v889
    %v891 = vmul.f32 %v890, 0.6931472
    %v892 = vmul.f32 -0.5, %v749
    %v893 = vadd.f32 %v892, 1.0
    %v894 = vmul.f32 %v893, %v749
    %v895 = vand.u32 2147483647, %v749
    %vm896 = vcmp.lt.f32.partialorder %v895, 0.0004427343
    %v897 = vsel %vm896, %v894, %v891
    %v898 = vadd.f32 %v751, 1.0
    %v899 = vlog2.pop %v898
    %v900 = vmul.f32 %v899, 0.6931472
    %v901 = vmul.f32 -0.5, %v751
    %v902 = vadd.f32 %v901, 1.0
    %v903 = vmul.f32 %v902, %v751
    %v904 = vand.u32 2147483647, %v751
    %vm905 = vcmp.lt.f32.partialorder %v904, 0.0004427343
    %v906 = vsel %vm905, %v903, %v900
    %v907 = vadd.f32 %v753, 1.0
    %v908 = vlog2.pop %v907
    %v909 = vmul.f32 %v908, 0.6931472
    %v910 = vmul.f32 -0.5, %v753
    %v911 = vadd.f32 %v910, 1.0
    %v912 = vmul.f32 %v911, %v753
    %v913 = vand.u32 2147483647, %v753
    %vm914 = vcmp.lt.f32.partialorder %v913, 0.0004427343
    %v915 = vsel %vm914, %v912, %v909
    %v916 = vadd.f32 %v755, 1.0
    %v917 = vlog2.pop %v916
    %v918 = vmul.f32 %v917, 0.6931472
    %v919 = vmul.f32 -0.5, %v755
    %v920 = vadd.f32 %v919, 1.0
    %v921 = vmul.f32 %v920, %v755
    %v922 = vand.u32 2147483647, %v755
    %vm923 = vcmp.lt.f32.partialorder %v922, 0.0004427343
    %v924 = vsel %vm923, %v921, %v918
    %v925 = vadd.f32 %v757, 1.0
    %v926 = vlog2.pop %v925
    %v927 = vmul.f32 %v926, 0.6931472
    %v928 = vmul.f32 -0.5, %v757
    %v929 = vadd.f32 %v928, 1.0
    %v930 = vmul.f32 %v929, %v757
    %v931 = vand.u32 2147483647, %v757
    %vm932 = vcmp.lt.f32.partialorder %v931, 0.0004427343
    %v933 = vsel %vm932, %v930, %v927
    %v934 = vadd.f32 %v759, 1.0
    %v935 = vlog2.pop %v934
    %v936 = vmul.f32 %v935, 0.6931472
    %v937 = vmul.f32 -0.5, %v759
    %v938 = vadd.f32 %v937, 1.0
    %v939 = vmul.f32 %v938, %v759
    %v940 = vand.u32 2147483647, %v759
    %vm941 = vcmp.lt.f32.partialorder %v940, 0.0004427343
    %v942 = vsel %vm941, %v939, %v936
    %v943 = vadd.f32 %v761, 1.0
    %v944 = vlog2.pop %v943
    %v945 = vmul.f32 %v944, 0.6931472
    %v946 = vmul.f32 -0.5, %v761
    %v947 = vadd.f32 %v946, 1.0
    %v948 = vmul.f32 %v947, %v761
    %v949 = vand.u32 2147483647, %v761
    %vm950 = vcmp.lt.f32.partialorder %v949, 0.0004427343
    %v951 = vsel %vm950, %v948, %v945
    %v952 = vadd.f32 %v763, 1.0
    %v953 = vlog2.pop %v952
    %v954 = vmul.f32 %v953, 0.6931472
    %v955 = vmul.f32 -0.5, %v763
    %v956 = vadd.f32 %v955, 1.0
    %v957 = vmul.f32 %v956, %v763
    %v958 = vand.u32 2147483647, %v763
    %vm959 = vcmp.lt.f32.partialorder %v958, 0.0004427343
    %v960 = vsel %vm959, %v957, %v954
    %v961 = vadd.f32 %v765, 1.0
    %v962 = vlog2.pop %v961
    %v963 = vmul.f32 %v962, 0.6931472
    %v964 = vmul.f32 -0.5, %v765
    %v965 = vadd.f32 %v964, 1.0
    %v966 = vmul.f32 %v965, %v765
    %v967 = vand.u32 2147483647, %v765
    %vm968 = vcmp.lt.f32.partialorder %v967, 0.0004427343
    %v969 = vsel %vm968, %v966, %v963
    %v970 = vadd.f32 %v767, 1.0
    %v971 = vlog2.pop %v970
    %v972 = vmul.f32 %v971, 0.6931472
    %v973 = vmul.f32 -0.5, %v767
    %v974 = vadd.f32 %v973, 1.0
    %v975 = vmul.f32 %v974, %v767
    %v976 = vand.u32 2147483647, %v767
    %vm977 = vcmp.lt.f32.partialorder %v976, 0.0004427343
    %v978 = vsel %vm977, %v975, %v972
    %v979 = vadd.f32 %v769, 1.0
    %v980 = vlog2.pop %v979
    %v981 = vmul.f32 %v980, 0.6931472
    %v982 = vmul.f32 -0.5, %v769
    %v983 = vadd.f32 %v982, 1.0
    %v984 = vmul.f32 %v983, %v769
    %v985 = vand.u32 2147483647, %v769
    %vm986 = vcmp.lt.f32.partialorder %v985, 0.0004427343
    %v987 = vsel %vm986, %v984, %v981
    %v988 = vadd.f32 %v771, 1.0
    %v989 = vlog2.pop %v988
    %v990 = vmul.f32 %v989, 0.6931472
    %v991 = vmul.f32 -0.5, %v771
    %v992 = vadd.f32 %v991, 1.0
    %v993 = vmul.f32 %v992, %v771
    %v994 = vand.u32 2147483647, %v771
    %vm995 = vcmp.lt.f32.partialorder %v994, 0.0004427343
    %v996 = vsel %vm995, %v993, %v990
    %v997 = vadd.f32 %v773, 1.0
    %v998 = vlog2.pop %v997
    %v999 = vmul.f32 %v998, 0.6931472
    %v1000 = vmul.f32 -0.5, %v773
    %v1001 = vadd.f32 %v1000, 1.0
    %v1002 = vmul.f32 %v1001, %v773
    %v1003 = vand.u32 2147483647, %v773
    %vm1004 = vcmp.lt.f32.partialorder %v1003, 0.0004427343
    %v1005 = vsel %vm1004, %v1002, %v999
    %v1006 = vadd.f32 %v775, 1.0
    %v1007 = vlog2.pop %v1006
    %v1008 = vmul.f32 %v1007, 0.6931472
    %v1009 = vmul.f32 -0.5, %v775
    %v1010 = vadd.f32 %v1009, 1.0
    %v1011 = vmul.f32 %v1010, %v775
    %v1012 = vand.u32 2147483647, %v775
    %vm1013 = vcmp.lt.f32.partialorder %v1012, 0.0004427343
    %v1014 = vsel %vm1013, %v1011, %v1008
    %v1015 = vadd.f32 %v777, 1.0
    %v1016 = vlog2.pop %v1015
    %v1017 = vmul.f32 %v1016, 0.6931472
    %v1018 = vmul.f32 -0.5, %v777
    %v1019 = vadd.f32 %v1018, 1.0
    %v1020 = vmul.f32 %v1019, %v777
    %v1021 = vand.u32 2147483647, %v777
    %vm1022 = vcmp.lt.f32.partialorder %v1021, 0.0004427343
    %v1023 = vsel %vm1022, %v1020, %v1017
    %v1024 = vadd.f32 %v779, 1.0
    %v1025 = vlog2.pop %v1024
    %v1026 = vmul.f32 %v1025, 0.6931472
    %v1027 = vmul.f32 -0.5, %v779
    %v1028 = vadd.f32 %v1027, 1.0
    %v1029 = vmul.f32 %v1028, %v779
    %v1030 = vand.u32 2147483647, %v779
    %vm1031 = vcmp.lt.f32.partialorder %v1030, 0.0004427343
    %v1032 = vsel %vm1031, %v1029, %v1026
    %v1033 = vadd.f32 %v781, 1.0
    %v1034 = vlog2.pop %v1033
    %v1035 = vmul.f32 %v1034, 0.6931472
    %v1036 = vmul.f32 -0.5, %v781
    %v1037 = vadd.f32 %v1036, 1.0
    %v1038 = vmul.f32 %v1037, %v781
    %v1039 = vand.u32 2147483647, %v781
    %vm1040 = vcmp.lt.f32.partialorder %v1039, 0.0004427343
    %v1041 = vsel %vm1040, %v1038, %v1035
    %v1042 = vadd.f32 %v783, 1.0
    %v1043 = vlog2.pop %v1042
    %v1044 = vmul.f32 %v1043, 0.6931472
    %v1045 = vmul.f32 -0.5, %v783
    %v1046 = vadd.f32 %v1045, 1.0
    %v1047 = vmul.f32 %v1046, %v783
    %v1048 = vand.u32 2147483647, %v783
    %vm1049 = vcmp.lt.f32.partialorder %v1048, 0.0004427343
    %v1050 = vsel %vm1049, %v1047, %v1044
    %v1051 = vadd.f32 %v785, 1.0
    %v1052 = vlog2.pop %v1051
    %v1053 = vmul.f32 %v1052, 0.6931472
    %v1054 = vmul.f32 -0.5, %v785
    %v1055 = vadd.f32 %v1054, 1.0
    %v1056 = vmul.f32 %v1055, %v785
    %v1057 = vand.u32 2147483647, %v785
    %vm1058 = vcmp.lt.f32.partialorder %v1057, 0.0004427343
    %v1059 = vsel %vm1058, %v1056, %v1053
    %v1060 = vadd.f32 %v787, 1.0
    %v1061 = vlog2.pop %v1060
    %v1062 = vmul.f32 %v1061, 0.6931472
    %v1063 = vmul.f32 -0.5, %v787
    %v1064 = vadd.f32 %v1063, 1.0
    %v1065 = vmul.f32 %v1064, %v787
    %v1066 = vand.u32 2147483647, %v787
    %vm1067 = vcmp.lt.f32.partialorder %v1066, 0.0004427343
    %v1068 = vsel %vm1067, %v1065, %v1062
    %v1069 = vadd.f32 %v789, 1.0
    %v1070 = vlog2.pop %v1069
    %v1071 = vmul.f32 %v1070, 0.6931472
    %v1072 = vmul.f32 -0.5, %v789
    %v1073 = vadd.f32 %v1072, 1.0
    %v1074 = vmul.f32 %v1073, %v789
    %v1075 = vand.u32 2147483647, %v789
    %vm1076 = vcmp.lt.f32.partialorder %v1075, 0.0004427343
    %v1077 = vsel %vm1076, %v1074, %v1071
    %v1078 = vadd.f32 %v630, %v798
    %v1079 = vadd.f32 %v631, %v807
    %v1080 = vadd.f32 %v632, %v816
    %v1081 = vadd.f32 %v633, %v825
    %v1082 = vadd.f32 %v634, %v834
    %v1083 = vadd.f32 %v635, %v843
    %v1084 = vadd.f32 %v636, %v852
    %v1085 = vadd.f32 %v637, %v861
    %v1086 = vadd.f32 %v638, %v870
    %v1087 = vadd.f32 %v639, %v879
    %v1088 = vadd.f32 %v640, %v888
    %v1089 = vadd.f32 %v641, %v897
    %v1090 = vadd.f32 %v642, %v906
    %v1091 = vadd.f32 %v643, %v915
    %v1092 = vadd.f32 %v644, %v924
    %v1093 = vadd.f32 %v645, %v933
    %v1094 = vadd.f32 %v646, %v942
    %v1095 = vadd.f32 %v647, %v951
    %v1096 = vadd.f32 %v648, %v960
    %v1097 = vadd.f32 %v649, %v969
    %v1098 = vadd.f32 %v650, %v978
    %v1099 = vadd.f32 %v651, %v987
    %v1100 = vadd.f32 %v652, %v996
    %v1101 = vadd.f32 %v653, %v1005
    %v1102 = vadd.f32 %v654, %v1014
    %v1103 = vadd.f32 %v655, %v1023
    %v1104 = vadd.f32 %v656, %v1032
    %v1105 = vadd.f32 %v657, %v1041
    %v1106 = vadd.f32 %v658, %v1050
    %v1107 = vadd.f32 %v659, %v1059
    %v1108 = vadd.f32 %v660, %v1068
    %v1109 = vadd.f32 %v661, %v1077
    %v1110 = vsub.f32 %v1078, 0.6931472
    %v1111 = vsub.f32 %v1079, 0.6931472
    %v1112 = vsub.f32 %v1080, 0.6931472
    %v1113 = vsub.f32 %v1081, 0.6931472
    %v1114 = vsub.f32 %v1082, 0.6931472
    %v1115 = vsub.f32 %v1083, 0.6931472
    %v1116 = vsub.f32 %v1084, 0.6931472
    %v1117 = vsub.f32 %v1085, 0.6931472
    %v1118 = vsub.f32 %v1086, 0.6931472
    %v1119 = vsub.f32 %v1087, 0.6931472
    %v1120 = vsub.f32 %v1088, 0.6931472
    %v1121 = vsub.f32 %v1089, 0.6931472
    %v1122 = vsub.f32 %v1090, 0.6931472
    %v1123 = vsub.f32 %v1091, 0.6931472
    %v1124 = vsub.f32 %v1092, 0.6931472
    %v1125 = vsub.f32 %v1093, 0.6931472
    %v1126 = vsub.f32 %v1094, 0.6931472
    %v1127 = vsub.f32 %v1095, 0.6931472
    %v1128 = vsub.f32 %v1096, 0.6931472
    %v1129 = vsub.f32 %v1097, 0.6931472
    %v1130 = vsub.f32 %v1098, 0.6931472
    %v1131 = vsub.f32 %v1099, 0.6931472
    %v1132 = vsub.f32 %v1100, 0.6931472
    %v1133 = vsub.f32 %v1101, 0.6931472
    %v1134 = vsub.f32 %v1102, 0.6931472
    %v1135 = vsub.f32 %v1103, 0.6931472
    %v1136 = vsub.f32 %v1104, 0.6931472
    %v1137 = vsub.f32 %v1105, 0.6931472
    %v1138 = vsub.f32 %v1106, 0.6931472
    %v1139 = vsub.f32 %v1107, 0.6931472
    %v1140 = vsub.f32 %v1108, 0.6931472
    %v1141 = vsub.f32 %v1109, 0.6931472
    %v1142 = vld [vmem:[%s7] sm:$0xff]
    %v1143 = vld [vmem:[%s7 + $0x8] sm:$0xff]
    %v1144 = vld [vmem:[%s7 + $0x10] sm:$0xff]
    %v1145 = vld [vmem:[%s7 + $0x18] sm:$0xff]
    %v1146 = vld [vmem:[%s7 + $0x20] sm:$0xff]
    %v1147 = vld [vmem:[%s7 + $0x28] sm:$0xff]
    %v1148 = vld [vmem:[%s7 + $0x30] sm:$0xff]
    %v1149 = vld [vmem:[%s7 + $0x38] sm:$0xff]
    %v1150 = vld [vmem:[%s7 + $0x40] sm:$0xff]
    %v1151 = vld [vmem:[%s7 + $0x48] sm:$0xff]
    %v1152 = vld [vmem:[%s7 + $0x50] sm:$0xff]
    %v1153 = vld [vmem:[%s7 + $0x58] sm:$0xff]
    %v1154 = vld [vmem:[%s7 + $0x60] sm:$0xff]
    %v1155 = vld [vmem:[%s7 + $0x68] sm:$0xff]
    %v1156 = vld [vmem:[%s7 + $0x70] sm:$0xff]
    %v1157 = vld [vmem:[%s7 + $0x78] sm:$0xff]
    %v1158 = vld [vmem:[%s8] sm:$0x1]
    %v1160 = vlaneseq
    %v1161 = vshrl.u32 %v1160, 7
    %v1162 = vsub.s32 0, %v1161
    %v1163 = vrot.slane %v1158, %v1162
    %1165 = vmatprep.subr.mxu0 0.0
    %1166 = vmatpush1.msra.mxu0 %v1142
    %1167 = vmatprep.subr.mxu0 0.0
    %1168 = vmatpush1.msra.mxu0 %v1143
    %1169 = vmatprep.subr.mxu0 0.0
    %1170 = vmatpush1.msra.mxu0 %v1144
    %1171 = vmatprep.subr.mxu0 0.0
    %1172 = vmatpush1.msra.mxu0 %v1145
    %1173 = vmatprep.subr.mxu0 0.0
    %1174 = vmatpush1.msra.mxu0 %v1146
    %1175 = vmatprep.subr.mxu0 0.0
    %1176 = vmatpush1.msra.mxu0 %v1147
    %1177 = vmatprep.subr.mxu0 0.0
    %1178 = vmatpush1.msra.mxu0 %v1148
    %1179 = vmatprep.subr.mxu0 0.0
    %1180 = vmatpush1.msra.mxu0 %v1149
    %1181 = vmatprep.subr.mxu0 0.0
    %1182 = vmatpush1.msra.mxu0 %v1150
    %1183 = vmatprep.subr.mxu0 0.0
    %1184 = vmatpush1.msra.mxu0 %v1151
    %1185 = vmatprep.subr.mxu0 0.0
    %1186 = vmatpush1.msra.mxu0 %v1152
    %1187 = vmatprep.subr.mxu0 0.0
    %1188 = vmatpush1.msra.mxu0 %v1153
    %1189 = vmatprep.subr.mxu0 0.0
    %1190 = vmatpush1.msra.mxu0 %v1154
    %1191 = vmatprep.subr.mxu0 0.0
    %1192 = vmatpush1.msra.mxu0 %v1155
    %1193 = vmatprep.subr.mxu0 0.0
    %1194 = vmatpush1.msra.mxu0 %v1156
    %1195 = vmatprep.subr.mxu0 0.0
    %1196 = vmatpush1.msra.mxu0 %v1157
    %1197 = vmatprep.subr.mxu0 0.0
    %1198 = vmatpush1.msra.mxu0 0.0
    %1199 = vmatprep.subr.mxu0 0.0
    %1200 = vmatpush1.msra.mxu0 0.0
    %1201 = vmatprep.subr.mxu0 0.0
    %1202 = vmatpush1.msra.mxu0 0.0
    %1203 = vmatprep.subr.mxu0 0.0
    %1204 = vmatpush1.msra.mxu0 0.0
    %1205 = vmatprep.subr.mxu0 0.0
    %1206 = vmatpush1.msra.mxu0 0.0
    %1207 = vmatprep.subr.mxu0 0.0
    %1208 = vmatpush1.msra.mxu0 0.0
    %1209 = vmatprep.subr.mxu0 0.0
    %1210 = vmatpush1.msra.mxu0 0.0
    %1211 = vmatprep.subr.mxu0 0.0
    %1212 = vmatpush1.msra.mxu0 0.0
    %1213 = vmatprep.subr.mxu0 0.0
    %1214 = vmatpush1.msra.mxu0 0.0
    %1215 = vmatprep.subr.mxu0 0.0
    %1216 = vmatpush1.msra.mxu0 0.0
    %1217 = vmatprep.subr.mxu0 0.0
    %1218 = vmatpush1.msra.mxu0 0.0
    %1219 = vmatprep.subr.mxu0 0.0
    %1220 = vmatpush1.msra.mxu0 0.0
    %1221 = vmatprep.subr.mxu0 0.0
    %1222 = vmatpush1.msra.mxu0 0.0
    %1223 = vmatprep.subr.mxu0 0.0
    %1224 = vmatpush1.msra.mxu0 0.0
    %1225 = vmatprep.subr.mxu0 0.0
    %1226 = vmatpush1.msra.mxu0 0.0
    %1227 = vmatprep.subr.mxu0 0.0
    %1228 = vmatpush1.msra.mxu0 0.0
    %1229 = vmatprep.mubr.f32.mxu0 0.0
    %1230 = vmatmul.mubr.f32.gmra.mrb[0].mxu0 %v1110
    %v1231 = vpop.f32.mrb[0].mxu0
    %v1232 = vadd.f32 %v1163, %v1231
    %v1233 = vpop.f32.mrb[0].mxu0
    %1234 = vmatprep.mubr.f32.mxu0 0.0
    %1235 = vmatmul.mubr.f32.gmra.mrb[0].mxu0 %v1111
    %v1236 = vpop.f32.mrb[0].mxu0
    %v1237 = vadd.f32 %v1163, %v1236
    %v1238 = vpop.f32.mrb[0].mxu0
    %1239 = vmatprep.mubr.f32.mxu0 0.0
    %1240 = vmatmul.mubr.f32.gmra.mrb[0].mxu0 %v1112
    %v1241 = vpop.f32.mrb[0].mxu0
    %v1242 = vadd.f32 %v1163, %v1241
    %v1243 = vpop.f32.mrb[0].mxu0
    %1244 = vmatprep.mubr.f32.mxu0 0.0
    %1245 = vmatmul.mubr.f32.gmra.mrb[0].mxu0 %v1113
    %v1246 = vpop.f32.mrb[0].mxu0
    %v1247 = vadd.f32 %v1163, %v1246
    %v1248 = vpop.f32.mrb[0].mxu0
    %1249 = vmatprep.mubr.f32.mxu0 0.0
    %1250 = vmatmul.mubr.f32.gmra.mrb[0].mxu0 %v1114
    %v1251 = vpop.f32.mrb[0].mxu0
    %v1252 = vadd.f32 %v1163, %v1251
    %v1253 = vpop.f32.mrb[0].mxu0
    %1254 = vmatprep.mubr.f32.mxu0 0.0
    %1255 = vmatmul.mubr.f32.gmra.mrb[0].mxu0 %v1115
    %v1256 = vpop.f32.mrb[0].mxu0
    %v1257 = vadd.f32 %v1163, %v1256
    %v1258 = vpop.f32.mrb[0].mxu0
    %1259 = vmatprep.mubr.f32.mxu0 0.0
    %1260 = vmatmul.mubr.f32.gmra.mrb[0].mxu0 %v1116
    %v1261 = vpop.f32.mrb[0].mxu0
    %v1262 = vadd.f32 %v1163, %v1261
    %v1263 = vpop.f32.mrb[0].mxu0
    %1264 = vmatprep.mubr.f32.mxu0 0.0
    %1265 = vmatmul.mubr.f32.gmra.mrb[0].mxu0 %v1117
    %v1266 = vpop.f32.mrb[0].mxu0
    %v1267 = vadd.f32 %v1163, %v1266
    %v1268 = vpop.f32.mrb[0].mxu0
    %1269 = vmatprep.mubr.f32.mxu0 0.0
    %1270 = vmatmul.mubr.f32.gmra.mrb[0].mxu0 %v1118
    %v1271 = vpop.f32.mrb[0].mxu0
    %v1272 = vadd.f32 %v1163, %v1271
    %v1273 = vpop.f32.mrb[0].mxu0
    %1274 = vmatprep.mubr.f32.mxu0 0.0
    %1275 = vmatmul.mubr.f32.gmra.mrb[0].mxu0 %v1119
    %v1276 = vpop.f32.mrb[0].mxu0
    %v1277 = vadd.f32 %v1163, %v1276
    %v1278 = vpop.f32.mrb[0].mxu0
    %1279 = vmatprep.mubr.f32.mxu0 0.0
    %1280 = vmatmul.mubr.f32.gmra.mrb[0].mxu0 %v1120
    %v1281 = vpop.f32.mrb[0].mxu0
    %v1282 = vadd.f32 %v1163, %v1281
    %v1283 = vpop.f32.mrb[0].mxu0
    %1284 = vmatprep.mubr.f32.mxu0 0.0
    %1285 = vmatmul.mubr.f32.gmra.mrb[0].mxu0 %v1121
    %v1286 = vpop.f32.mrb[0].mxu0
    %v1287 = vadd.f32 %v1163, %v1286
    %v1288 = vpop.f32.mrb[0].mxu0
    %1289 = vmatprep.mubr.f32.mxu0 0.0
    %1290 = vmatmul.mubr.f32.gmra.mrb[0].mxu0 %v1122
    %v1291 = vpop.f32.mrb[0].mxu0
    %v1292 = vadd.f32 %v1163, %v1291
    %v1293 = vpop.f32.mrb[0].mxu0
    %1294 = vmatprep.mubr.f32.mxu0 0.0
    %1295 = vmatmul.mubr.f32.gmra.mrb[0].mxu0 %v1123
    %v1296 = vpop.f32.mrb[0].mxu0
    %v1297 = vadd.f32 %v1163, %v1296
    %v1298 = vpop.f32.mrb[0].mxu0
    %1299 = vmatprep.mubr.f32.mxu0 0.0
    %1300 = vmatmul.mubr.f32.gmra.mrb[0].mxu0 %v1124
    %v1301 = vpop.f32.mrb[0].mxu0
    %v1302 = vadd.f32 %v1163, %v1301
    %v1303 = vpop.f32.mrb[0].mxu0
    %1304 = vmatprep.mubr.f32.mxu0 0.0
    %1305 = vmatmul.mubr.f32.gmra.mrb[0].mxu0 %v1125
    %v1306 = vpop.f32.mrb[0].mxu0
    %v1307 = vadd.f32 %v1163, %v1306
    %v1308 = vpop.f32.mrb[0].mxu0
    %1309 = vmatprep.mubr.f32.mxu0 0.0
    %1310 = vmatmul.mubr.f32.gmra.mrb[0].mxu0 %v1126
    %v1311 = vpop.f32.mrb[0].mxu0
    %v1312 = vadd.f32 %v1163, %v1311
    %v1313 = vpop.f32.mrb[0].mxu0
    %1314 = vmatprep.mubr.f32.mxu0 0.0
    %1315 = vmatmul.mubr.f32.gmra.mrb[0].mxu0 %v1127
    %v1316 = vpop.f32.mrb[0].mxu0
    %v1317 = vadd.f32 %v1163, %v1316
    %v1318 = vpop.f32.mrb[0].mxu0
    %1319 = vmatprep.mubr.f32.mxu0 0.0
    %1320 = vmatmul.mubr.f32.gmra.mrb[0].mxu0 %v1128
    %v1321 = vpop.f32.mrb[0].mxu0
    %v1322 = vadd.f32 %v1163, %v1321
    %v1323 = vpop.f32.mrb[0].mxu0
    %1324 = vmatprep.mubr.f32.mxu0 0.0
    %1325 = vmatmul.mubr.f32.gmra.mrb[0].mxu0 %v1129
    %v1326 = vpop.f32.mrb[0].mxu0
    %v1327 = vadd.f32 %v1163, %v1326
    %v1328 = vpop.f32.mrb[0].mxu0
    %1329 = vmatprep.mubr.f32.mxu0 0.0
    %1330 = vmatmul.mubr.f32.gmra.mrb[0].mxu0 %v1130
    %v1331 = vpop.f32.mrb[0].mxu0
    %v1332 = vadd.f32 %v1163, %v1331
    %v1333 = vpop.f32.mrb[0].mxu0
    %1334 = vmatprep.mubr.f32.mxu0 0.0
    %1335 = vmatmul.mubr.f32.gmra.mrb[0].mxu0 %v1131
    %v1336 = vpop.f32.mrb[0].mxu0
    %v1337 = vadd.f32 %v1163, %v1336
    %v1338 = vpop.f32.mrb[0].mxu0
    %1339 = vmatprep.mubr.f32.mxu0 0.0
    %1340 = vmatmul.mubr.f32.gmra.mrb[0].mxu0 %v1132
    %v1341 = vpop.f32.mrb[0].mxu0
    %v1342 = vadd.f32 %v1163, %v1341
    %v1343 = vpop.f32.mrb[0].mxu0
    %1344 = vmatprep.mubr.f32.mxu0 0.0
    %1345 = vmatmul.mubr.f32.gmra.mrb[0].mxu0 %v1133
    %v1346 = vpop.f32.mrb[0].mxu0
    %v1347 = vadd.f32 %v1163, %v1346
    %v1348 = vpop.f32.mrb[0].mxu0
    %1349 = vmatprep.mubr.f32.mxu0 0.0
    %1350 = vmatmul.mubr.f32.gmra.mrb[0].mxu0 %v1134
    %v1351 = vpop.f32.mrb[0].mxu0
    %v1352 = vadd.f32 %v1163, %v1351
    %v1353 = vpop.f32.mrb[0].mxu0
    %1354 = vmatprep.mubr.f32.mxu0 0.0
    %1355 = vmatmul.mubr.f32.gmra.mrb[0].mxu0 %v1135
    %v1356 = vpop.f32.mrb[0].mxu0
    %v1357 = vadd.f32 %v1163, %v1356
    %v1358 = vpop.f32.mrb[0].mxu0
    %1359 = vmatprep.mubr.f32.mxu0 0.0
    %1360 = vmatmul.mubr.f32.gmra.mrb[0].mxu0 %v1136
    %v1361 = vpop.f32.mrb[0].mxu0
    %v1362 = vadd.f32 %v1163, %v1361
    %v1363 = vpop.f32.mrb[0].mxu0
    %1364 = vmatprep.mubr.f32.mxu0 0.0
    %1365 = vmatmul.mubr.f32.gmra.mrb[0].mxu0 %v1137
    %v1366 = vpop.f32.mrb[0].mxu0
    %v1367 = vadd.f32 %v1163, %v1366
    %v1368 = vpop.f32.mrb[0].mxu0
    %1369 = vmatprep.mubr.f32.mxu0 0.0
    %1370 = vmatmul.mubr.f32.gmra.mrb[0].mxu0 %v1138
    %v1371 = vpop.f32.mrb[0].mxu0
    %v1372 = vadd.f32 %v1163, %v1371
    %v1373 = vpop.f32.mrb[0].mxu0
    %1374 = vmatprep.mubr.f32.mxu0 0.0
    %1375 = vmatmul.mubr.f32.gmra.mrb[0].mxu0 %v1139
    %v1376 = vpop.f32.mrb[0].mxu0
    %v1377 = vadd.f32 %v1163, %v1376
    %v1378 = vpop.f32.mrb[0].mxu0
    %1379 = vmatprep.mubr.f32.mxu0 0.0
    %1380 = vmatmul.mubr.f32.gmra.mrb[0].mxu0 %v1140
    %v1381 = vpop.f32.mrb[0].mxu0
    %v1382 = vadd.f32 %v1163, %v1381
    %v1383 = vpop.f32.mrb[0].mxu0
    %1384 = vmatprep.mubr.f32.mxu0 0.0
    %1385 = vmatmul.mubr.f32.gmra.mrb[0].mxu0 %v1141
    %v1386 = vpop.f32.mrb[0].mxu0
    %v1387 = vadd.f32 %v1163, %v1386
    %v1388 = vpop.f32.mrb[0].mxu0
    %1389 = vdwg.mxu0
    %v1390 = vld [vmem:[%s2] sm:$0xff]
    %v1391 = vld [vmem:[%s2 + $0x8] sm:$0xff]
    %v1392 = vld [vmem:[%s2 + $0x10] sm:$0xff]
    %v1393 = vld [vmem:[%s2 + $0x18] sm:$0xff]
    %v1394 = vld [vmem:[%s2 + $0x20] sm:$0xff]
    %v1395 = vld [vmem:[%s2 + $0x28] sm:$0xff]
    %v1396 = vld [vmem:[%s2 + $0x30] sm:$0xff]
    %v1397 = vld [vmem:[%s2 + $0x38] sm:$0xff]
    %v1398 = vld [vmem:[%s2 + $0x40] sm:$0xff]
    %v1399 = vld [vmem:[%s2 + $0x48] sm:$0xff]
    %v1400 = vld [vmem:[%s2 + $0x50] sm:$0xff]
    %v1401 = vld [vmem:[%s2 + $0x58] sm:$0xff]
    %v1402 = vld [vmem:[%s2 + $0x60] sm:$0xff]
    %v1403 = vld [vmem:[%s2 + $0x68] sm:$0xff]
    %v1404 = vld [vmem:[%s2 + $0x70] sm:$0xff]
    %v1405 = vld [vmem:[%s2 + $0x78] sm:$0xff]
    %v1406 = vld [vmem:[%s2 + $0x80] sm:$0xff]
    %v1407 = vld [vmem:[%s2 + $0x88] sm:$0xff]
    %v1408 = vld [vmem:[%s2 + $0x90] sm:$0xff]
    %v1409 = vld [vmem:[%s2 + $0x98] sm:$0xff]
    %v1410 = vld [vmem:[%s2 + $0xa0] sm:$0xff]
    %v1411 = vld [vmem:[%s2 + $0xa8] sm:$0xff]
    %v1412 = vld [vmem:[%s2 + $0xb0] sm:$0xff]
    %v1413 = vld [vmem:[%s2 + $0xb8] sm:$0xff]
    %v1414 = vld [vmem:[%s2 + $0xc0] sm:$0xff]
    %v1415 = vld [vmem:[%s2 + $0xc8] sm:$0xff]
    %v1416 = vld [vmem:[%s2 + $0xd0] sm:$0xff]
    %v1417 = vld [vmem:[%s2 + $0xd8] sm:$0xff]
    %v1418 = vld [vmem:[%s2 + $0xe0] sm:$0xff]
    %v1419 = vld [vmem:[%s2 + $0xe8] sm:$0xff]
    %v1420 = vld [vmem:[%s2 + $0xf0] sm:$0xff]
    %v1421 = vld [vmem:[%s2 + $0xf8] sm:$0xff]
    %1423 = vset.pattern.permute.xlu0 0
    %1424 = vperm.xlu0 %1423, %v1390
    %v1425 = vpop.permute.xlu0 %1424
    %1428 = vset.pattern.permute.xlu0 0
    %1429 = vperm.xlu0 %1428, %v1391
    %v1430 = vpop.permute.xlu0 %1429
    %1433 = vset.pattern.permute.xlu0 0
    %1434 = vperm.xlu0 %1433, %v1392
    %v1435 = vpop.permute.xlu0 %1434
    %1438 = vset.pattern.permute.xlu0 0
    %1439 = vperm.xlu0 %1438, %v1393
    %v1440 = vpop.permute.xlu0 %1439
    %1443 = vset.pattern.permute.xlu0 0
    %1444 = vperm.xlu0 %1443, %v1394
    %v1445 = vpop.permute.xlu0 %1444
    %1448 = vset.pattern.permute.xlu0 0
    %1449 = vperm.xlu0 %1448, %v1395
    %v1450 = vpop.permute.xlu0 %1449
    %1453 = vset.pattern.permute.xlu0 0
    %1454 = vperm.xlu0 %1453, %v1396
    %v1455 = vpop.permute.xlu0 %1454
    %1458 = vset.pattern.permute.xlu0 0
    %1459 = vperm.xlu0 %1458, %v1397
    %v1460 = vpop.permute.xlu0 %1459
    %1463 = vset.pattern.permute.xlu0 0
    %1464 = vperm.xlu0 %1463, %v1398
    %v1465 = vpop.permute.xlu0 %1464
    %1468 = vset.pattern.permute.xlu0 0
    %1469 = vperm.xlu0 %1468, %v1399
    %v1470 = vpop.permute.xlu0 %1469
    %1473 = vset.pattern.permute.xlu0 0
    %1474 = vperm.xlu0 %1473, %v1400
    %v1475 = vpop.permute.xlu0 %1474
    %1478 = vset.pattern.permute.xlu0 0
    %1479 = vperm.xlu0 %1478, %v1401
    %v1480 = vpop.permute.xlu0 %1479
    %1483 = vset.pattern.permute.xlu0 0
    %1484 = vperm.xlu0 %1483, %v1402
    %v1485 = vpop.permute.xlu0 %1484
    %1488 = vset.pattern.permute.xlu0 0
    %1489 = vperm.xlu0 %1488, %v1403
    %v1490 = vpop.permute.xlu0 %1489
    %1493 = vset.pattern.permute.xlu0 0
    %1494 = vperm.xlu0 %1493, %v1404
    %v1495 = vpop.permute.xlu0 %1494
    %1498 = vset.pattern.permute.xlu0 0
    %1499 = vperm.xlu0 %1498, %v1405
    %v1500 = vpop.permute.xlu0 %1499
    %1503 = vset.pattern.permute.xlu0 0
    %1504 = vperm.xlu0 %1503, %v1406
    %v1505 = vpop.permute.xlu0 %1504
    %1508 = vset.pattern.permute.xlu0 0
    %1509 = vperm.xlu0 %1508, %v1407
    %v1510 = vpop.permute.xlu0 %1509
    %1513 = vset.pattern.permute.xlu0 0
    %1514 = vperm.xlu0 %1513, %v1408
    %v1515 = vpop.permute.xlu0 %1514
    %1518 = vset.pattern.permute.xlu0 0
    %1519 = vperm.xlu0 %1518, %v1409
    %v1520 = vpop.permute.xlu0 %1519
    %1523 = vset.pattern.permute.xlu0 0
    %1524 = vperm.xlu0 %1523, %v1410
    %v1525 = vpop.permute.xlu0 %1524
    %1528 = vset.pattern.permute.xlu0 0
    %1529 = vperm.xlu0 %1528, %v1411
    %v1530 = vpop.permute.xlu0 %1529
    %1533 = vset.pattern.permute.xlu0 0
    %1534 = vperm.xlu0 %1533, %v1412
    %v1535 = vpop.permute.xlu0 %1534
    %1538 = vset.pattern.permute.xlu0 0
    %1539 = vperm.xlu0 %1538, %v1413
    %v1540 = vpop.permute.xlu0 %1539
    %1543 = vset.pattern.permute.xlu0 0
    %1544 = vperm.xlu0 %1543, %v1414
    %v1545 = vpop.permute.xlu0 %1544
    %1548 = vset.pattern.permute.xlu0 0
    %1549 = vperm.xlu0 %1548, %v1415
    %v1550 = vpop.permute.xlu0 %1549
    %1553 = vset.pattern.permute.xlu0 0
    %1554 = vperm.xlu0 %1553, %v1416
    %v1555 = vpop.permute.xlu0 %1554
    %1558 = vset.pattern.permute.xlu0 0
    %1559 = vperm.xlu0 %1558, %v1417
    %v1560 = vpop.permute.xlu0 %1559
    %1563 = vset.pattern.permute.xlu0 0
    %1564 = vperm.xlu0 %1563, %v1418
    %v1565 = vpop.permute.xlu0 %1564
    %1568 = vset.pattern.permute.xlu0 0
    %1569 = vperm.xlu0 %1568, %v1419
    %v1570 = vpop.permute.xlu0 %1569
    %1573 = vset.pattern.permute.xlu0 0
    %1574 = vperm.xlu0 %1573, %v1420
    %v1575 = vpop.permute.xlu0 %1574
    %1578 = vset.pattern.permute.xlu0 0
    %1579 = vperm.xlu0 %1578, %v1421
    %v1580 = vpop.permute.xlu0 %1579
    %v1582 = vmul.f32 %v1232, %v1425
    %v1583 = vmul.f32 %v1237, %v1430
    %v1584 = vmul.f32 %v1242, %v1435
    %v1585 = vmul.f32 %v1247, %v1440
    %v1586 = vmul.f32 %v1252, %v1445
    %v1587 = vmul.f32 %v1257, %v1450
    %v1588 = vmul.f32 %v1262, %v1455
    %v1589 = vmul.f32 %v1267, %v1460
    %v1590 = vmul.f32 %v1272, %v1465
    %v1591 = vmul.f32 %v1277, %v1470
    %v1592 = vmul.f32 %v1282, %v1475
    %v1593 = vmul.f32 %v1287, %v1480
    %v1594 = vmul.f32 %v1292, %v1485
    %v1595 = vmul.f32 %v1297, %v1490
    %v1596 = vmul.f32 %v1302, %v1495
    %v1597 = vmul.f32 %v1307, %v1500
    %v1598 = vmul.f32 %v1312, %v1505
    %v1599 = vmul.f32 %v1317, %v1510
    %v1600 = vmul.f32 %v1322, %v1515
    %v1601 = vmul.f32 %v1327, %v1520
    %v1602 = vmul.f32 %v1332, %v1525
    %v1603 = vmul.f32 %v1337, %v1530
    %v1604 = vmul.f32 %v1342, %v1535
    %v1605 = vmul.f32 %v1347, %v1540
    %v1606 = vmul.f32 %v1352, %v1545
    %v1607 = vmul.f32 %v1357, %v1550
    %v1608 = vmul.f32 %v1362, %v1555
    %v1609 = vmul.f32 %v1367, %v1560
    %v1610 = vmul.f32 %v1372, %v1565
    %v1611 = vmul.f32 %v1377, %v1570
    %v1612 = vmul.f32 %v1382, %v1575
    %v1613 = vmul.f32 %v1387, %v1580
    %v1614 = vlaneseq
    %v1615 = vand.u32 %v1614, 127
    %v1616 = vld [vmem:[%s3] sm:$0xff]
    %v1617 = vld [vmem:[%s3 + $0x8] sm:$0xff]
    %v1618 = vld [vmem:[%s3 + $0x10] sm:$0xff]
    %v1619 = vld [vmem:[%s3 + $0x18] sm:$0xff]
    %v1620 = vld [vmem:[%s3 + $0x20] sm:$0xff]
    %v1621 = vld [vmem:[%s3 + $0x28] sm:$0xff]
    %v1622 = vld [vmem:[%s3 + $0x30] sm:$0xff]
    %v1623 = vld [vmem:[%s3 + $0x38] sm:$0xff]
    %v1624 = vld [vmem:[%s3 + $0x40] sm:$0xff]
    %v1625 = vld [vmem:[%s3 + $0x48] sm:$0xff]
    %v1626 = vld [vmem:[%s3 + $0x50] sm:$0xff]
    %v1627 = vld [vmem:[%s3 + $0x58] sm:$0xff]
    %v1628 = vld [vmem:[%s3 + $0x60] sm:$0xff]
    %v1629 = vld [vmem:[%s3 + $0x68] sm:$0xff]
    %v1630 = vld [vmem:[%s3 + $0x70] sm:$0xff]
    %v1631 = vld [vmem:[%s3 + $0x78] sm:$0xff]
    %v1632 = vld [vmem:[%s3 + $0x80] sm:$0xff]
    %v1633 = vld [vmem:[%s3 + $0x88] sm:$0xff]
    %v1634 = vld [vmem:[%s3 + $0x90] sm:$0xff]
    %v1635 = vld [vmem:[%s3 + $0x98] sm:$0xff]
    %v1636 = vld [vmem:[%s3 + $0xa0] sm:$0xff]
    %v1637 = vld [vmem:[%s3 + $0xa8] sm:$0xff]
    %v1638 = vld [vmem:[%s3 + $0xb0] sm:$0xff]
    %v1639 = vld [vmem:[%s3 + $0xb8] sm:$0xff]
    %v1640 = vld [vmem:[%s3 + $0xc0] sm:$0xff]
    %v1641 = vld [vmem:[%s3 + $0xc8] sm:$0xff]
    %v1642 = vld [vmem:[%s3 + $0xd0] sm:$0xff]
    %v1643 = vld [vmem:[%s3 + $0xd8] sm:$0xff]
    %v1644 = vld [vmem:[%s3 + $0xe0] sm:$0xff]
    %v1645 = vld [vmem:[%s3 + $0xe8] sm:$0xff]
    %v1646 = vld [vmem:[%s3 + $0xf0] sm:$0xff]
    %v1647 = vld [vmem:[%s3 + $0xf8] sm:$0xff]
    %1648 = vset.pattern.permute.xlu0 0
    %1649 = vperm.xlu0 %1648, %v1616
    %v1650 = vpop.permute.xlu0 %1649
    %1651 = vset.pattern.permute.xlu0 0
    %1652 = vperm.xlu0 %1651, %v1617
    %v1653 = vpop.permute.xlu0 %1652
    %1654 = vset.pattern.permute.xlu0 0
    %1655 = vperm.xlu0 %1654, %v1618
    %v1656 = vpop.permute.xlu0 %1655
    %1657 = vset.pattern.permute.xlu0 0
    %1658 = vperm.xlu0 %1657, %v1619
    %v1659 = vpop.permute.xlu0 %1658
    %1660 = vset.pattern.permute.xlu0 0
    %1661 = vperm.xlu0 %1660, %v1620
    %v1662 = vpop.permute.xlu0 %1661
    %1663 = vset.pattern.permute.xlu0 0
    %1664 = vperm.xlu0 %1663, %v1621
    %v1665 = vpop.permute.xlu0 %1664
    %1666 = vset.pattern.permute.xlu0 0
    %1667 = vperm.xlu0 %1666, %v1622
    %v1668 = vpop.permute.xlu0 %1667
    %1669 = vset.pattern.permute.xlu0 0
    %1670 = vperm.xlu0 %1669, %v1623
    %v1671 = vpop.permute.xlu0 %1670
    %1672 = vset.pattern.permute.xlu0 0
    %1673 = vperm.xlu0 %1672, %v1624
    %v1674 = vpop.permute.xlu0 %1673
    %1675 = vset.pattern.permute.xlu0 0
    %1676 = vperm.xlu0 %1675, %v1625
    %v1677 = vpop.permute.xlu0 %1676
    %1678 = vset.pattern.permute.xlu0 0
    %1679 = vperm.xlu0 %1678, %v1626
    %v1680 = vpop.permute.xlu0 %1679
    %1681 = vset.pattern.permute.xlu0 0
    %1682 = vperm.xlu0 %1681, %v1627
    %v1683 = vpop.permute.xlu0 %1682
    %1684 = vset.pattern.permute.xlu0 0
    %1685 = vperm.xlu0 %1684, %v1628
    %v1686 = vpop.permute.xlu0 %1685
    %1687 = vset.pattern.permute.xlu0 0
    %1688 = vperm.xlu0 %1687, %v1629
    %v1689 = vpop.permute.xlu0 %1688
    %1690 = vset.pattern.permute.xlu0 0
    %1691 = vperm.xlu0 %1690, %v1630
    %v1692 = vpop.permute.xlu0 %1691
    %1693 = vset.pattern.permute.xlu0 0
    %1694 = vperm.xlu0 %1693, %v1631
    %v1695 = vpop.permute.xlu0 %1694
    %1696 = vset.pattern.permute.xlu0 0
    %1697 = vperm.xlu0 %1696, %v1632
    %v1698 = vpop.permute.xlu0 %1697
    %1699 = vset.pattern.permute.xlu0 0
    %1700 = vperm.xlu0 %1699, %v1633
    %v1701 = vpop.permute.xlu0 %1700
    %1702 = vset.pattern.permute.xlu0 0
    %1703 = vperm.xlu0 %1702, %v1634
    %v1704 = vpop.permute.xlu0 %1703
    %1705 = vset.pattern.permute.xlu0 0
    %1706 = vperm.xlu0 %1705, %v1635
    %v1707 = vpop.permute.xlu0 %1706
    %1708 = vset.pattern.permute.xlu0 0
    %1709 = vperm.xlu0 %1708, %v1636
    %v1710 = vpop.permute.xlu0 %1709
    %1711 = vset.pattern.permute.xlu0 0
    %1712 = vperm.xlu0 %1711, %v1637
    %v1713 = vpop.permute.xlu0 %1712
    %1714 = vset.pattern.permute.xlu0 0
    %1715 = vperm.xlu0 %1714, %v1638
    %v1716 = vpop.permute.xlu0 %1715
    %1717 = vset.pattern.permute.xlu0 0
    %1718 = vperm.xlu0 %1717, %v1639
    %v1719 = vpop.permute.xlu0 %1718
    %1720 = vset.pattern.permute.xlu0 0
    %1721 = vperm.xlu0 %1720, %v1640
    %v1722 = vpop.permute.xlu0 %1721
    %1723 = vset.pattern.permute.xlu0 0
    %1724 = vperm.xlu0 %1723, %v1641
    %v1725 = vpop.permute.xlu0 %1724
    %1726 = vset.pattern.permute.xlu0 0
    %1727 = vperm.xlu0 %1726, %v1642
    %v1728 = vpop.permute.xlu0 %1727
    %1729 = vset.pattern.permute.xlu0 0
    %1730 = vperm.xlu0 %1729, %v1643
    %v1731 = vpop.permute.xlu0 %1730
    %1732 = vset.pattern.permute.xlu0 0
    %1733 = vperm.xlu0 %1732, %v1644
    %v1734 = vpop.permute.xlu0 %1733
    %1735 = vset.pattern.permute.xlu0 0
    %1736 = vperm.xlu0 %1735, %v1645
    %v1737 = vpop.permute.xlu0 %1736
    %1738 = vset.pattern.permute.xlu0 0
    %1739 = vperm.xlu0 %1738, %v1646
    %v1740 = vpop.permute.xlu0 %1739
    %1741 = vset.pattern.permute.xlu0 0
    %1742 = vperm.xlu0 %1741, %v1647
    %v1743 = vpop.permute.xlu0 %1742
    %vm1744 = vcmp.eq.s32.totalorder %v1615, %v1650
    %vm1745 = vcmp.eq.s32.totalorder %v1615, %v1653
    %vm1746 = vcmp.eq.s32.totalorder %v1615, %v1656
    %vm1747 = vcmp.eq.s32.totalorder %v1615, %v1659
    %vm1748 = vcmp.eq.s32.totalorder %v1615, %v1662
    %vm1749 = vcmp.eq.s32.totalorder %v1615, %v1665
    %vm1750 = vcmp.eq.s32.totalorder %v1615, %v1668
    %vm1751 = vcmp.eq.s32.totalorder %v1615, %v1671
    %vm1752 = vcmp.eq.s32.totalorder %v1615, %v1674
    %vm1753 = vcmp.eq.s32.totalorder %v1615, %v1677
    %vm1754 = vcmp.eq.s32.totalorder %v1615, %v1680
    %vm1755 = vcmp.eq.s32.totalorder %v1615, %v1683
    %vm1756 = vcmp.eq.s32.totalorder %v1615, %v1686
    %vm1757 = vcmp.eq.s32.totalorder %v1615, %v1689
    %vm1758 = vcmp.eq.s32.totalorder %v1615, %v1692
    %vm1759 = vcmp.eq.s32.totalorder %v1615, %v1695
    %vm1760 = vcmp.eq.s32.totalorder %v1615, %v1698
    %vm1761 = vcmp.eq.s32.totalorder %v1615, %v1701
    %vm1762 = vcmp.eq.s32.totalorder %v1615, %v1704
    %vm1763 = vcmp.eq.s32.totalorder %v1615, %v1707
    %vm1764 = vcmp.eq.s32.totalorder %v1615, %v1710
    %vm1765 = vcmp.eq.s32.totalorder %v1615, %v1713
    %vm1766 = vcmp.eq.s32.totalorder %v1615, %v1716
    %vm1767 = vcmp.eq.s32.totalorder %v1615, %v1719
    %vm1768 = vcmp.eq.s32.totalorder %v1615, %v1722
    %vm1769 = vcmp.eq.s32.totalorder %v1615, %v1725
    %vm1770 = vcmp.eq.s32.totalorder %v1615, %v1728
    %vm1771 = vcmp.eq.s32.totalorder %v1615, %v1731
    %vm1772 = vcmp.eq.s32.totalorder %v1615, %v1734
    %vm1773 = vcmp.eq.s32.totalorder %v1615, %v1737
    %vm1774 = vcmp.eq.s32.totalorder %v1615, %v1740
    %vm1775 = vcmp.eq.s32.totalorder %v1615, %v1743
    %v1776 = vsel %vm1744, 1, 0
    %v1777 = vsel %vm1745, 1, 0
    %v1778 = vsel %vm1746, 1, 0
    %v1779 = vsel %vm1747, 1, 0
    %v1780 = vsel %vm1748, 1, 0
    %v1781 = vsel %vm1749, 1, 0
    %v1782 = vsel %vm1750, 1, 0
    %v1783 = vsel %vm1751, 1, 0
    %v1784 = vsel %vm1752, 1, 0
    %v1785 = vsel %vm1753, 1, 0
    %v1786 = vsel %vm1754, 1, 0
    %v1787 = vsel %vm1755, 1, 0
    %v1788 = vsel %vm1756, 1, 0
    %v1789 = vsel %vm1757, 1, 0
    %v1790 = vsel %vm1758, 1, 0
    %v1791 = vsel %vm1759, 1, 0
    %v1792 = vsel %vm1760, 1, 0
    %v1793 = vsel %vm1761, 1, 0
    %v1794 = vsel %vm1762, 1, 0
    %v1795 = vsel %vm1763, 1, 0
    %v1796 = vsel %vm1764, 1, 0
    %v1797 = vsel %vm1765, 1, 0
    %v1798 = vsel %vm1766, 1, 0
    %v1799 = vsel %vm1767, 1, 0
    %v1800 = vsel %vm1768, 1, 0
    %v1801 = vsel %vm1769, 1, 0
    %v1802 = vsel %vm1770, 1, 0
    %v1803 = vsel %vm1771, 1, 0
    %v1804 = vsel %vm1772, 1, 0
    %v1805 = vsel %vm1773, 1, 0
    %v1806 = vsel %vm1774, 1, 0
    %v1807 = vsel %vm1775, 1, 0
    %v1808 = vcvt.s32.f32 %v1776
    %v1809 = vcvt.s32.f32 %v1777
    %v1810 = vcvt.s32.f32 %v1778
    %v1811 = vcvt.s32.f32 %v1779
    %v1812 = vcvt.s32.f32 %v1780
    %v1813 = vcvt.s32.f32 %v1781
    %v1814 = vcvt.s32.f32 %v1782
    %v1815 = vcvt.s32.f32 %v1783
    %v1816 = vcvt.s32.f32 %v1784
    %v1817 = vcvt.s32.f32 %v1785
    %v1818 = vcvt.s32.f32 %v1786
    %v1819 = vcvt.s32.f32 %v1787
    %v1820 = vcvt.s32.f32 %v1788
    %v1821 = vcvt.s32.f32 %v1789
    %v1822 = vcvt.s32.f32 %v1790
    %v1823 = vcvt.s32.f32 %v1791
    %v1824 = vcvt.s32.f32 %v1792
    %v1825 = vcvt.s32.f32 %v1793
    %v1826 = vcvt.s32.f32 %v1794
    %v1827 = vcvt.s32.f32 %v1795
    %v1828 = vcvt.s32.f32 %v1796
    %v1829 = vcvt.s32.f32 %v1797
    %v1830 = vcvt.s32.f32 %v1798
    %v1831 = vcvt.s32.f32 %v1799
    %v1832 = vcvt.s32.f32 %v1800
    %v1833 = vcvt.s32.f32 %v1801
    %v1834 = vcvt.s32.f32 %v1802
    %v1835 = vcvt.s32.f32 %v1803
    %v1836 = vcvt.s32.f32 %v1804
    %v1837 = vcvt.s32.f32 %v1805
    %v1838 = vcvt.s32.f32 %v1806
    %v1839 = vcvt.s32.f32 %v1807
    %v1840 = vld [vmem:[#allocation2] sm:$0xff]
    %v1841 = vld [vmem:[#allocation2 + $0x8] sm:$0xff]
    %v1842 = vld [vmem:[#allocation2 + $0x10] sm:$0xff]
    %v1843 = vld [vmem:[#allocation2 + $0x18] sm:$0xff]
    %v1844 = vld [vmem:[#allocation2 + $0x20] sm:$0xff]
    %v1845 = vld [vmem:[#allocation2 + $0x28] sm:$0xff]
    %v1846 = vld [vmem:[#allocation2 + $0x30] sm:$0xff]
    %v1847 = vld [vmem:[#allocation2 + $0x38] sm:$0xff]
    %v1848 = vld [vmem:[#allocation2 + $0x40] sm:$0xff]
    %v1849 = vld [vmem:[#allocation2 + $0x48] sm:$0xff]
    %v1850 = vld [vmem:[#allocation2 + $0x50] sm:$0xff]
    %v1851 = vld [vmem:[#allocation2 + $0x58] sm:$0xff]
    %v1852 = vld [vmem:[#allocation2 + $0x60] sm:$0xff]
    %v1853 = vld [vmem:[#allocation2 + $0x68] sm:$0xff]
    %v1854 = vld [vmem:[#allocation2 + $0x70] sm:$0xff]
    %v1855 = vld [vmem:[#allocation2 + $0x78] sm:$0xff]
    %1856 = vmatprep.subr.mxu0 0.0
    %1857 = vmatpush1.msra.mxu0 %v1840
    %1858 = vmatprep.subr.mxu0 0.0
    %1859 = vmatpush1.msra.mxu0 %v1841
    %1860 = vmatprep.subr.mxu0 0.0
    %1861 = vmatpush1.msra.mxu0 %v1842
    %1862 = vmatprep.subr.mxu0 0.0
    %1863 = vmatpush1.msra.mxu0 %v1843
    %1864 = vmatprep.subr.mxu0 0.0
    %1865 = vmatpush1.msra.mxu0 %v1844
    %1866 = vmatprep.subr.mxu0 0.0
    %1867 = vmatpush1.msra.mxu0 %v1845
    %1868 = vmatprep.subr.mxu0 0.0
    %1869 = vmatpush1.msra.mxu0 %v1846
    %1870 = vmatprep.subr.mxu0 0.0
    %1871 = vmatpush1.msra.mxu0 %v1847
    %1872 = vmatprep.subr.mxu0 0.0
    %1873 = vmatpush1.msra.mxu0 %v1848
    %1874 = vmatprep.subr.mxu0 0.0
    %1875 = vmatpush1.msra.mxu0 %v1849
    %1876 = vmatprep.subr.mxu0 0.0
    %1877 = vmatpush1.msra.mxu0 %v1850
    %1878 = vmatprep.subr.mxu0 0.0
    %1879 = vmatpush1.msra.mxu0 %v1851
    %1880 = vmatprep.subr.mxu0 0.0
    %1881 = vmatpush1.msra.mxu0 %v1852
    %1882 = vmatprep.subr.mxu0 0.0
    %1883 = vmatpush1.msra.mxu0 %v1853
    %1884 = vmatprep.subr.mxu0 0.0
    %1885 = vmatpush1.msra.mxu0 %v1854
    %1886 = vmatprep.subr.mxu0 0.0
    %1887 = vmatpush1.msra.mxu0 %v1855
    %1888 = vmatprep.subr.mxu0 0.0
    %1889 = vmatpush1.msra.mxu0 0.0
    %1890 = vmatprep.subr.mxu0 0.0
    %1891 = vmatpush1.msra.mxu0 0.0
    %1892 = vmatprep.subr.mxu0 0.0
    %1893 = vmatpush1.msra.mxu0 0.0
    %1894 = vmatprep.subr.mxu0 0.0
    %1895 = vmatpush1.msra.mxu0 0.0
    %1896 = vmatprep.subr.mxu0 0.0
    %1897 = vmatpush1.msra.mxu0 0.0
    %1898 = vmatprep.subr.mxu0 0.0
    %1899 = vmatpush1.msra.mxu0 0.0
    %1900 = vmatprep.subr.mxu0 0.0
    %1901 = vmatpush1.msra.mxu0 0.0
    %1902 = vmatprep.subr.mxu0 0.0
    %1903 = vmatpush1.msra.mxu0 0.0
    %1904 = vmatprep.subr.mxu0 0.0
    %1905 = vmatpush1.msra.mxu0 0.0
    %1906 = vmatprep.subr.mxu0 0.0
    %1907 = vmatpush1.msra.mxu0 0.0
    %1908 = vmatprep.subr.mxu0 0.0
    %1909 = vmatpush1.msra.mxu0 0.0
    %1910 = vmatprep.subr.mxu0 0.0
    %1911 = vmatpush1.msra.mxu0 0.0
    %1912 = vmatprep.subr.mxu0 0.0
    %1913 = vmatpush1.msra.mxu0 0.0
    %1914 = vmatprep.subr.mxu0 0.0
    %1915 = vmatpush1.msra.mxu0 0.0
    %1916 = vmatprep.subr.mxu0 0.0
    %1917 = vmatpush1.msra.mxu0 0.0
    %1918 = vmatprep.subr.mxu0 0.0
    %1919 = vmatpush1.msra.mxu0 0.0
    %1920 = vmatprep.mubr.f32.mxu0 0.0
    %1921 = vmatmul.mubr.f32.gmra.mrb[0].mxu0 %v1808
    %v1922 = vpop.f32.mrb[0].mxu0
    %v1923 = vadd.f32 0.0, %v1922
    %v1924 = vpop.f32.mrb[0].mxu0
    %1925 = vmatprep.mubr.f32.mxu0 0.0
    %1926 = vmatmul.mubr.f32.gmra.mrb[0].mxu0 %v1809
    %v1927 = vpop.f32.mrb[0].mxu0
    %v1928 = vadd.f32 0.0, %v1927
    %v1929 = vpop.f32.mrb[0].mxu0
    %1930 = vmatprep.mubr.f32.mxu0 0.0
    %1931 = vmatmul.mubr.f32.gmra.mrb[0].mxu0 %v1810
    %v1932 = vpop.f32.mrb[0].mxu0
    %v1933 = vadd.f32 0.0, %v1932
    %v1934 = vpop.f32.mrb[0].mxu0
    %1935 = vmatprep.mubr.f32.mxu0 0.0
    %1936 = vmatmul.mubr.f32.gmra.mrb[0].mxu0 %v1811
    %v1937 = vpop.f32.mrb[0].mxu0
    %v1938 = vadd.f32 0.0, %v1937
    %v1939 = vpop.f32.mrb[0].mxu0
    %1940 = vmatprep.mubr.f32.mxu0 0.0
    %1941 = vmatmul.mubr.f32.gmra.mrb[0].mxu0 %v1812
    %v1942 = vpop.f32.mrb[0].mxu0
    %v1943 = vadd.f32 0.0, %v1942
    %v1944 = vpop.f32.mrb[0].mxu0
    %1945 = vmatprep.mubr.f32.mxu0 0.0
    %1946 = vmatmul.mubr.f32.gmra.mrb[0].mxu0 %v1813
    %v1947 = vpop.f32.mrb[0].mxu0
    %v1948 = vadd.f32 0.0, %v1947
    %v1949 = vpop.f32.mrb[0].mxu0
    %1950 = vmatprep.mubr.f32.mxu0 0.0
    %1951 = vmatmul.mubr.f32.gmra.mrb[0].mxu0 %v1814
    %v1952 = vpop.f32.mrb[0].mxu0
    %v1953 = vadd.f32 0.0, %v1952
    %v1954 = vpop.f32.mrb[0].mxu0
    %1955 = vmatprep.mubr.f32.mxu0 0.0
    %1956 = vmatmul.mubr.f32.gmra.mrb[0].mxu0 %v1815
    %v1957 = vpop.f32.mrb[0].mxu0
    %v1958 = vadd.f32 0.0, %v1957
    %v1959 = vpop.f32.mrb[0].mxu0
    %1960 = vmatprep.mubr.f32.mxu0 0.0
    %1961 = vmatmul.mubr.f32.gmra.mrb[0].mxu0 %v1816
    %v1962 = vpop.f32.mrb[0].mxu0
    %v1963 = vadd.f32 0.0, %v1962
    %v1964 = vpop.f32.mrb[0].mxu0
    %1965 = vmatprep.mubr.f32.mxu0 0.0
    %1966 = vmatmul.mubr.f32.gmra.mrb[0].mxu0 %v1817
    %v1967 = vpop.f32.mrb[0].mxu0
    %v1968 = vadd.f32 0.0, %v1967
    %v1969 = vpop.f32.mrb[0].mxu0
    %1970 = vmatprep.mubr.f32.mxu0 0.0
    %1971 = vmatmul.mubr.f32.gmra.mrb[0].mxu0 %v1818
    %v1972 = vpop.f32.mrb[0].mxu0
    %v1973 = vadd.f32 0.0, %v1972
    %v1974 = vpop.f32.mrb[0].mxu0
    %1975 = vmatprep.mubr.f32.mxu0 0.0
    %1976 = vmatmul.mubr.f32.gmra.mrb[0].mxu0 %v1819
    %v1977 = vpop.f32.mrb[0].mxu0
    %v1978 = vadd.f32 0.0, %v1977
    %v1979 = vpop.f32.mrb[0].mxu0
    %1980 = vmatprep.mubr.f32.mxu0 0.0
    %1981 = vmatmul.mubr.f32.gmra.mrb[0].mxu0 %v1820
    %v1982 = vpop.f32.mrb[0].mxu0
    %v1983 = vadd.f32 0.0, %v1982
    %v1984 = vpop.f32.mrb[0].mxu0
    %1985 = vmatprep.mubr.f32.mxu0 0.0
    %1986 = vmatmul.mubr.f32.gmra.mrb[0].mxu0 %v1821
    %v1987 = vpop.f32.mrb[0].mxu0
    %v1988 = vadd.f32 0.0, %v1987
    %v1989 = vpop.f32.mrb[0].mxu0
    %1990 = vmatprep.mubr.f32.mxu0 0.0
    %1991 = vmatmul.mubr.f32.gmra.mrb[0].mxu0 %v1822
    %v1992 = vpop.f32.mrb[0].mxu0
    %v1993 = vadd.f32 0.0, %v1992
    %v1994 = vpop.f32.mrb[0].mxu0
    %1995 = vmatprep.mubr.f32.mxu0 0.0
    %1996 = vmatmul.mubr.f32.gmra.mrb[0].mxu0 %v1823
    %v1997 = vpop.f32.mrb[0].mxu0
    %v1998 = vadd.f32 0.0, %v1997
    %v1999 = vpop.f32.mrb[0].mxu0
    %2000 = vmatprep.mubr.f32.mxu0 0.0
    %2001 = vmatmul.mubr.f32.gmra.mrb[0].mxu0 %v1824
    %v2002 = vpop.f32.mrb[0].mxu0
    %v2003 = vadd.f32 0.0, %v2002
    %v2004 = vpop.f32.mrb[0].mxu0
    %2005 = vmatprep.mubr.f32.mxu0 0.0
    %2006 = vmatmul.mubr.f32.gmra.mrb[0].mxu0 %v1825
    %v2007 = vpop.f32.mrb[0].mxu0
    %v2008 = vadd.f32 0.0, %v2007
    %v2009 = vpop.f32.mrb[0].mxu0
    %2010 = vmatprep.mubr.f32.mxu0 0.0
    %2011 = vmatmul.mubr.f32.gmra.mrb[0].mxu0 %v1826
    %v2012 = vpop.f32.mrb[0].mxu0
    %v2013 = vadd.f32 0.0, %v2012
    %v2014 = vpop.f32.mrb[0].mxu0
    %2015 = vmatprep.mubr.f32.mxu0 0.0
    %2016 = vmatmul.mubr.f32.gmra.mrb[0].mxu0 %v1827
    %v2017 = vpop.f32.mrb[0].mxu0
    %v2018 = vadd.f32 0.0, %v2017
    %v2019 = vpop.f32.mrb[0].mxu0
    %2020 = vmatprep.mubr.f32.mxu0 0.0
    %2021 = vmatmul.mubr.f32.gmra.mrb[0].mxu0 %v1828
    %v2022 = vpop.f32.mrb[0].mxu0
    %v2023 = vadd.f32 0.0, %v2022
    %v2024 = vpop.f32.mrb[0].mxu0
    %2025 = vmatprep.mubr.f32.mxu0 0.0
    %2026 = vmatmul.mubr.f32.gmra.mrb[0].mxu0 %v1829
    %v2027 = vpop.f32.mrb[0].mxu0
    %v2028 = vadd.f32 0.0, %v2027
    %v2029 = vpop.f32.mrb[0].mxu0
    %2030 = vmatprep.mubr.f32.mxu0 0.0
    %2031 = vmatmul.mubr.f32.gmra.mrb[0].mxu0 %v1830
    %v2032 = vpop.f32.mrb[0].mxu0
    %v2033 = vadd.f32 0.0, %v2032
    %v2034 = vpop.f32.mrb[0].mxu0
    %2035 = vmatprep.mubr.f32.mxu0 0.0
    %2036 = vmatmul.mubr.f32.gmra.mrb[0].mxu0 %v1831
    %v2037 = vpop.f32.mrb[0].mxu0
    %v2038 = vadd.f32 0.0, %v2037
    %v2039 = vpop.f32.mrb[0].mxu0
    %2040 = vmatprep.mubr.f32.mxu0 0.0
    %2041 = vmatmul.mubr.f32.gmra.mrb[0].mxu0 %v1832
    %v2042 = vpop.f32.mrb[0].mxu0
    %v2043 = vadd.f32 0.0, %v2042
    %v2044 = vpop.f32.mrb[0].mxu0
    %2045 = vmatprep.mubr.f32.mxu0 0.0
    %2046 = vmatmul.mubr.f32.gmra.mrb[0].mxu0 %v1833
    %v2047 = vpop.f32.mrb[0].mxu0
    %v2048 = vadd.f32 0.0, %v2047
    %v2049 = vpop.f32.mrb[0].mxu0
    %2050 = vmatprep.mubr.f32.mxu0 0.0
    %2051 = vmatmul.mubr.f32.gmra.mrb[0].mxu0 %v1834
    %v2052 = vpop.f32.mrb[0].mxu0
    %v2053 = vadd.f32 0.0, %v2052
    %v2054 = vpop.f32.mrb[0].mxu0
    %2055 = vmatprep.mubr.f32.mxu0 0.0
    %2056 = vmatmul.mubr.f32.gmra.mrb[0].mxu0 %v1835
    %v2057 = vpop.f32.mrb[0].mxu0
    %v2058 = vadd.f32 0.0, %v2057
    %v2059 = vpop.f32.mrb[0].mxu0
    %2060 = vmatprep.mubr.f32.mxu0 0.0
    %2061 = vmatmul.mubr.f32.gmra.mrb[0].mxu0 %v1836
    %v2062 = vpop.f32.mrb[0].mxu0
    %v2063 = vadd.f32 0.0, %v2062
    %v2064 = vpop.f32.mrb[0].mxu0
    %2065 = vmatprep.mubr.f32.mxu0 0.0
    %2066 = vmatmul.mubr.f32.gmra.mrb[0].mxu0 %v1837
    %v2067 = vpop.f32.mrb[0].mxu0
    %v2068 = vadd.f32 0.0, %v2067
    %v2069 = vpop.f32.mrb[0].mxu0
    %2070 = vmatprep.mubr.f32.mxu0 0.0
    %2071 = vmatmul.mubr.f32.gmra.mrb[0].mxu0 %v1838
    %v2072 = vpop.f32.mrb[0].mxu0
    %v2073 = vadd.f32 0.0, %v2072
    %v2074 = vpop.f32.mrb[0].mxu0
    %2075 = vmatprep.mubr.f32.mxu0 0.0
    %2076 = vmatmul.mubr.f32.gmra.mrb[0].mxu0 %v1839
    %v2077 = vpop.f32.mrb[0].mxu0
    %v2078 = vadd.f32 0.0, %v2077
    %v2079 = vpop.f32.mrb[0].mxu0
    %2080 = vdwg.mxu0
    %v2081 = vmul.f32 %v1923, %v1582
    %v2082 = vmul.f32 %v1928, %v1583
    %v2083 = vmul.f32 %v1933, %v1584
    %v2084 = vmul.f32 %v1938, %v1585
    %v2085 = vmul.f32 %v1943, %v1586
    %v2086 = vmul.f32 %v1948, %v1587
    %v2087 = vmul.f32 %v1953, %v1588
    %v2088 = vmul.f32 %v1958, %v1589
    %v2089 = vmul.f32 %v1963, %v1590
    %v2090 = vmul.f32 %v1968, %v1591
    %v2091 = vmul.f32 %v1973, %v1592
    %v2092 = vmul.f32 %v1978, %v1593
    %v2093 = vmul.f32 %v1983, %v1594
    %v2094 = vmul.f32 %v1988, %v1595
    %v2095 = vmul.f32 %v1993, %v1596
    %v2096 = vmul.f32 %v1998, %v1597
    %v2097 = vmul.f32 %v2003, %v1598
    %v2098 = vmul.f32 %v2008, %v1599
    %v2099 = vmul.f32 %v2013, %v1600
    %v2100 = vmul.f32 %v2018, %v1601
    %v2101 = vmul.f32 %v2023, %v1602
    %v2102 = vmul.f32 %v2028, %v1603
    %v2103 = vmul.f32 %v2033, %v1604
    %v2104 = vmul.f32 %v2038, %v1605
    %v2105 = vmul.f32 %v2043, %v1606
    %v2106 = vmul.f32 %v2048, %v1607
    %v2107 = vmul.f32 %v2053, %v1608
    %v2108 = vmul.f32 %v2058, %v1609
    %v2109 = vmul.f32 %v2063, %v1610
    %v2110 = vmul.f32 %v2068, %v1611
    %v2111 = vmul.f32 %v2073, %v1612
    %v2112 = vmul.f32 %v2078, %v1613
    %v2113 = vlaneseq
    %v2114 = vshrl.u32 %v2113, 7
    %v2115 = vadd.s32 %v2114, 8
    %v2116 = vadd.s32 %v2114, 16
    %v2117 = vadd.s32 %v2114, 24
    %v2118 = vadd.s32 %v2114, 32
    %v2119 = vadd.s32 %v2114, 40
    %v2120 = vadd.s32 %v2114, 48
    %v2121 = vadd.s32 %v2114, 56
    %v2122 = vadd.s32 %v2114, 64
    %v2123 = vadd.s32 %v2114, 72
    %v2124 = vadd.s32 %v2114, 80
    %v2125 = vadd.s32 %v2114, 88
    %v2126 = vadd.s32 %v2114, 96
    %v2127 = vadd.s32 %v2114, 104
    %v2128 = vadd.s32 %v2114, 112
    %v2129 = vadd.s32 %v2114, 120
    %s2130 = smul.u32 0, 128
    %v2131 = vstv %s2130
    %v2132 = vadd.s32 %v2114, %v2131
    %v2133 = vadd.s32 %v2115, %v2131
    %v2134 = vadd.s32 %v2116, %v2131
    %v2135 = vadd.s32 %v2117, %v2131
    %v2136 = vadd.s32 %v2118, %v2131
    %v2137 = vadd.s32 %v2119, %v2131
    %v2138 = vadd.s32 %v2120, %v2131
    %v2139 = vadd.s32 %v2121, %v2131
    %v2140 = vadd.s32 %v2122, %v2131
    %v2141 = vadd.s32 %v2123, %v2131
    %v2142 = vadd.s32 %v2124, %v2131
    %v2143 = vadd.s32 %v2125, %v2131
    %v2144 = vadd.s32 %v2126, %v2131
    %v2145 = vadd.s32 %v2127, %v2131
    %v2146 = vadd.s32 %v2128, %v2131
    %v2147 = vadd.s32 %v2129, %v2131
    %v2148 = vld [vmem:[%s4] sm:$0x3]
    %v2149 = vlaneseq
    %v2150 = vshrl.u32 %v2149, 7
    %v2151 = vsub.s32 0, %v2150
    %v2152 = vrot.slane %v2148, %v2151
    %v2153 = vlaneseq
    %v2154 = vshrl.u32 %v2153, 7
    %v2155 = vsub.s32 1, %v2154
    %v2156 = vrot.slane %v2148, %v2155
    %vm2157 = vcmp.eq.s32.totalorder %v2132, %v2152
    %vm2158 = vcmp.eq.s32.totalorder %v2132, %v2156
    %vm2159 = vcmp.eq.s32.totalorder %v2133, %v2152
    %vm2160 = vcmp.eq.s32.totalorder %v2133, %v2156
    %vm2161 = vcmp.eq.s32.totalorder %v2134, %v2152
    %vm2162 = vcmp.eq.s32.totalorder %v2134, %v2156
    %vm2163 = vcmp.eq.s32.totalorder %v2135, %v2152
    %vm2164 = vcmp.eq.s32.totalorder %v2135, %v2156
    %vm2165 = vcmp.eq.s32.totalorder %v2136, %v2152
    %vm2166 = vcmp.eq.s32.totalorder %v2136, %v2156
    %vm2167 = vcmp.eq.s32.totalorder %v2137, %v2152
    %vm2168 = vcmp.eq.s32.totalorder %v2137, %v2156
    %vm2169 = vcmp.eq.s32.totalorder %v2138, %v2152
    %vm2170 = vcmp.eq.s32.totalorder %v2138, %v2156
    %vm2171 = vcmp.eq.s32.totalorder %v2139, %v2152
    %vm2172 = vcmp.eq.s32.totalorder %v2139, %v2156
    %vm2173 = vcmp.eq.s32.totalorder %v2140, %v2152
    %vm2174 = vcmp.eq.s32.totalorder %v2140, %v2156
    %vm2175 = vcmp.eq.s32.totalorder %v2141, %v2152
    %vm2176 = vcmp.eq.s32.totalorder %v2141, %v2156
    %vm2177 = vcmp.eq.s32.totalorder %v2142, %v2152
    %vm2178 = vcmp.eq.s32.totalorder %v2142, %v2156
    %vm2179 = vcmp.eq.s32.totalorder %v2143, %v2152
    %vm2180 = vcmp.eq.s32.totalorder %v2143, %v2156
    %vm2181 = vcmp.eq.s32.totalorder %v2144, %v2152
    %vm2182 = vcmp.eq.s32.totalorder %v2144, %v2156
    %vm2183 = vcmp.eq.s32.totalorder %v2145, %v2152
    %vm2184 = vcmp.eq.s32.totalorder %v2145, %v2156
    %vm2185 = vcmp.eq.s32.totalorder %v2146, %v2152
    %vm2186 = vcmp.eq.s32.totalorder %v2146, %v2156
    %vm2187 = vcmp.eq.s32.totalorder %v2147, %v2152
    %vm2188 = vcmp.eq.s32.totalorder %v2147, %v2156
    %v2189 = vsel %vm2157, 1, 0
    %v2190 = vsel %vm2158, 1, 0
    %v2191 = vsel %vm2159, 1, 0
    %v2192 = vsel %vm2160, 1, 0
    %v2193 = vsel %vm2161, 1, 0
    %v2194 = vsel %vm2162, 1, 0
    %v2195 = vsel %vm2163, 1, 0
    %v2196 = vsel %vm2164, 1, 0
    %v2197 = vsel %vm2165, 1, 0
    %v2198 = vsel %vm2166, 1, 0
    %v2199 = vsel %vm2167, 1, 0
    %v2200 = vsel %vm2168, 1, 0
    %v2201 = vsel %vm2169, 1, 0
    %v2202 = vsel %vm2170, 1, 0
    %v2203 = vsel %vm2171, 1, 0
    %v2204 = vsel %vm2172, 1, 0
    %v2205 = vsel %vm2173, 1, 0
    %v2206 = vsel %vm2174, 1, 0
    %v2207 = vsel %vm2175, 1, 0
    %v2208 = vsel %vm2176, 1, 0
    %v2209 = vsel %vm2177, 1, 0
    %v2210 = vsel %vm2178, 1, 0
    %v2211 = vsel %vm2179, 1, 0
    %v2212 = vsel %vm2180, 1, 0
    %v2213 = vsel %vm2181, 1, 0
    %v2214 = vsel %vm2182, 1, 0
    %v2215 = vsel %vm2183, 1, 0
    %v2216 = vsel %vm2184, 1, 0
    %v2217 = vsel %vm2185, 1, 0
    %v2218 = vsel %vm2186, 1, 0
    %v2219 = vsel %vm2187, 1, 0
    %v2220 = vsel %vm2188, 1, 0
    %v2221 = vcvt.s32.f32 %v2189
    %v2222 = vcvt.s32.f32 %v2190
    %v2223 = vcvt.s32.f32 %v2191
    %v2224 = vcvt.s32.f32 %v2192
    %v2225 = vcvt.s32.f32 %v2193
    %v2226 = vcvt.s32.f32 %v2194
    %v2227 = vcvt.s32.f32 %v2195
    %v2228 = vcvt.s32.f32 %v2196
    %v2229 = vcvt.s32.f32 %v2197
    %v2230 = vcvt.s32.f32 %v2198
    %v2231 = vcvt.s32.f32 %v2199
    %v2232 = vcvt.s32.f32 %v2200
    %v2233 = vcvt.s32.f32 %v2201
    %v2234 = vcvt.s32.f32 %v2202
    %v2235 = vcvt.s32.f32 %v2203
    %v2236 = vcvt.s32.f32 %v2204
    %v2237 = vcvt.s32.f32 %v2205
    %v2238 = vcvt.s32.f32 %v2206
    %v2239 = vcvt.s32.f32 %v2207
    %v2240 = vcvt.s32.f32 %v2208
    %v2241 = vcvt.s32.f32 %v2209
    %v2242 = vcvt.s32.f32 %v2210
    %v2243 = vcvt.s32.f32 %v2211
    %v2244 = vcvt.s32.f32 %v2212
    %v2245 = vcvt.s32.f32 %v2213
    %v2246 = vcvt.s32.f32 %v2214
    %v2247 = vcvt.s32.f32 %v2215
    %v2248 = vcvt.s32.f32 %v2216
    %v2249 = vcvt.s32.f32 %v2217
    %v2250 = vcvt.s32.f32 %v2218
    %v2251 = vcvt.s32.f32 %v2219
    %v2252 = vcvt.s32.f32 %v2220
    %v2253 = vld [vmem:[#allocation3] sm:$0xff]
    %v2254 = vld [vmem:[#allocation3 + $0x8] sm:$0xff]
    %v2255 = vld [vmem:[#allocation3 + $0x10] sm:$0xff]
    %v2256 = vld [vmem:[#allocation3 + $0x18] sm:$0xff]
    %v2257 = vld [vmem:[#allocation3 + $0x20] sm:$0xff]
    %v2258 = vld [vmem:[#allocation3 + $0x28] sm:$0xff]
    %v2259 = vld [vmem:[#allocation3 + $0x30] sm:$0xff]
    %v2260 = vld [vmem:[#allocation3 + $0x38] sm:$0xff]
    %v2261 = vld [vmem:[#allocation3 + $0x40] sm:$0xff]
    %v2262 = vld [vmem:[#allocation3 + $0x48] sm:$0xff]
    %v2263 = vld [vmem:[#allocation3 + $0x50] sm:$0xff]
    %v2264 = vld [vmem:[#allocation3 + $0x58] sm:$0xff]
    %v2265 = vld [vmem:[#allocation3 + $0x60] sm:$0xff]
    %v2266 = vld [vmem:[#allocation3 + $0x68] sm:$0xff]
    %v2267 = vld [vmem:[#allocation3 + $0x70] sm:$0xff]
    %v2268 = vld [vmem:[#allocation3 + $0x78] sm:$0xff]
    %2269 = vmatprep.subr.mxu0 0.0
    %2270 = vmatpush1.msra.mxu0 %v2081
    %2271 = vmatprep.subr.mxu0 0.0
    %2272 = vmatpush1.msra.mxu0 %v2082
    %2273 = vmatprep.subr.mxu0 0.0
    %2274 = vmatpush1.msra.mxu0 %v2083
    %2275 = vmatprep.subr.mxu0 0.0
    %2276 = vmatpush1.msra.mxu0 %v2084
    %2277 = vmatprep.subr.mxu0 0.0
    %2278 = vmatpush1.msra.mxu0 %v2085
    %2279 = vmatprep.subr.mxu0 0.0
    %2280 = vmatpush1.msra.mxu0 %v2086
    %2281 = vmatprep.subr.mxu0 0.0
    %2282 = vmatpush1.msra.mxu0 %v2087
    %2283 = vmatprep.subr.mxu0 0.0
    %2284 = vmatpush1.msra.mxu0 %v2088
    %2285 = vmatprep.subr.mxu0 0.0
    %2286 = vmatpush1.msra.mxu0 %v2089
    %2287 = vmatprep.subr.mxu0 0.0
    %2288 = vmatpush1.msra.mxu0 %v2090
    %2289 = vmatprep.subr.mxu0 0.0
    %2290 = vmatpush1.msra.mxu0 %v2091
    %2291 = vmatprep.subr.mxu0 0.0
    %2292 = vmatpush1.msra.mxu0 %v2092
    %2293 = vmatprep.subr.mxu0 0.0
    %2294 = vmatpush1.msra.mxu0 %v2093
    %2295 = vmatprep.subr.mxu0 0.0
    %2296 = vmatpush1.msra.mxu0 %v2094
    %2297 = vmatprep.subr.mxu0 0.0
    %2298 = vmatpush1.msra.mxu0 %v2095
    %2299 = vmatprep.subr.mxu0 0.0
    %2300 = vmatpush1.msra.mxu0 %v2096
    %2301 = vmatprep.subr.mxu0 0.0
    %2302 = vmatpush1.msra.mxu0 %v2097
    %2303 = vmatprep.subr.mxu0 0.0
    %2304 = vmatpush1.msra.mxu0 %v2098
    %2305 = vmatprep.subr.mxu0 0.0
    %2306 = vmatpush1.msra.mxu0 %v2099
    %2307 = vmatprep.subr.mxu0 0.0
    %2308 = vmatpush1.msra.mxu0 %v2100
    %2309 = vmatprep.subr.mxu0 0.0
    %2310 = vmatpush1.msra.mxu0 %v2101
    %2311 = vmatprep.subr.mxu0 0.0
    %2312 = vmatpush1.msra.mxu0 %v2102
    %2313 = vmatprep.subr.mxu0 0.0
    %2314 = vmatpush1.msra.mxu0 %v2103
    %2315 = vmatprep.subr.mxu0 0.0
    %2316 = vmatpush1.msra.mxu0 %v2104
    %2317 = vmatprep.subr.mxu0 0.0
    %2318 = vmatpush1.msra.mxu0 %v2105
    %2319 = vmatprep.subr.mxu0 0.0
    %2320 = vmatpush1.msra.mxu0 %v2106
    %2321 = vmatprep.subr.mxu0 0.0
    %2322 = vmatpush1.msra.mxu0 %v2107
    %2323 = vmatprep.subr.mxu0 0.0
    %2324 = vmatpush1.msra.mxu0 %v2108
    %2325 = vmatprep.subr.mxu0 0.0
    %2326 = vmatpush1.msra.mxu0 %v2109
    %2327 = vmatprep.subr.mxu0 0.0
    %2328 = vmatpush1.msra.mxu0 %v2110
    %2329 = vmatprep.subr.mxu0 0.0
    %2330 = vmatpush1.msra.mxu0 %v2111
    %2331 = vmatprep.subr.mxu0 0.0
    %2332 = vmatpush1.msra.mxu0 %v2112
    %2333 = vmatprep.mubr.f32.mxu0 %v2222
    %2334 = vmatmul.mubr.f32.gmra.mrb[0].mxu0 %v2221
    %v2335 = vpop.f32.mrb[0].mxu0
    %v2336 = vadd.f32 0.0, %v2335
    %v2337 = vpop.f32.mrb[0].mxu0
    %2338 = vmatprep.mubr.f32.mxu0 %v2224
    %2339 = vmatmul.mubr.f32.gmra.mrb[0].mxu0 %v2223
    %v2340 = vpop.f32.mrb[0].mxu0
    %v2341 = vadd.f32 0.0, %v2340
    %v2342 = vpop.f32.mrb[0].mxu0
    %2343 = vmatprep.mubr.f32.mxu0 %v2226
    %2344 = vmatmul.mubr.f32.gmra.mrb[0].mxu0 %v2225
    %v2345 = vpop.f32.mrb[0].mxu0
    %v2346 = vadd.f32 0.0, %v2345
    %v2347 = vpop.f32.mrb[0].mxu0
    %2348 = vmatprep.mubr.f32.mxu0 %v2228
    %2349 = vmatmul.mubr.f32.gmra.mrb[0].mxu0 %v2227
    %v2350 = vpop.f32.mrb[0].mxu0
    %v2351 = vadd.f32 0.0, %v2350
    %v2352 = vpop.f32.mrb[0].mxu0
    %2353 = vmatprep.mubr.f32.mxu0 %v2230
    %2354 = vmatmul.mubr.f32.gmra.mrb[0].mxu0 %v2229
    %v2355 = vpop.f32.mrb[0].mxu0
    %v2356 = vadd.f32 0.0, %v2355
    %v2357 = vpop.f32.mrb[0].mxu0
    %2358 = vmatprep.mubr.f32.mxu0 %v2232
    %2359 = vmatmul.mubr.f32.gmra.mrb[0].mxu0 %v2231
    %v2360 = vpop.f32.mrb[0].mxu0
    %v2361 = vadd.f32 0.0, %v2360
    %v2362 = vpop.f32.mrb[0].mxu0
    %2363 = vmatprep.mubr.f32.mxu0 %v2234
    %2364 = vmatmul.mubr.f32.gmra.mrb[0].mxu0 %v2233
    %v2365 = vpop.f32.mrb[0].mxu0
    %v2366 = vadd.f32 0.0, %v2365
    %v2367 = vpop.f32.mrb[0].mxu0
    %2368 = vmatprep.mubr.f32.mxu0 %v2236
    %2369 = vmatmul.mubr.f32.gmra.mrb[0].mxu0 %v2235
    %v2370 = vpop.f32.mrb[0].mxu0
    %v2371 = vadd.f32 0.0, %v2370
    %v2372 = vpop.f32.mrb[0].mxu0
    %2373 = vmatprep.mubr.f32.mxu0 %v2238
    %2374 = vmatmul.mubr.f32.gmra.mrb[0].mxu0 %v2237
    %v2375 = vpop.f32.mrb[0].mxu0
    %v2376 = vadd.f32 0.0, %v2375
    %v2377 = vpop.f32.mrb[0].mxu0
    %2378 = vmatprep.mubr.f32.mxu0 %v2240
    %2379 = vmatmul.mubr.f32.gmra.mrb[0].mxu0 %v2239
    %v2380 = vpop.f32.mrb[0].mxu0
    %v2381 = vadd.f32 0.0, %v2380
    %v2382 = vpop.f32.mrb[0].mxu0
    %2383 = vmatprep.mubr.f32.mxu0 %v2242
    %2384 = vmatmul.mubr.f32.gmra.mrb[0].mxu0 %v2241
    %v2385 = vpop.f32.mrb[0].mxu0
    %v2386 = vadd.f32 0.0, %v2385
    %v2387 = vpop.f32.mrb[0].mxu0
    %2388 = vmatprep.mubr.f32.mxu0 %v2244
    %2389 = vmatmul.mubr.f32.gmra.mrb[0].mxu0 %v2243
    %v2390 = vpop.f32.mrb[0].mxu0
    %v2391 = vadd.f32 0.0, %v2390
    %v2392 = vpop.f32.mrb[0].mxu0
    %2393 = vmatprep.mubr.f32.mxu0 %v2246
    %2394 = vmatmul.mubr.f32.gmra.mrb[0].mxu0 %v2245
    %v2395 = vpop.f32.mrb[0].mxu0
    %v2396 = vadd.f32 0.0, %v2395
    %v2397 = vpop.f32.mrb[0].mxu0
    %2398 = vmatprep.mubr.f32.mxu0 %v2248
    %2399 = vmatmul.mubr.f32.gmra.mrb[0].mxu0 %v2247
    %v2400 = vpop.f32.mrb[0].mxu0
    %v2401 = vadd.f32 0.0, %v2400
    %v2402 = vpop.f32.mrb[0].mxu0
    %2403 = vmatprep.mubr.f32.mxu0 %v2250
    %2404 = vmatmul.mubr.f32.gmra.mrb[0].mxu0 %v2249
    %v2405 = vpop.f32.mrb[0].mxu0
    %v2406 = vadd.f32 0.0, %v2405
    %v2407 = vpop.f32.mrb[0].mxu0
    %2408 = vmatprep.mubr.f32.mxu0 %v2252
    %2409 = vmatmul.mubr.f32.gmra.mrb[0].mxu0 %v2251
    %v2410 = vpop.f32.mrb[0].mxu0
    %v2411 = vadd.f32 0.0, %v2410
    %v2412 = vpop.f32.mrb[0].mxu0
    %2413 = vdwg.mxu0
    %v2414 = vadd.f32 %v2253, %v2336
    %v2415 = vadd.f32 %v2254, %v2341
    %v2416 = vadd.f32 %v2255, %v2346
    %v2417 = vadd.f32 %v2256, %v2351
    %v2418 = vadd.f32 %v2257, %v2356
    %v2419 = vadd.f32 %v2258, %v2361
    %v2420 = vadd.f32 %v2259, %v2366
    %v2421 = vadd.f32 %v2260, %v2371
    %v2422 = vadd.f32 %v2261, %v2376
    %v2423 = vadd.f32 %v2262, %v2381
    %v2424 = vadd.f32 %v2263, %v2386
    %v2425 = vadd.f32 %v2264, %v2391
    %v2426 = vadd.f32 %v2265, %v2396
    %v2427 = vadd.f32 %v2266, %v2401
    %v2428 = vadd.f32 %v2267, %v2406
    %v2429 = vadd.f32 %v2268, %v2411
    %2430 = vst [vmem:[#allocation3] sm:$0xff] %v2414
    %2431 = vst [vmem:[#allocation3 + $0x8] sm:$0xff] %v2415
    %2432 = vst [vmem:[#allocation3 + $0x10] sm:$0xff] %v2416
    %2433 = vst [vmem:[#allocation3 + $0x18] sm:$0xff] %v2417
    %2434 = vst [vmem:[#allocation3 + $0x20] sm:$0xff] %v2418
    %2435 = vst [vmem:[#allocation3 + $0x28] sm:$0xff] %v2419
    %2436 = vst [vmem:[#allocation3 + $0x30] sm:$0xff] %v2420
    %2437 = vst [vmem:[#allocation3 + $0x38] sm:$0xff] %v2421
    %2438 = vst [vmem:[#allocation3 + $0x40] sm:$0xff] %v2422
    %2439 = vst [vmem:[#allocation3 + $0x48] sm:$0xff] %v2423
    %2440 = vst [vmem:[#allocation3 + $0x50] sm:$0xff] %v2424
    %2441 = vst [vmem:[#allocation3 + $0x58] sm:$0xff] %v2425
    %2442 = vst [vmem:[#allocation3 + $0x60] sm:$0xff] %v2426
    %2443 = vst [vmem:[#allocation3 + $0x68] sm:$0xff] %v2427
    %2444 = vst [vmem:[#allocation3 + $0x70] sm:$0xff] %v2428
    %2445 = vst [vmem:[#allocation3 + $0x78] sm:$0xff] %v2429
    // Predicated region
    $region62: #{tpu_custom_call.1} parent=1 // pred_check
      %p2446 = pneg %p48
    $region63: #{tpu_custom_call.1} parent=1 // pred_check_branch
      %2448 = sbr.rel (%p2446) target = $region65
    $region64: #{tpu_custom_call.1} parent=1 // pred_region
      %v2449 = vld [vmem:[#allocation3] sm:$0xff]
      %v2450 = vld [vmem:[#allocation3 + $0x8] sm:$0xff]
      %v2451 = vld [vmem:[#allocation3 + $0x10] sm:$0xff]
      %v2452 = vld [vmem:[#allocation3 + $0x18] sm:$0xff]
      %v2453 = vld [vmem:[#allocation3 + $0x20] sm:$0xff]
      %v2454 = vld [vmem:[#allocation3 + $0x28] sm:$0xff]
      %v2455 = vld [vmem:[#allocation3 + $0x30] sm:$0xff]
      %v2456 = vld [vmem:[#allocation3 + $0x38] sm:$0xff]
      %v2457 = vld [vmem:[#allocation3 + $0x40] sm:$0xff]
      %v2458 = vld [vmem:[#allocation3 + $0x48] sm:$0xff]
      %v2459 = vld [vmem:[#allocation3 + $0x50] sm:$0xff]
      %v2460 = vld [vmem:[#allocation3 + $0x58] sm:$0xff]
      %v2461 = vld [vmem:[#allocation3 + $0x60] sm:$0xff]
      %v2462 = vld [vmem:[#allocation3 + $0x68] sm:$0xff]
      %v2463 = vld [vmem:[#allocation3 + $0x70] sm:$0xff]
      %v2464 = vld [vmem:[#allocation3 + $0x78] sm:$0xff]
      %v2465 = vld [vmem:[%s10] sm:$0xff]
      %v2466 = vld [vmem:[%s10 + $0x8] sm:$0xff]
      %v2467 = vld [vmem:[%s10 + $0x10] sm:$0xff]
      %v2468 = vld [vmem:[%s10 + $0x18] sm:$0xff]
      %v2469 = vld [vmem:[%s10 + $0x20] sm:$0xff]
      %v2470 = vld [vmem:[%s10 + $0x28] sm:$0xff]
      %v2471 = vld [vmem:[%s10 + $0x30] sm:$0xff]
      %v2472 = vld [vmem:[%s10 + $0x38] sm:$0xff]
      %v2473 = vld [vmem:[%s10 + $0x40] sm:$0xff]
      %v2474 = vld [vmem:[%s10 + $0x48] sm:$0xff]
      %v2475 = vld [vmem:[%s10 + $0x50] sm:$0xff]
      %v2476 = vld [vmem:[%s10 + $0x58] sm:$0xff]
      %v2477 = vld [vmem:[%s10 + $0x60] sm:$0xff]
      %v2478 = vld [vmem:[%s10 + $0x68] sm:$0xff]
      %v2479 = vld [vmem:[%s10 + $0x70] sm:$0xff]
      %v2480 = vld [vmem:[%s10 + $0x78] sm:$0xff]
      %v2481 = vld [vmem:[%s11] sm:$0x1]
      %v2483 = vlaneseq
      %v2484 = vshrl.u32 %v2483, 7
      %v2485 = vsub.s32 0, %v2484
      %v2486 = vrot.slane %v2481, %v2485
      %2488 = vmatprep.subr.mxu0 0.0
      %2489 = vmatpush1.msra.mxu0 %v2465
      %2490 = vmatprep.subr.mxu0 0.0
      %2491 = vmatpush1.msra.mxu0 %v2466
      %2492 = vmatprep.subr.mxu0 0.0
      %2493 = vmatpush1.msra.mxu0 %v2467
      %2494 = vmatprep.subr.mxu0 0.0
      %2495 = vmatpush1.msra.mxu0 %v2468
      %2496 = vmatprep.subr.mxu0 0.0
      %2497 = vmatpush1.msra.mxu0 %v2469
      %2498 = vmatprep.subr.mxu0 0.0
      %2499 = vmatpush1.msra.mxu0 %v2470
      %2500 = vmatprep.subr.mxu0 0.0
      %2501 = vmatpush1.msra.mxu0 %v2471
      %2502 = vmatprep.subr.mxu0 0.0
      %2503 = vmatpush1.msra.mxu0 %v2472
      %2504 = vmatprep.subr.mxu0 0.0
      %2505 = vmatpush1.msra.mxu0 %v2473
      %2506 = vmatprep.subr.mxu0 0.0
      %2507 = vmatpush1.msra.mxu0 %v2474
      %2508 = vmatprep.subr.mxu0 0.0
      %2509 = vmatpush1.msra.mxu0 %v2475
      %2510 = vmatprep.subr.mxu0 0.0
      %2511 = vmatpush1.msra.mxu0 %v2476
      %2512 = vmatprep.subr.mxu0 0.0
      %2513 = vmatpush1.msra.mxu0 %v2477
      %2514 = vmatprep.subr.mxu0 0.0
      %2515 = vmatpush1.msra.mxu0 %v2478
      %2516 = vmatprep.subr.mxu0 0.0
      %2517 = vmatpush1.msra.mxu0 %v2479
      %2518 = vmatprep.subr.mxu0 0.0
      %2519 = vmatpush1.msra.mxu0 %v2480
      %2520 = vmatprep.subr.mxu0 0.0
      %2521 = vmatpush1.msra.mxu0 0.0
      %2522 = vmatprep.subr.mxu0 0.0
      %2523 = vmatpush1.msra.mxu0 0.0
      %2524 = vmatprep.subr.mxu0 0.0
      %2525 = vmatpush1.msra.mxu0 0.0
      %2526 = vmatprep.subr.mxu0 0.0
      %2527 = vmatpush1.msra.mxu0 0.0
      %2528 = vmatprep.subr.mxu0 0.0
      %2529 = vmatpush1.msra.mxu0 0.0
      %2530 = vmatprep.subr.mxu0 0.0
      %2531 = vmatpush1.msra.mxu0 0.0
      %2532 = vmatprep.subr.mxu0 0.0
      %2533 = vmatpush1.msra.mxu0 0.0
      %2534 = vmatprep.subr.mxu0 0.0
      %2535 = vmatpush1.msra.mxu0 0.0
      %2536 = vmatprep.subr.mxu0 0.0
      %2537 = vmatpush1.msra.mxu0 0.0
      %2538 = vmatprep.subr.mxu0 0.0
      %2539 = vmatpush1.msra.mxu0 0.0
      %2540 = vmatprep.subr.mxu0 0.0
      %2541 = vmatpush1.msra.mxu0 0.0
      %2542 = vmatprep.subr.mxu0 0.0
      %2543 = vmatpush1.msra.mxu0 0.0
      %2544 = vmatprep.subr.mxu0 0.0
      %2545 = vmatpush1.msra.mxu0 0.0
      %2546 = vmatprep.subr.mxu0 0.0
      %2547 = vmatpush1.msra.mxu0 0.0
      %2548 = vmatprep.subr.mxu0 0.0
      %2549 = vmatpush1.msra.mxu0 0.0
      %2550 = vmatprep.subr.mxu0 0.0
      %2551 = vmatpush1.msra.mxu0 0.0
      %2552 = vmatprep.mubr.f32.mxu0 0.0
      %2553 = vmatmul.mubr.f32.gmra.mrb[0].mxu0 %v2449
      %v2554 = vpop.f32.mrb[0].mxu0
      %v2555 = vadd.f32 %v2486, %v2554
      %v2556 = vpop.f32.mrb[0].mxu0
      %2557 = vmatprep.mubr.f32.mxu0 0.0
      %2558 = vmatmul.mubr.f32.gmra.mrb[0].mxu0 %v2450
      %v2559 = vpop.f32.mrb[0].mxu0
      %v2560 = vadd.f32 %v2486, %v2559
      %v2561 = vpop.f32.mrb[0].mxu0
      %2562 = vmatprep.mubr.f32.mxu0 0.0
      %2563 = vmatmul.mubr.f32.gmra.mrb[0].mxu0 %v2451
      %v2564 = vpop.f32.mrb[0].mxu0
      %v2565 = vadd.f32 %v2486, %v2564
      %v2566 = vpop.f32.mrb[0].mxu0
      %2567 = vmatprep.mubr.f32.mxu0 0.0
      %2568 = vmatmul.mubr.f32.gmra.mrb[0].mxu0 %v2452
      %v2569 = vpop.f32.mrb[0].mxu0
      %v2570 = vadd.f32 %v2486, %v2569
      %v2571 = vpop.f32.mrb[0].mxu0
      %2572 = vmatprep.mubr.f32.mxu0 0.0
      %2573 = vmatmul.mubr.f32.gmra.mrb[0].mxu0 %v2453
      %v2574 = vpop.f32.mrb[0].mxu0
      %v2575 = vadd.f32 %v2486, %v2574
      %v2576 = vpop.f32.mrb[0].mxu0
      %2577 = vmatprep.mubr.f32.mxu0 0.0
      %2578 = vmatmul.mubr.f32.gmra.mrb[0].mxu0 %v2454
      %v2579 = vpop.f32.mrb[0].mxu0
      %v2580 = vadd.f32 %v2486, %v2579
      %v2581 = vpop.f32.mrb[0].mxu0
      %2582 = vmatprep.mubr.f32.mxu0 0.0
      %2583 = vmatmul.mubr.f32.gmra.mrb[0].mxu0 %v2455
      %v2584 = vpop.f32.mrb[0].mxu0
      %v2585 = vadd.f32 %v2486, %v2584
      %v2586 = vpop.f32.mrb[0].mxu0
      %2587 = vmatprep.mubr.f32.mxu0 0.0
      %2588 = vmatmul.mubr.f32.gmra.mrb[0].mxu0 %v2456
      %v2589 = vpop.f32.mrb[0].mxu0
      %v2590 = vadd.f32 %v2486, %v2589
      %v2591 = vpop.f32.mrb[0].mxu0
      %2592 = vmatprep.mubr.f32.mxu0 0.0
      %2593 = vmatmul.mubr.f32.gmra.mrb[0].mxu0 %v2457
      %v2594 = vpop.f32.mrb[0].mxu0
      %v2595 = vadd.f32 %v2486, %v2594
      %v2596 = vpop.f32.mrb[0].mxu0
      %2597 = vmatprep.mubr.f32.mxu0 0.0
      %2598 = vmatmul.mubr.f32.gmra.mrb[0].mxu0 %v2458
      %v2599 = vpop.f32.mrb[0].mxu0
      %v2600 = vadd.f32 %v2486, %v2599
      %v2601 = vpop.f32.mrb[0].mxu0
      %2602 = vmatprep.mubr.f32.mxu0 0.0
      %2603 = vmatmul.mubr.f32.gmra.mrb[0].mxu0 %v2459
      %v2604 = vpop.f32.mrb[0].mxu0
      %v2605 = vadd.f32 %v2486, %v2604
      %v2606 = vpop.f32.mrb[0].mxu0
      %2607 = vmatprep.mubr.f32.mxu0 0.0
      %2608 = vmatmul.mubr.f32.gmra.mrb[0].mxu0 %v2460
      %v2609 = vpop.f32.mrb[0].mxu0
      %v2610 = vadd.f32 %v2486, %v2609
      %v2611 = vpop.f32.mrb[0].mxu0
      %2612 = vmatprep.mubr.f32.mxu0 0.0
      %2613 = vmatmul.mubr.f32.gmra.mrb[0].mxu0 %v2461
      %v2614 = vpop.f32.mrb[0].mxu0
      %v2615 = vadd.f32 %v2486, %v2614
      %v2616 = vpop.f32.mrb[0].mxu0
      %2617 = vmatprep.mubr.f32.mxu0 0.0
      %2618 = vmatmul.mubr.f32.gmra.mrb[0].mxu0 %v2462
      %v2619 = vpop.f32.mrb[0].mxu0
      %v2620 = vadd.f32 %v2486, %v2619
      %v2621 = vpop.f32.mrb[0].mxu0
      %2622 = vmatprep.mubr.f32.mxu0 0.0
      %2623 = vmatmul.mubr.f32.gmra.mrb[0].mxu0 %v2463
      %v2624 = vpop.f32.mrb[0].mxu0
      %v2625 = vadd.f32 %v2486, %v2624
      %v2626 = vpop.f32.mrb[0].mxu0
      %2627 = vmatprep.mubr.f32.mxu0 0.0
      %2628 = vmatmul.mubr.f32.gmra.mrb[0].mxu0 %v2464
      %v2629 = vpop.f32.mrb[0].mxu0
      %v2630 = vadd.f32 %v2486, %v2629
      %v2631 = vpop.f32.mrb[0].mxu0
      %2632 = vdwg.mxu0
      %v2633 = vmax.f32 %v2555, 0.0
      %v2634 = vmax.f32 %v2560, 0.0
      %v2635 = vmax.f32 %v2565, 0.0
      %v2636 = vmax.f32 %v2570, 0.0
      %v2637 = vmax.f32 %v2575, 0.0
      %v2638 = vmax.f32 %v2580, 0.0
      %v2639 = vmax.f32 %v2585, 0.0
      %v2640 = vmax.f32 %v2590, 0.0
      %v2641 = vmax.f32 %v2595, 0.0
      %v2642 = vmax.f32 %v2600, 0.0
      %v2643 = vmax.f32 %v2605, 0.0
      %v2644 = vmax.f32 %v2610, 0.0
      %v2645 = vmax.f32 %v2615, 0.0
      %v2646 = vmax.f32 %v2620, 0.0
      %v2647 = vmax.f32 %v2625, 0.0
      %v2648 = vmax.f32 %v2630, 0.0
      %v2649 = vand.u32 2147483647, %v2555
      %v2650 = vand.u32 2147483647, %v2560
      %v2651 = vand.u32 2147483647, %v2565
      %v2652 = vand.u32 2147483647, %v2570
      %v2653 = vand.u32 2147483647, %v2575
      %v2654 = vand.u32 2147483647, %v2580
      %v2655 = vand.u32 2147483647, %v2585
      %v2656 = vand.u32 2147483647, %v2590
      %v2657 = vand.u32 2147483647, %v2595
      %v2658 = vand.u32 2147483647, %v2600
      %v2659 = vand.u32 2147483647, %v2605
      %v2660 = vand.u32 2147483647, %v2610
      %v2661 = vand.u32 2147483647, %v2615
      %v2662 = vand.u32 2147483647, %v2620
      %v2663 = vand.u32 2147483647, %v2625
      %v2664 = vand.u32 2147483647, %v2630
      %v2665 = vsub.f32 0.0, %v2649
      %v2666 = vsub.f32 0.0, %v2650
      %v2667 = vsub.f32 0.0, %v2651
      %v2668 = vsub.f32 0.0, %v2652
      %v2669 = vsub.f32 0.0, %v2653
      %v2670 = vsub.f32 0.0, %v2654
      %v2671 = vsub.f32 0.0, %v2655
      %v2672 = vsub.f32 0.0, %v2656
      %v2673 = vsub.f32 0.0, %v2657
      %v2674 = vsub.f32 0.0, %v2658
      %v2675 = vsub.f32 0.0, %v2659
      %v2676 = vsub.f32 0.0, %v2660
      %v2677 = vsub.f32 0.0, %v2661
      %v2678 = vsub.f32 0.0, %v2662
      %v2679 = vsub.f32 0.0, %v2663
      %v2680 = vsub.f32 0.0, %v2664
      %v2681 = vmul.f32 %v2665, 1.442695
      %v2682 = vpow.pop %v2681
      %v2683 = vmul.f32 %v2666, 1.442695
      %v2684 = vpow.pop %v2683
      %v2685 = vmul.f32 %v2667, 1.442695
      %v2686 = vpow.pop %v2685
      %v2687 = vmul.f32 %v2668, 1.442695
      %v2688 = vpow.pop %v2687
      %v2689 = vmul.f32 %v2669, 1.442695
      %v2690 = vpow.pop %v2689
      %v2691 = vmul.f32 %v2670, 1.442695
      %v2692 = vpow.pop %v2691
      %v2693 = vmul.f32 %v2671, 1.442695
      %v2694 = vpow.pop %v2693
      %v2695 = vmul.f32 %v2672, 1.442695
      %v2696 = vpow.pop %v2695
      %v2697 = vmul.f32 %v2673, 1.442695
      %v2698 = vpow.pop %v2697
      %v2699 = vmul.f32 %v2674, 1.442695
      %v2700 = vpow.pop %v2699
      %v2701 = vmul.f32 %v2675, 1.442695
      %v2702 = vpow.pop %v2701
      %v2703 = vmul.f32 %v2676, 1.442695
      %v2704 = vpow.pop %v2703
      %v2705 = vmul.f32 %v2677, 1.442695
      %v2706 = vpow.pop %v2705
      %v2707 = vmul.f32 %v2678, 1.442695
      %v2708 = vpow.pop %v2707
      %v2709 = vmul.f32 %v2679, 1.442695
      %v2710 = vpow.pop %v2709
      %v2711 = vmul.f32 %v2680, 1.442695
      %v2712 = vpow.pop %v2711
      %v2713 = vadd.f32 %v2682, 1.0
      %v2714 = vlog2.pop %v2713
      %v2715 = vmul.f32 %v2714, 0.6931472
      %v2716 = vmul.f32 -0.5, %v2682
      %v2717 = vadd.f32 %v2716, 1.0
      %v2718 = vmul.f32 %v2717, %v2682
      %v2719 = vand.u32 2147483647, %v2682
      %vm2720 = vcmp.lt.f32.partialorder %v2719, 0.0004427343
      %v2721 = vsel %vm2720, %v2718, %v2715
      %v2722 = vadd.f32 %v2684, 1.0
      %v2723 = vlog2.pop %v2722
      %v2724 = vmul.f32 %v2723, 0.6931472
      %v2725 = vmul.f32 -0.5, %v2684
      %v2726 = vadd.f32 %v2725, 1.0
      %v2727 = vmul.f32 %v2726, %v2684
      %v2728 = vand.u32 2147483647, %v2684
      %vm2729 = vcmp.lt.f32.partialorder %v2728, 0.0004427343
      %v2730 = vsel %vm2729, %v2727, %v2724
      %v2731 = vadd.f32 %v2686, 1.0
      %v2732 = vlog2.pop %v2731
      %v2733 = vmul.f32 %v2732, 0.6931472
      %v2734 = vmul.f32 -0.5, %v2686
      %v2735 = vadd.f32 %v2734, 1.0
      %v2736 = vmul.f32 %v2735, %v2686
      %v2737 = vand.u32 2147483647, %v2686
      %vm2738 = vcmp.lt.f32.partialorder %v2737, 0.0004427343
      %v2739 = vsel %vm2738, %v2736, %v2733
      %v2740 = vadd.f32 %v2688, 1.0
      %v2741 = vlog2.pop %v2740
      %v2742 = vmul.f32 %v2741, 0.6931472
      %v2743 = vmul.f32 -0.5, %v2688
      %v2744 = vadd.f32 %v2743, 1.0
      %v2745 = vmul.f32 %v2744, %v2688
      %v2746 = vand.u32 2147483647, %v2688
      %vm2747 = vcmp.lt.f32.partialorder %v2746, 0.0004427343
      %v2748 = vsel %vm2747, %v2745, %v2742
      %v2749 = vadd.f32 %v2690, 1.0
      %v2750 = vlog2.pop %v2749
      %v2751 = vmul.f32 %v2750, 0.6931472
      %v2752 = vmul.f32 -0.5, %v2690
      %v2753 = vadd.f32 %v2752, 1.0
      %v2754 = vmul.f32 %v2753, %v2690
      %v2755 = vand.u32 2147483647, %v2690
      %vm2756 = vcmp.lt.f32.partialorder %v2755, 0.0004427343
      %v2757 = vsel %vm2756, %v2754, %v2751
      %v2758 = vadd.f32 %v2692, 1.0
      %v2759 = vlog2.pop %v2758
      %v2760 = vmul.f32 %v2759, 0.6931472
      %v2761 = vmul.f32 -0.5, %v2692
      %v2762 = vadd.f32 %v2761, 1.0
      %v2763 = vmul.f32 %v2762, %v2692
      %v2764 = vand.u32 2147483647, %v2692
      %vm2765 = vcmp.lt.f32.partialorder %v2764, 0.0004427343
      %v2766 = vsel %vm2765, %v2763, %v2760
      %v2767 = vadd.f32 %v2694, 1.0
      %v2768 = vlog2.pop %v2767
      %v2769 = vmul.f32 %v2768, 0.6931472
      %v2770 = vmul.f32 -0.5, %v2694
      %v2771 = vadd.f32 %v2770, 1.0
      %v2772 = vmul.f32 %v2771, %v2694
      %v2773 = vand.u32 2147483647, %v2694
      %vm2774 = vcmp.lt.f32.partialorder %v2773, 0.0004427343
      %v2775 = vsel %vm2774, %v2772, %v2769
      %v2776 = vadd.f32 %v2696, 1.0
      %v2777 = vlog2.pop %v2776
      %v2778 = vmul.f32 %v2777, 0.6931472
      %v2779 = vmul.f32 -0.5, %v2696
      %v2780 = vadd.f32 %v2779, 1.0
      %v2781 = vmul.f32 %v2780, %v2696
      %v2782 = vand.u32 2147483647, %v2696
      %vm2783 = vcmp.lt.f32.partialorder %v2782, 0.0004427343
      %v2784 = vsel %vm2783, %v2781, %v2778
      %v2785 = vadd.f32 %v2698, 1.0
      %v2786 = vlog2.pop %v2785
      %v2787 = vmul.f32 %v2786, 0.6931472
      %v2788 = vmul.f32 -0.5, %v2698
      %v2789 = vadd.f32 %v2788, 1.0
      %v2790 = vmul.f32 %v2789, %v2698
      %v2791 = vand.u32 2147483647, %v2698
      %vm2792 = vcmp.lt.f32.partialorder %v2791, 0.0004427343
      %v2793 = vsel %vm2792, %v2790, %v2787
      %v2794 = vadd.f32 %v2700, 1.0
      %v2795 = vlog2.pop %v2794
      %v2796 = vmul.f32 %v2795, 0.6931472
      %v2797 = vmul.f32 -0.5, %v2700
      %v2798 = vadd.f32 %v2797, 1.0
      %v2799 = vmul.f32 %v2798, %v2700
      %v2800 = vand.u32 2147483647, %v2700
      %vm2801 = vcmp.lt.f32.partialorder %v2800, 0.0004427343
      %v2802 = vsel %vm2801, %v2799, %v2796
      %v2803 = vadd.f32 %v2702, 1.0
      %v2804 = vlog2.pop %v2803
      %v2805 = vmul.f32 %v2804, 0.6931472
      %v2806 = vmul.f32 -0.5, %v2702
      %v2807 = vadd.f32 %v2806, 1.0
      %v2808 = vmul.f32 %v2807, %v2702
      %v2809 = vand.u32 2147483647, %v2702
      %vm2810 = vcmp.lt.f32.partialorder %v2809, 0.0004427343
      %v2811 = vsel %vm2810, %v2808, %v2805
      %v2812 = vadd.f32 %v2704, 1.0
      %v2813 = vlog2.pop %v2812
      %v2814 = vmul.f32 %v2813, 0.6931472
      %v2815 = vmul.f32 -0.5, %v2704
      %v2816 = vadd.f32 %v2815, 1.0
      %v2817 = vmul.f32 %v2816, %v2704
      %v2818 = vand.u32 2147483647, %v2704
      %vm2819 = vcmp.lt.f32.partialorder %v2818, 0.0004427343
      %v2820 = vsel %vm2819, %v2817, %v2814
      %v2821 = vadd.f32 %v2706, 1.0
      %v2822 = vlog2.pop %v2821
      %v2823 = vmul.f32 %v2822, 0.6931472
      %v2824 = vmul.f32 -0.5, %v2706
      %v2825 = vadd.f32 %v2824, 1.0
      %v2826 = vmul.f32 %v2825, %v2706
      %v2827 = vand.u32 2147483647, %v2706
      %vm2828 = vcmp.lt.f32.partialorder %v2827, 0.0004427343
      %v2829 = vsel %vm2828, %v2826, %v2823
      %v2830 = vadd.f32 %v2708, 1.0
      %v2831 = vlog2.pop %v2830
      %v2832 = vmul.f32 %v2831, 0.6931472
      %v2833 = vmul.f32 -0.5, %v2708
      %v2834 = vadd.f32 %v2833, 1.0
      %v2835 = vmul.f32 %v2834, %v2708
      %v2836 = vand.u32 2147483647, %v2708
      %vm2837 = vcmp.lt.f32.partialorder %v2836, 0.0004427343
      %v2838 = vsel %vm2837, %v2835, %v2832
      %v2839 = vadd.f32 %v2710, 1.0
      %v2840 = vlog2.pop %v2839
      %v2841 = vmul.f32 %v2840, 0.6931472
      %v2842 = vmul.f32 -0.5, %v2710
      %v2843 = vadd.f32 %v2842, 1.0
      %v2844 = vmul.f32 %v2843, %v2710
      %v2845 = vand.u32 2147483647, %v2710
      %vm2846 = vcmp.lt.f32.partialorder %v2845, 0.0004427343
      %v2847 = vsel %vm2846, %v2844, %v2841
      %v2848 = vadd.f32 %v2712, 1.0
      %v2849 = vlog2.pop %v2848
      %v2850 = vmul.f32 %v2849, 0.6931472
      %v2851 = vmul.f32 -0.5, %v2712
      %v2852 = vadd.f32 %v2851, 1.0
      %v2853 = vmul.f32 %v2852, %v2712
      %v2854 = vand.u32 2147483647, %v2712
      %vm2855 = vcmp.lt.f32.partialorder %v2854, 0.0004427343
      %v2856 = vsel %vm2855, %v2853, %v2850
      %v2857 = vadd.f32 %v2633, %v2721
      %v2858 = vadd.f32 %v2634, %v2730
      %v2859 = vadd.f32 %v2635, %v2739
      %v2860 = vadd.f32 %v2636, %v2748
      %v2861 = vadd.f32 %v2637, %v2757
      %v2862 = vadd.f32 %v2638, %v2766
      %v2863 = vadd.f32 %v2639, %v2775
      %v2864 = vadd.f32 %v2640, %v2784
      %v2865 = vadd.f32 %v2641, %v2793
      %v2866 = vadd.f32 %v2642, %v2802
      %v2867 = vadd.f32 %v2643, %v2811
      %v2868 = vadd.f32 %v2644, %v2820
      %v2869 = vadd.f32 %v2645, %v2829
      %v2870 = vadd.f32 %v2646, %v2838
      %v2871 = vadd.f32 %v2647, %v2847
      %v2872 = vadd.f32 %v2648, %v2856
      %v2873 = vsub.f32 %v2857, 0.6931472
      %v2874 = vsub.f32 %v2858, 0.6931472
      %v2875 = vsub.f32 %v2859, 0.6931472
      %v2876 = vsub.f32 %v2860, 0.6931472
      %v2877 = vsub.f32 %v2861, 0.6931472
      %v2878 = vsub.f32 %v2862, 0.6931472
      %v2879 = vsub.f32 %v2863, 0.6931472
      %v2880 = vsub.f32 %v2864, 0.6931472
      %v2881 = vsub.f32 %v2865, 0.6931472
      %v2882 = vsub.f32 %v2866, 0.6931472
      %v2883 = vsub.f32 %v2867, 0.6931472
      %v2884 = vsub.f32 %v2868, 0.6931472
      %v2885 = vsub.f32 %v2869, 0.6931472
      %v2886 = vsub.f32 %v2870, 0.6931472
      %v2887 = vsub.f32 %v2871, 0.6931472
      %v2888 = vsub.f32 %v2872, 0.6931472
      %v2889 = vld [vmem:[%s12] sm:$0xff]
      %v2890 = vld [vmem:[%s12 + $0x8] sm:$0xff]
      %v2891 = vld [vmem:[%s12 + $0x10] sm:$0xff]
      %v2892 = vld [vmem:[%s12 + $0x18] sm:$0xff]
      %v2893 = vld [vmem:[%s12 + $0x20] sm:$0xff]
      %v2894 = vld [vmem:[%s12 + $0x28] sm:$0xff]
      %v2895 = vld [vmem:[%s12 + $0x30] sm:$0xff]
      %v2896 = vld [vmem:[%s12 + $0x38] sm:$0xff]
      %v2897 = vld [vmem:[%s12 + $0x40] sm:$0xff]
      %v2898 = vld [vmem:[%s12 + $0x48] sm:$0xff]
      %v2899 = vld [vmem:[%s12 + $0x50] sm:$0xff]
      %v2900 = vld [vmem:[%s12 + $0x58] sm:$0xff]
      %v2901 = vld [vmem:[%s12 + $0x60] sm:$0xff]
      %v2902 = vld [vmem:[%s12 + $0x68] sm:$0xff]
      %v2903 = vld [vmem:[%s12 + $0x70] sm:$0xff]
      %v2904 = vld [vmem:[%s12 + $0x78] sm:$0xff]
      %v2905 = vld [vmem:[%s13] sm:$0x1]
      %v2907 = vlaneseq
      %v2908 = vshrl.u32 %v2907, 7
      %v2909 = vsub.s32 0, %v2908
      %v2910 = vrot.slane %v2905, %v2909
      %2912 = vmatprep.subr.mxu0 0.0
      %2913 = vmatpush1.msra.mxu0 %v2889
      %2914 = vmatprep.subr.mxu0 0.0
      %2915 = vmatpush1.msra.mxu0 %v2890
      %2916 = vmatprep.subr.mxu0 0.0
      %2917 = vmatpush1.msra.mxu0 %v2891
      %2918 = vmatprep.subr.mxu0 0.0
      %2919 = vmatpush1.msra.mxu0 %v2892
      %2920 = vmatprep.subr.mxu0 0.0
      %2921 = vmatpush1.msra.mxu0 %v2893
      %2922 = vmatprep.subr.mxu0 0.0
      %2923 = vmatpush1.msra.mxu0 %v2894
      %2924 = vmatprep.subr.mxu0 0.0
      %2925 = vmatpush1.msra.mxu0 %v2895
      %2926 = vmatprep.subr.mxu0 0.0
      %2927 = vmatpush1.msra.mxu0 %v2896
      %2928 = vmatprep.subr.mxu0 0.0
      %2929 = vmatpush1.msra.mxu0 %v2897
      %2930 = vmatprep.subr.mxu0 0.0
      %2931 = vmatpush1.msra.mxu0 %v2898
      %2932 = vmatprep.subr.mxu0 0.0
      %2933 = vmatpush1.msra.mxu0 %v2899
      %2934 = vmatprep.subr.mxu0 0.0
      %2935 = vmatpush1.msra.mxu0 %v2900
      %2936 = vmatprep.subr.mxu0 0.0
      %2937 = vmatpush1.msra.mxu0 %v2901
      %2938 = vmatprep.subr.mxu0 0.0
      %2939 = vmatpush1.msra.mxu0 %v2902
      %2940 = vmatprep.subr.mxu0 0.0
      %2941 = vmatpush1.msra.mxu0 %v2903
      %2942 = vmatprep.subr.mxu0 0.0
      %2943 = vmatpush1.msra.mxu0 %v2904
      %2944 = vmatprep.subr.mxu0 0.0
      %2945 = vmatpush1.msra.mxu0 0.0
      %2946 = vmatprep.subr.mxu0 0.0
      %2947 = vmatpush1.msra.mxu0 0.0
      %2948 = vmatprep.subr.mxu0 0.0
      %2949 = vmatpush1.msra.mxu0 0.0
      %2950 = vmatprep.subr.mxu0 0.0
      %2951 = vmatpush1.msra.mxu0 0.0
      %2952 = vmatprep.subr.mxu0 0.0
      %2953 = vmatpush1.msra.mxu0 0.0
      %2954 = vmatprep.subr.mxu0 0.0
      %2955 = vmatpush1.msra.mxu0 0.0
      %2956 = vmatprep.subr.mxu0 0.0
      %2957 = vmatpush1.msra.mxu0 0.0
      %2958 = vmatprep.subr.mxu0 0.0
      %2959 = vmatpush1.msra.mxu0 0.0
      %2960 = vmatprep.subr.mxu0 0.0
      %2961 = vmatpush1.msra.mxu0 0.0
      %2962 = vmatprep.subr.mxu0 0.0
      %2963 = vmatpush1.msra.mxu0 0.0
      %2964 = vmatprep.subr.mxu0 0.0
      %2965 = vmatpush1.msra.mxu0 0.0
      %2966 = vmatprep.subr.mxu0 0.0
      %2967 = vmatpush1.msra.mxu0 0.0
      %2968 = vmatprep.subr.mxu0 0.0
      %2969 = vmatpush1.msra.mxu0 0.0
      %2970 = vmatprep.subr.mxu0 0.0
      %2971 = vmatpush1.msra.mxu0 0.0
      %2972 = vmatprep.subr.mxu0 0.0
      %2973 = vmatpush1.msra.mxu0 0.0
      %2974 = vmatprep.subr.mxu0 0.0
      %2975 = vmatpush1.msra.mxu0 0.0
      %2976 = vmatprep.mubr.f32.mxu0 0.0
      %2977 = vmatmul.mubr.f32.gmra.mrb[0].mxu0 %v2873
      %v2978 = vpop.f32.mrb[0].mxu0
      %v2979 = vadd.f32 %v2910, %v2978
      %v2980 = vpop.f32.mrb[0].mxu0
      %2981 = vmatprep.mubr.f32.mxu0 0.0
      %2982 = vmatmul.mubr.f32.gmra.mrb[0].mxu0 %v2874
      %v2983 = vpop.f32.mrb[0].mxu0
      %v2984 = vadd.f32 %v2910, %v2983
      %v2985 = vpop.f32.mrb[0].mxu0
      %2986 = vmatprep.mubr.f32.mxu0 0.0
      %2987 = vmatmul.mubr.f32.gmra.mrb[0].mxu0 %v2875
      %v2988 = vpop.f32.mrb[0].mxu0
      %v2989 = vadd.f32 %v2910, %v2988
      %v2990 = vpop.f32.mrb[0].mxu0
      %2991 = vmatprep.mubr.f32.mxu0 0.0
      %2992 = vmatmul.mubr.f32.gmra.mrb[0].mxu0 %v2876
      %v2993 = vpop.f32.mrb[0].mxu0
      %v2994 = vadd.f32 %v2910, %v2993
      %v2995 = vpop.f32.mrb[0].mxu0
      %2996 = vmatprep.mubr.f32.mxu0 0.0
      %2997 = vmatmul.mubr.f32.gmra.mrb[0].mxu0 %v2877
      %v2998 = vpop.f32.mrb[0].mxu0
      %v2999 = vadd.f32 %v2910, %v2998
      %v3000 = vpop.f32.mrb[0].mxu0
      %3001 = vmatprep.mubr.f32.mxu0 0.0
      %3002 = vmatmul.mubr.f32.gmra.mrb[0].mxu0 %v2878
      %v3003 = vpop.f32.mrb[0].mxu0
      %v3004 = vadd.f32 %v2910, %v3003
      %v3005 = vpop.f32.mrb[0].mxu0
      %3006 = vmatprep.mubr.f32.mxu0 0.0
      %3007 = vmatmul.mubr.f32.gmra.mrb[0].mxu0 %v2879
      %v3008 = vpop.f32.mrb[0].mxu0
      %v3009 = vadd.f32 %v2910, %v3008
      %v3010 = vpop.f32.mrb[0].mxu0
      %3011 = vmatprep.mubr.f32.mxu0 0.0
      %3012 = vmatmul.mubr.f32.gmra.mrb[0].mxu0 %v2880
      %v3013 = vpop.f32.mrb[0].mxu0
      %v3014 = vadd.f32 %v2910, %v3013
      %v3015 = vpop.f32.mrb[0].mxu0
      %3016 = vmatprep.mubr.f32.mxu0 0.0
      %3017 = vmatmul.mubr.f32.gmra.mrb[0].mxu0 %v2881
      %v3018 = vpop.f32.mrb[0].mxu0
      %v3019 = vadd.f32 %v2910, %v3018
      %v3020 = vpop.f32.mrb[0].mxu0
      %3021 = vmatprep.mubr.f32.mxu0 0.0
      %3022 = vmatmul.mubr.f32.gmra.mrb[0].mxu0 %v2882
      %v3023 = vpop.f32.mrb[0].mxu0
      %v3024 = vadd.f32 %v2910, %v3023
      %v3025 = vpop.f32.mrb[0].mxu0
      %3026 = vmatprep.mubr.f32.mxu0 0.0
      %3027 = vmatmul.mubr.f32.gmra.mrb[0].mxu0 %v2883
      %v3028 = vpop.f32.mrb[0].mxu0
      %v3029 = vadd.f32 %v2910, %v3028
      %v3030 = vpop.f32.mrb[0].mxu0
      %3031 = vmatprep.mubr.f32.mxu0 0.0
      %3032 = vmatmul.mubr.f32.gmra.mrb[0].mxu0 %v2884
      %v3033 = vpop.f32.mrb[0].mxu0
      %v3034 = vadd.f32 %v2910, %v3033
      %v3035 = vpop.f32.mrb[0].mxu0
      %3036 = vmatprep.mubr.f32.mxu0 0.0
      %3037 = vmatmul.mubr.f32.gmra.mrb[0].mxu0 %v2885
      %v3038 = vpop.f32.mrb[0].mxu0
      %v3039 = vadd.f32 %v2910, %v3038
      %v3040 = vpop.f32.mrb[0].mxu0
      %3041 = vmatprep.mubr.f32.mxu0 0.0
      %3042 = vmatmul.mubr.f32.gmra.mrb[0].mxu0 %v2886
      %v3043 = vpop.f32.mrb[0].mxu0
      %v3044 = vadd.f32 %v2910, %v3043
      %v3045 = vpop.f32.mrb[0].mxu0
      %3046 = vmatprep.mubr.f32.mxu0 0.0
      %3047 = vmatmul.mubr.f32.gmra.mrb[0].mxu0 %v2887
      %v3048 = vpop.f32.mrb[0].mxu0
      %v3049 = vadd.f32 %v2910, %v3048
      %v3050 = vpop.f32.mrb[0].mxu0
      %3051 = vmatprep.mubr.f32.mxu0 0.0
      %3052 = vmatmul.mubr.f32.gmra.mrb[0].mxu0 %v2888
      %v3053 = vpop.f32.mrb[0].mxu0
      %v3054 = vadd.f32 %v2910, %v3053
      %v3055 = vpop.f32.mrb[0].mxu0
      %3056 = vdwg.mxu0
      %3057 = vst [vmem:[#allocation4] sm:$0xff] %v2979
      %3058 = vst [vmem:[#allocation4 + $0x8] sm:$0xff] %v2984
      %3059 = vst [vmem:[#allocation4 + $0x10] sm:$0xff] %v2989
      %3060 = vst [vmem:[#allocation4 + $0x18] sm:$0xff] %v2994
      %3061 = vst [vmem:[#allocation4 + $0x20] sm:$0xff] %v2999
      %3062 = vst [vmem:[#allocation4 + $0x28] sm:$0xff] %v3004
      %3063 = vst [vmem:[#allocation4 + $0x30] sm:$0xff] %v3009
      %3064 = vst [vmem:[#allocation4 + $0x38] sm:$0xff] %v3014
      %3065 = vst [vmem:[#allocation4 + $0x40] sm:$0xff] %v3019
      %3066 = vst [vmem:[#allocation4 + $0x48] sm:$0xff] %v3024
      %3067 = vst [vmem:[#allocation4 + $0x50] sm:$0xff] %v3029
      %3068 = vst [vmem:[#allocation4 + $0x58] sm:$0xff] %v3034
      %3069 = vst [vmem:[#allocation4 + $0x60] sm:$0xff] %v3039
      %3070 = vst [vmem:[#allocation4 + $0x68] sm:$0xff] %v3044
      %3071 = vst [vmem:[#allocation4 + $0x70] sm:$0xff] %v3049
      %3072 = vst [vmem:[#allocation4 + $0x78] sm:$0xff] %v3054
    $region65: #{tpu_custom_call.1} parent=1 // pred_fallthru
      _
    // Predicated region
    $region66: #{tpu_custom_call.1} parent=1 // pred_check
      _
    $region67: #{tpu_custom_call.1} parent=1 // pred_check_branch
      %3074 = sbr.rel (0) target = $region69
    $region68: #{tpu_custom_call.1} parent=1 // pred_region
      %s3076 = ssub.s32 2048, 2048
      %3077 = vsyncadd [#allocation5], %s3076
      %s3078 = sshll.u32 [#allocation4], 4
      %s3079 = int_to_ptr.vmem [resolvable:$true] %s3078
      %3084 = dma.vmem_to_hbm [thread:$0]  %s3079, 2048, %s14, [#allocation5], 128, 128, 8
    $region69: #{tpu_custom_call.1} parent=1 // pred_fallthru
      _
    // Predicated region
    $region70: #{tpu_custom_call.1} parent=1 // pred_check
      _
    $region71: #{tpu_custom_call.1} parent=1 // pred_check_branch
      %3086 = sbr.rel (0) target = $region73
    $region72: #{tpu_custom_call.1} parent=1 // pred_region
      %3087 = dma.done [#allocation5], 2048
    $region73: #{tpu_custom_call.1} parent=1 // pred_fallthru
      _
    %3088 = vsyncpa [#allocation5], 1

</llo_original>
